<compile_context>
chip_gen: v7x
topology: tpu7x:2x2x1
jax: 0.10.0
libtpu: 0.0.40
codegen_flags: <defaults>
</compile_context>

<pallas_src>
import functools

import jax
import jax.numpy as jnp
from jax.experimental import pallas as pl
from jax.experimental.pallas import tpu as pltpu


def _mha_temporal_kernel(G, N, D, n_head, d_k, d_v, n_x, *refs):
    """Whole problem resident in VMEM (tiny shapes, single grid step).

    refs layout:
      refs[0:n_x]           activation inputs, each (B, L, N, D):
                              n_x == 1 -> x (q = k = v)
                              n_x == 2 -> q (= k), v
                              n_x == 3 -> q, k, v
      refs[n_x + 0] w_ks    (D, H*d_k)   shared q/k projection (module quirk)
      refs[n_x + 1] w_vs    (D, H*d_v)
      refs[n_x + 2] fc      (H*d_v, D)
      refs[n_x + 3] gamma   (1, D)
      refs[n_x + 4] beta    (1, D)
      refs[n_x + 5] out     (M, D)        M = G*N
      refs[n_x + 6] attn    (G, H, N, N)
    """
    q_ref = refs[0]
    k_ref = refs[0] if n_x < 3 else refs[1]
    v_ref = refs[0] if n_x == 1 else refs[n_x - 1]
    wk_ref, wv_ref, wfc_ref, gamma_ref, beta_ref, out_ref, attn_ref = refs[n_x:]

    M = G * N
    inv_temp = 1.0 / (d_k ** 0.5)

    # collapse (B, L, N, D) -> (M, D); leading-dims-only reshape, no relayout
    q_rows = q_ref[...].reshape(M, D)
    wk = wk_ref[...]

    # --- projections ----------------------------------------------------------
    if n_x < 3:
        # q and k are the same array AND share w_ks -> one MXU push covers both.
        qk = jnp.dot(q_rows, wk, preferred_element_type=jnp.float32)   # (M, H*dk)
        qp = qk * inv_temp                      # scale q once (not per head)
        kp = qk
    else:
        qp = jnp.dot(q_rows, wk, preferred_element_type=jnp.float32) * inv_temp
        kp = jnp.dot(k_ref[...].reshape(M, D), wk,
                     preferred_element_type=jnp.float32)
    v_rows = q_rows if n_x == 1 else v_ref[...].reshape(M, D)
    vp = jnp.dot(v_rows, wv_ref[...], preferred_element_type=jnp.float32)  # (M, H*dv)

    # --- attention (static head loop, batched over the G = B*L groups) --------
    o = q_rows                                  # residual accumulator
    attn_parts = []
    for h in range(n_head):
        qh = qp[:, h * d_k:(h + 1) * d_k].reshape(G, N, d_k)
        kh = kp[:, h * d_k:(h + 1) * d_k].reshape(G, N, d_k)
        vh = vp[:, h * d_v:(h + 1) * d_v].reshape(G, N, d_v)

        s = jnp.einsum("gqd,gkd->gqk", qh, kh,
                       preferred_element_type=jnp.float32)              # (G, N, N)
        s = s - jnp.max(s, axis=-1, keepdims=True)
        e = jnp.exp(s)
        denom = jnp.sum(e, axis=-1, keepdims=True)
        r = pl.reciprocal(denom, approx=True)       # EUP slot; VALU stays free
        r = r * (2.0 - denom * r)                   # one Newton step -> ~f32 exact
        a = e * r
        attn_parts.append(a.reshape(G, 1, N, N))

        ctx = jnp.einsum("gqk,gkd->gqd", a, vh,
                         preferred_element_type=jnp.float32)             # (G, N, dv)
        # head merge: sum_h ctx_h @ fc[h*dv:(h+1)*dv, :] == concat(heads) @ fc
        o = o + jnp.dot(ctx.reshape(M, d_v),
                        wfc_ref[h * d_v:(h + 1) * d_v, :],
                        preferred_element_type=jnp.float32)

    # one contiguous full-block store of the attention probabilities
    attn_ref[...] = jnp.concatenate(attn_parts, axis=1)

    # --- residual already added; LayerNorm (module uses eps=1e-6) -------------
    mean = jnp.mean(o, axis=-1, keepdims=True)
    cen = o - mean
    var = jnp.mean(cen * cen, axis=-1, keepdims=True)
    out_ref[...] = cen * jax.lax.rsqrt(var + 1e-6) * gamma_ref[...] + beta_ref[...]


def multihead_attention_temporal(q, k, v, params, *, n_head, d_k, d_v):
    """Forward of MultiHeadAttention_for_temporal (eval mode).

    q, k, v : (B, L, N, d_model) float32. Pass the SAME array object for q/k[/v] to
              hit the shared-projection fast paths (HARN's temporal attention does).
    params  : "w_ks" (d_model, H*d_k), "w_vs" (d_model, H*d_v), "fc" (H*d_v, d_model),
              "ln_g"/"ln_b" (d_model,) — nn.Linear weights stored pre-transposed so
              the forward is x @ W.
    returns (out (B, L, N, d_model), attn (B, L, H, N, N))
    """
    B, L, N, D = q.shape
    G = B * L
    M = G * N

    if (q is k) and (q is v):
        x_inputs = (q,)
    elif q is k:
        x_inputs = (q, v)
    else:
        x_inputs = (q, k, v)
    n_x = len(x_inputs)

    gamma = params["ln_g"].reshape(1, D)
    beta = params["ln_b"].reshape(1, D)
    weights = (params["w_ks"], params["w_vs"], params["fc"], gamma, beta)

    def _full(shape):
        # full-array block; trivial index map for the single grid step
        return pl.BlockSpec(shape, lambda i: (0,) * len(shape))

    kernel = functools.partial(_mha_temporal_kernel, G, N, D, n_head, d_k, d_v, n_x)

    out2d, attn4d = pl.pallas_call(
        kernel,
        out_shape=(
            jax.ShapeDtypeStruct((M, D), jnp.float32),
            jax.ShapeDtypeStruct((G, n_head, N, N), jnp.float32),
        ),
        grid_spec=pltpu.PrefetchScalarGridSpec(
            num_scalar_prefetch=0,
            grid=(1,),                    # single step: kernel is overhead-bound
            in_specs=[_full(a.shape) for a in x_inputs]
                     + [_full(w.shape) for w in weights],
            out_specs=(
                _full((M, D)),
                _full((G, n_head, N, N)),
            ),
        ),
        compiler_params=pltpu.CompilerParams(
            dimension_semantics=("arbitrary",)),
    )(*x_inputs, *weights)

    # contiguous (free) reshapes only
    return out2d.reshape(B, L, N, D), attn4d.reshape(B, L, n_head, N, N)


def reference_jax(q_in, k_in, v_in, params, *, n_head, d_k, d_v):
    """Pure-JAX reference mirroring the PyTorch forward (eval mode)."""
    B, L, N, D = q_in.shape
    # NOTE: the module projects q with w_ks (w_qs is unused in forward).
    qp = (q_in @ params["w_ks"]).reshape(B, L, N, n_head, d_k).transpose(0, 1, 3, 2, 4)
    kp = (k_in @ params["w_ks"]).reshape(B, L, N, n_head, d_k).transpose(0, 1, 3, 2, 4)
    vp = (v_in @ params["w_vs"]).reshape(B, L, N, n_head, d_v).transpose(0, 1, 3, 2, 4)
    scores = jnp.einsum("blhqd,blhkd->blhqk", qp / (d_k ** 0.5), kp)
    attn = jax.nn.softmax(scores, axis=-1)
    o = jnp.einsum("blhqk,blhkd->blhqd", attn, vp)
    o = o.transpose(0, 1, 3, 2, 4).reshape(B, L, N, n_head * d_v)
    o = o @ params["fc"] + q_in

    mean = jnp.mean(o, axis=-1, keepdims=True)
    var = jnp.mean((o - mean) ** 2, axis=-1, keepdims=True)
    out = (o - mean) / jnp.sqrt(var + 1e-6) * params["ln_g"] + params["ln_b"]
    return out, attn


def _check(out, attn, ref_out, ref_attn, B, L, N, d_model, n_head):
    assert out.shape == (B, L, N, d_model)
    assert attn.shape == (B, L, n_head, N, N)
    assert jnp.allclose(out, ref_out, atol=1e-4, rtol=1e-4)
    assert jnp.allclose(attn, ref_attn, atol=1e-5, rtol=1e-5)


if __name__ == "__main__":
    # small shapes consistent with the module's temporal attention usage
    B, L, N = 2, 4, 16            # batch, temporal length, tokens per step
    d_model = 32
    n_head, d_k, d_v = 2, 16, 16

    key = jax.random.PRNGKey(0)
    kx, kq, kk, kv, k1, k2, k3, k4, k5 = jax.random.split(key, 9)
    scale = 0.1
    params = {
        "w_ks": scale * jax.random.normal(k1, (d_model, n_head * d_k), jnp.float32),
        "w_vs": scale * jax.random.normal(k2, (d_model, n_head * d_v), jnp.float32),
        "fc":   scale * jax.random.normal(k3, (n_head * d_v, d_model), jnp.float32),
        "ln_g": 1.0 + 0.1 * jax.random.normal(k4, (d_model,), jnp.float32),
        "ln_b": 0.1 * jax.random.normal(k5, (d_model,), jnp.float32),
    }
    x = jax.random.normal(kx, (B, L, N, d_model), jnp.float32)

    # 1) HARN usage: self-attention, q = k = v  (single-input fast path)
    out, attn = multihead_attention_temporal(x, x, x, params,
                                             n_head=n_head, d_k=d_k, d_v=d_v)
    out = jax.block_until_ready(out)
    attn = jax.block_until_ready(attn)
    ref_out, ref_attn = reference_jax(x, x, x, params,
                                      n_head=n_head, d_k=d_k, d_v=d_v)
    _check(out, attn, ref_out, ref_attn, B, L, N, d_model, n_head)

    # 2) shared q/k, distinct v (two-input path)
    v2 = jax.random.normal(kv, (B, L, N, d_model), jnp.float32)
    out2, attn2 = multihead_attention_temporal(x, x, v2, params,
                                               n_head=n_head, d_k=d_k, d_v=d_v)
    out2 = jax.block_until_ready(out2)
    ref_out2, ref_attn2 = reference_jax(x, x, v2, params,
                                        n_head=n_head, d_k=d_k, d_v=d_v)
    _check(out2, attn2, ref_out2, ref_attn2, B, L, N, d_model, n_head)

    # 3) fully distinct q, k, v (general path)
    q3 = jax.random.normal(kq, (B, L, N, d_model), jnp.float32)
    k3_ = jax.random.normal(kk, (B, L, N, d_model), jnp.float32)
    out3, attn3 = multihead_attention_temporal(q3, k3_, v2, params,
                                               n_head=n_head, d_k=d_k, d_v=d_v)
    out3 = jax.block_until_ready(out3)
    ref_out3, ref_attn3 = reference_jax(q3, k3_, v2, params,
                                        n_head=n_head, d_k=d_k, d_v=d_v)
    _check(out3, attn3, ref_out3, ref_attn3, B, L, N, d_model, n_head)

    print("KERNEL_OK")
</pallas_src>

<mosaic_0001>
module attributes {stable_mosaic.version = 11 : i64} {
  func.func @_mha_temporal_kernel(%arg0: i32, %arg1: memref<2x4x16x32xf32, #tpu.memory_space<vmem>>, %arg2: memref<32x32xf32, #tpu.memory_space<vmem>>, %arg3: memref<32x32xf32, #tpu.memory_space<vmem>>, %arg4: memref<32x32xf32, #tpu.memory_space<vmem>>, %arg5: memref<1x32xf32, #tpu.memory_space<vmem>>, %arg6: memref<1x32xf32, #tpu.memory_space<vmem>>, %arg7: memref<128x32xf32, #tpu.memory_space<vmem>>, %arg8: memref<8x2x16x16xf32, #tpu.memory_space<vmem>>) attributes {dimension_semantics = [#tpu.dimension_semantics<arbitrary>], iteration_bounds = array<i64: 1>, scalar_prefetch = 0 : i64, scratch_operands = 0 : i64, tpu.core_type = #tpu.core_type<tc>, window_params = [{pipeline_mode = #tpu.pipeline_mode<synchronous>, transform_indices = @transform_0, window_bounds = array<i64: 2, 4, 16, 32>}, {pipeline_mode = #tpu.pipeline_mode<synchronous>, transform_indices = @transform_1, window_bounds = array<i64: 32, 32>}, {pipeline_mode = #tpu.pipeline_mode<synchronous>, transform_indices = @transform_2, window_bounds = array<i64: 32, 32>}, {pipeline_mode = #tpu.pipeline_mode<synchronous>, transform_indices = @transform_3, window_bounds = array<i64: 32, 32>}, {pipeline_mode = #tpu.pipeline_mode<synchronous>, transform_indices = @transform_4, window_bounds = array<i64: 1, 32>}, {pipeline_mode = #tpu.pipeline_mode<synchronous>, transform_indices = @transform_5, window_bounds = array<i64: 1, 32>}, {pipeline_mode = #tpu.pipeline_mode<synchronous>, transform_indices = @transform_6, window_bounds = array<i64: 128, 32>}, {pipeline_mode = #tpu.pipeline_mode<synchronous>, transform_indices = @transform_7, window_bounds = array<i64: 8, 2, 16, 16>}]} {
    %c0 = arith.constant 0 : index
    %c0_0 = arith.constant 0 : index
    %c0_1 = arith.constant 0 : index
    %c0_2 = arith.constant 0 : index
    %0 = vector.load %arg1[%c0, %c0_0, %c0_1, %c0_2] : memref<2x4x16x32xf32, #tpu.memory_space<vmem>>, vector<2x4x16x32xf32>
    %1 = vector.shape_cast %0 : vector<2x4x16x32xf32> to vector<128x32xf32>
    %c0_3 = arith.constant 0 : index
    %c0_4 = arith.constant 0 : index
    %2 = vector.load %arg2[%c0_3, %c0_4] : memref<32x32xf32, #tpu.memory_space<vmem>>, vector<32x32xf32>
    %cst = arith.constant dense<0.000000e+00> : vector<128x32xf32>
    %3 = tpu.matmul %1, %2, %cst {dimension_numbers = #tpu.dot_dimension_numbers<[1], [0], [0], [1], [0, 0, 1, 1], [], []>} : vector<128x32xf32>, vector<32x32xf32>, vector<128x32xf32> -> vector<128x32xf32>
    %cst_5 = arith.constant 2.500000e-01 : f32
    %4 = vector.broadcast %cst_5 : f32 to vector<128x32xf32>
    %5 = arith.mulf %3, %4 : vector<128x32xf32>
    %c0_6 = arith.constant 0 : index
    %c0_7 = arith.constant 0 : index
    %6 = vector.load %arg3[%c0_6, %c0_7] : memref<32x32xf32, #tpu.memory_space<vmem>>, vector<32x32xf32>
    %cst_8 = arith.constant dense<0.000000e+00> : vector<128x32xf32>
    %7 = tpu.matmul %1, %6, %cst_8 {dimension_numbers = #tpu.dot_dimension_numbers<[1], [0], [0], [1], [0, 0, 1, 1], [], []>} : vector<128x32xf32>, vector<32x32xf32>, vector<128x32xf32> -> vector<128x32xf32>
    %8 = vector.extract_strided_slice %5 {offsets = [0, 0], sizes = [128, 16], strides = [1, 1]} : vector<128x32xf32> to vector<128x16xf32>
    %9 = vector.shape_cast %8 : vector<128x16xf32> to vector<8x16x16xf32>
    %10 = vector.extract_strided_slice %3 {offsets = [0, 0], sizes = [128, 16], strides = [1, 1]} : vector<128x32xf32> to vector<128x16xf32>
    %11 = vector.shape_cast %10 : vector<128x16xf32> to vector<8x16x16xf32>
    %12 = vector.extract_strided_slice %7 {offsets = [0, 0], sizes = [128, 16], strides = [1, 1]} : vector<128x32xf32> to vector<128x16xf32>
    %13 = vector.shape_cast %12 : vector<128x16xf32> to vector<8x16x16xf32>
    "tpu.trace_start"() <{level = 10 : i32, message = "gqd,gkd->gqk"}> : () -> ()
    %cst_9 = arith.constant dense<0.000000e+00> : vector<8x16x16xf32>
    %14 = tpu.matmul %9, %11, %cst_9 {dimension_numbers = #tpu.dot_dimension_numbers<[2], [2], [1], [1], [0, 0, 0, 1, 1, 1], [0], [0]>} : vector<8x16x16xf32>, vector<8x16x16xf32>, vector<8x16x16xf32> -> vector<8x16x16xf32>
    "tpu.trace_stop"() : () -> ()
    %cst_10 = arith.constant dense<0xFF800000> : vector<8x16xf32>
    %15 = vector.multi_reduction <maximumf>, %14, %cst_10 [2] : vector<8x16x16xf32> to vector<8x16xf32>
    %16 = vector.shape_cast %15 : vector<8x16xf32> to vector<8x16x1xf32>
    %17 = vector.broadcast %16 : vector<8x16x1xf32> to vector<8x16x16xf32>
    %18 = arith.subf %14, %17 : vector<8x16x16xf32>
    %19 = math.exp %18 : vector<8x16x16xf32>
    %cst_11 = arith.constant dense<0.000000e+00> : vector<8x16xf32>
    %20 = vector.multi_reduction <add>, %19, %cst_11 [2] : vector<8x16x16xf32> to vector<8x16xf32>
    %21 = vector.shape_cast %20 : vector<8x16xf32> to vector<8x16x1xf32>
    %22 = tpu.reciprocal %21 {approx = true} : vector<8x16x1xf32> -> vector<8x16x1xf32>
    %23 = arith.mulf %21, %22 : vector<8x16x1xf32>
    %cst_12 = arith.constant 2.000000e+00 : f32
    %24 = vector.broadcast %cst_12 : f32 to vector<8x16x1xf32>
    %25 = arith.subf %24, %23 : vector<8x16x1xf32>
    %26 = arith.mulf %22, %25 : vector<8x16x1xf32>
    %27 = vector.broadcast %26 : vector<8x16x1xf32> to vector<8x16x16xf32>
    %28 = arith.mulf %19, %27 : vector<8x16x16xf32>
    %29 = vector.shape_cast %28 : vector<8x16x16xf32> to vector<8x1x16x16xf32>
    "tpu.trace_start"() <{level = 10 : i32, message = "gqk,gkd->gqd"}> : () -> ()
    %cst_13 = arith.constant dense<0.000000e+00> : vector<8x16x16xf32>
    %30 = tpu.matmul %28, %13, %cst_13 {dimension_numbers = #tpu.dot_dimension_numbers<[2], [1], [1], [2], [0, 0, 0, 1, 1, 2], [0], [0]>} : vector<8x16x16xf32>, vector<8x16x16xf32>, vector<8x16x16xf32> -> vector<8x16x16xf32>
    "tpu.trace_stop"() : () -> ()
    %31 = vector.shape_cast %30 : vector<8x16x16xf32> to vector<128x16xf32>
    %c0_14 = arith.constant 0 : index
    %c0_15 = arith.constant 0 : index
    %32 = vector.load %arg4[%c0_14, %c0_15] : memref<32x32xf32, #tpu.memory_space<vmem>>, vector<16x32xf32>
    %cst_16 = arith.constant dense<0.000000e+00> : vector<128x32xf32>
    %33 = tpu.matmul %31, %32, %cst_16 {dimension_numbers = #tpu.dot_dimension_numbers<[1], [0], [0], [1], [0, 0, 1, 1], [], []>} : vector<128x16xf32>, vector<16x32xf32>, vector<128x32xf32> -> vector<128x32xf32>
    %34 = arith.addf %1, %33 : vector<128x32xf32>
    %35 = vector.extract_strided_slice %5 {offsets = [0, 16], sizes = [128, 16], strides = [1, 1]} : vector<128x32xf32> to vector<128x16xf32>
    %36 = vector.shape_cast %35 : vector<128x16xf32> to vector<8x16x16xf32>
    %37 = vector.extract_strided_slice %3 {offsets = [0, 16], sizes = [128, 16], strides = [1, 1]} : vector<128x32xf32> to vector<128x16xf32>
    %38 = vector.shape_cast %37 : vector<128x16xf32> to vector<8x16x16xf32>
    %39 = vector.extract_strided_slice %7 {offsets = [0, 16], sizes = [128, 16], strides = [1, 1]} : vector<128x32xf32> to vector<128x16xf32>
    %40 = vector.shape_cast %39 : vector<128x16xf32> to vector<8x16x16xf32>
    "tpu.trace_start"() <{level = 10 : i32, message = "gqd,gkd->gqk"}> : () -> ()
    %cst_17 = arith.constant dense<0.000000e+00> : vector<8x16x16xf32>
    %41 = tpu.matmul %36, %38, %cst_17 {dimension_numbers = #tpu.dot_dimension_numbers<[2], [2], [1], [1], [0, 0, 0, 1, 1, 1], [0], [0]>} : vector<8x16x16xf32>, vector<8x16x16xf32>, vector<8x16x16xf32> -> vector<8x16x16xf32>
    "tpu.trace_stop"() : () -> ()
    %cst_18 = arith.constant dense<0xFF800000> : vector<8x16xf32>
    %42 = vector.multi_reduction <maximumf>, %41, %cst_18 [2] : vector<8x16x16xf32> to vector<8x16xf32>
    %43 = vector.shape_cast %42 : vector<8x16xf32> to vector<8x16x1xf32>
    %44 = vector.broadcast %43 : vector<8x16x1xf32> to vector<8x16x16xf32>
    %45 = arith.subf %41, %44 : vector<8x16x16xf32>
    %46 = math.exp %45 : vector<8x16x16xf32>
    %cst_19 = arith.constant dense<0.000000e+00> : vector<8x16xf32>
    %47 = vector.multi_reduction <add>, %46, %cst_19 [2] : vector<8x16x16xf32> to vector<8x16xf32>
    %48 = vector.shape_cast %47 : vector<8x16xf32> to vector<8x16x1xf32>
    %49 = tpu.reciprocal %48 {approx = true} : vector<8x16x1xf32> -> vector<8x16x1xf32>
    %50 = arith.mulf %48, %49 : vector<8x16x1xf32>
    %cst_20 = arith.constant 2.000000e+00 : f32
    %51 = vector.broadcast %cst_20 : f32 to vector<8x16x1xf32>
    %52 = arith.subf %51, %50 : vector<8x16x1xf32>
    %53 = arith.mulf %49, %52 : vector<8x16x1xf32>
    %54 = vector.broadcast %53 : vector<8x16x1xf32> to vector<8x16x16xf32>
    %55 = arith.mulf %46, %54 : vector<8x16x16xf32>
    %56 = vector.shape_cast %55 : vector<8x16x16xf32> to vector<8x1x16x16xf32>
    "tpu.trace_start"() <{level = 10 : i32, message = "gqk,gkd->gqd"}> : () -> ()
    %cst_21 = arith.constant dense<0.000000e+00> : vector<8x16x16xf32>
    %57 = tpu.matmul %55, %40, %cst_21 {dimension_numbers = #tpu.dot_dimension_numbers<[2], [1], [1], [2], [0, 0, 0, 1, 1, 2], [0], [0]>} : vector<8x16x16xf32>, vector<8x16x16xf32>, vector<8x16x16xf32> -> vector<8x16x16xf32>
    "tpu.trace_stop"() : () -> ()
    %58 = vector.shape_cast %57 : vector<8x16x16xf32> to vector<128x16xf32>
    %c16 = arith.constant 16 : index
    %c0_22 = arith.constant 0 : index
    %59 = vector.load %arg4[%c16, %c0_22] : memref<32x32xf32, #tpu.memory_space<vmem>>, vector<16x32xf32>
    %cst_23 = arith.constant dense<0.000000e+00> : vector<128x32xf32>
    %60 = tpu.matmul %58, %59, %cst_23 {dimension_numbers = #tpu.dot_dimension_numbers<[1], [0], [0], [1], [0, 0, 1, 1], [], []>} : vector<128x16xf32>, vector<16x32xf32>, vector<128x32xf32> -> vector<128x32xf32>
    %61 = arith.addf %34, %60 : vector<128x32xf32>
    %62 = tpu.concatenate %29, %56 in 1 : vector<8x1x16x16xf32>, vector<8x1x16x16xf32> -> vector<8x2x16x16xf32>
    %c0_24 = arith.constant 0 : index
    %c0_25 = arith.constant 0 : index
    %c0_26 = arith.constant 0 : index
    %c0_27 = arith.constant 0 : index
    %63 = vector.load %arg8[%c0_24, %c0_25, %c0_26, %c0_27] : memref<8x2x16x16xf32, #tpu.memory_space<vmem>>, vector<8x2x16x16xf32>
    tpu.vector_store %arg8[%c0_24, %c0_25, %c0_26, %c0_27], %62 {strides = array<i32>} : memref<8x2x16x16xf32, #tpu.memory_space<vmem>>, vector<8x2x16x16xf32>,
    %cst_28 = arith.constant dense<0.000000e+00> : vector<128xf32>
    %64 = vector.multi_reduction <add>, %61, %cst_28 [1] : vector<128x32xf32> to vector<128xf32>
    %65 = vector.shape_cast %64 : vector<128xf32> to vector<128x1xf32>
    %cst_29 = arith.constant 3.200000e+01 : f32
    %66 = vector.broadcast %cst_29 : f32 to vector<128x1xf32>
    %67 = arith.divf %65, %66 : vector<128x1xf32>
    %68 = vector.broadcast %67 : vector<128x1xf32> to vector<128x32xf32>
    %69 = arith.subf %61, %68 : vector<128x32xf32>
    %70 = arith.mulf %69, %69 : vector<128x32xf32>
    %cst_30 = arith.constant dense<0.000000e+00> : vector<128xf32>
    %71 = vector.multi_reduction <add>, %70, %cst_30 [1] : vector<128x32xf32> to vector<128xf32>
    %72 = vector.shape_cast %71 : vector<128xf32> to vector<128x1xf32>
    %cst_31 = arith.constant 3.200000e+01 : f32
    %73 = vector.broadcast %cst_31 : f32 to vector<128x1xf32>
    %74 = arith.divf %72, %73 : vector<128x1xf32>
    %cst_32 = arith.constant 9.99999997E-7 : f32
    %75 = vector.broadcast %cst_32 : f32 to vector<128x1xf32>
    %76 = arith.addf %74, %75 : vector<128x1xf32>
    %77 = math.rsqrt %76 : vector<128x1xf32>
    %78 = vector.broadcast %77 : vector<128x1xf32> to vector<128x32xf32>
    %79 = arith.mulf %69, %78 : vector<128x32xf32>
    %c0_33 = arith.constant 0 : index
    %c0_34 = arith.constant 0 : index
    %80 = vector.load %arg5[%c0_33, %c0_34] : memref<1x32xf32, #tpu.memory_space<vmem>>, vector<1x32xf32>
    %81 = vector.broadcast %80 : vector<1x32xf32> to vector<128x32xf32>
    %82 = arith.mulf %79, %81 : vector<128x32xf32>
    %c0_35 = arith.constant 0 : index
    %c0_36 = arith.constant 0 : index
    %83 = vector.load %arg6[%c0_35, %c0_36] : memref<1x32xf32, #tpu.memory_space<vmem>>, vector<1x32xf32>
    %84 = vector.broadcast %83 : vector<1x32xf32> to vector<128x32xf32>
    %85 = arith.addf %82, %84 : vector<128x32xf32>
    %c0_37 = arith.constant 0 : index
    %c0_38 = arith.constant 0 : index
    %86 = vector.load %arg7[%c0_37, %c0_38] : memref<128x32xf32, #tpu.memory_space<vmem>>, vector<128x32xf32>
    tpu.vector_store %arg7[%c0_37, %c0_38], %85 {strides = array<i32>} : memref<128x32xf32, #tpu.memory_space<vmem>>, vector<128x32xf32>,
    return
  }
  func.func @transform_0(%arg0: i32) -> (i32, i32, i32, i32) {
    %c0_i32 = arith.constant 0 : i32
    %c0_i32_0 = arith.constant 0 : i32
    %c0_i32_1 = arith.constant 0 : i32
    %c0_i32_2 = arith.constant 0 : i32
    %c0_i32_3 = arith.constant 0 : i32
    return %c0_i32, %c0_i32_0, %c0_i32_1, %c0_i32_2 : i32, i32, i32, i32
  }
  func.func @transform_1(%arg0: i32) -> (i32, i32) {
    %c0_i32 = arith.constant 0 : i32
    %c0_i32_0 = arith.constant 0 : i32
    %c0_i32_1 = arith.constant 0 : i32
    return %c0_i32, %c0_i32_0 : i32, i32
  }
  func.func @transform_2(%arg0: i32) -> (i32, i32) {
    %c0_i32 = arith.constant 0 : i32
    %c0_i32_0 = arith.constant 0 : i32
    %c0_i32_1 = arith.constant 0 : i32
    return %c0_i32, %c0_i32_0 : i32, i32
  }
  func.func @transform_3(%arg0: i32) -> (i32, i32) {
    %c0_i32 = arith.constant 0 : i32
    %c0_i32_0 = arith.constant 0 : i32
    %c0_i32_1 = arith.constant 0 : i32
    return %c0_i32, %c0_i32_0 : i32, i32
  }
  func.func @transform_4(%arg0: i32) -> (i32, i32) {
    %c0_i32 = arith.constant 0 : i32
    %c0_i32_0 = arith.constant 0 : i32
    %c0_i32_1 = arith.constant 0 : i32
    return %c0_i32, %c0_i32_0 : i32, i32
  }
  func.func @transform_5(%arg0: i32) -> (i32, i32) {
    %c0_i32 = arith.constant 0 : i32
    %c0_i32_0 = arith.constant 0 : i32
    %c0_i32_1 = arith.constant 0 : i32
    return %c0_i32, %c0_i32_0 : i32, i32
  }
  func.func @transform_6(%arg0: i32) -> (i32, i32) {
    %c0_i32 = arith.constant 0 : i32
    %c0_i32_0 = arith.constant 0 : i32
    %c0_i32_1 = arith.constant 0 : i32
    return %c0_i32, %c0_i32_0 : i32, i32
  }
  func.func @transform_7(%arg0: i32) -> (i32, i32, i32, i32) {
    %c0_i32 = arith.constant 0 : i32
    %c0_i32_0 = arith.constant 0 : i32
    %c0_i32_1 = arith.constant 0 : i32
    %c0_i32_2 = arith.constant 0 : i32
    %c0_i32_3 = arith.constant 0 : i32
    return %c0_i32, %c0_i32_0, %c0_i32_1, %c0_i32_2 : i32, i32, i32, i32
  }
}

</mosaic_0001>

<llo_original>
// kernel: tpu_custom_call.1
$region0: #{tpu_custom_call.1}
  #allocation0 [shape = 'u32[]', space=smem, size = 0x4, offset = 0x4, fixed_abs, tag = 'smem constant byte address 0x4 - core index']
  #allocation1 [shape = 'u32[144,128]{1,0:T(1,128)}', space=vmem, size = 0x12000, scoped, tag = 'internal scratch']
  %s0 = inlined_call_operand.hbm [shape: f32[2,4,16,32], index: 0, kind: input, shape index: {}]
  %s1 = inlined_call_operand.hbm [shape: f32[32,32], index: 1, kind: input, shape index: {}]
  %s2 = inlined_call_operand.hbm [shape: f32[32,32], index: 2, kind: input, shape index: {}]
  %s3 = inlined_call_operand.hbm [shape: f32[32,32], index: 3, kind: input, shape index: {}]
  %s4 = inlined_call_operand.vmem [shape: f32[1,32], index: 4, kind: input, shape index: {}]
  %s5 = inlined_call_operand.vmem [shape: f32[1,32], index: 5, kind: input, shape index: {}]
  %s6 = inlined_call_operand.vmem [shape: f32[128,32], index: 6, kind: output, shape index: {0}]
  %s7 = inlined_call_operand.hbm [shape: f32[8,2,16,16], index: 7, kind: output, shape index: {1}]
  %8 = xla_tuple %s6, %s7
  %s9 = sld [smem:[#allocation0]]
  $region58: #{tpu_custom_call.1} parent=0
    _
  %s11 = ssub.s32 1, %s9
  %s12 = scalar_select 0, %s11, %s9
  $region1: #{tpu_custom_call.1} parent=0
    #allocation2 [shape = 'u8[65536]{0}', space=vmem, size = 0x10000, scoped, tag = 'input window, operand 0, single buffered']
    #allocation3 [shape = 's32[1]{0}', space=sflag, size = 0x4, scoped, tag = 'scoped memory for tpu_custom_call.1']
    #allocation4 [shape = 's32[1]{0}', space=sflag, size = 0x4, scoped, tag = 'scoped memory for tpu_custom_call.1']
    #allocation5 [shape = 'u8[16384]{0}', space=vmem, size = 0x4000, scoped, tag = 'input window, operand 1, single buffered']
    #allocation6 [shape = 's32[1]{0}', space=sflag, size = 0x4, scoped, tag = 'scoped memory for tpu_custom_call.1']
    #allocation7 [shape = 'u8[16384]{0}', space=vmem, size = 0x4000, scoped, tag = 'input window, operand 2, single buffered']
    #allocation8 [shape = 'u8[16384]{0}', space=vmem, size = 0x4000, scoped, tag = 'input window, operand 3, single buffered']
    #allocation9 [shape = 's32[1]{0}', space=sflag, size = 0x4, scoped, tag = 'scoped memory for tpu_custom_call.1']
    #allocation10 [shape = 'u8[131072]{0}', space=vmem, size = 0x20000, scoped, tag = 'output window, operand 1, single buffered']
    %13 = vsyncpa [#allocation3], 0
    %14 = vsyncpa [#allocation6], 0
    %15 = vsyncpa [#allocation9], 0
    %16 = vsyncpa [#allocation4], 0
    // Predicated region
    $region2: #{tpu_custom_call.1} parent=1 // pred_check
      _
    $region3: #{tpu_custom_call.1} parent=1 // pred_check_branch
      %18 = sbr.rel (0) target = $region5
    $region4: #{tpu_custom_call.1} parent=1 // pred_region
      %s20 = ssub.s32 2048, 2048
      %21 = vsyncadd [#allocation3], %s20
      %s22 = sshll.u32 [#allocation2], 4
      %s23 = int_to_ptr.vmem [resolvable:$true] %s22
      %28 = dma.hbm_to_vmem [thread:$0]  %s0, 2048, %s23, [#allocation3], 128, 128, 8
    $region5: #{tpu_custom_call.1} parent=1 // pred_fallthru
      _
    // Predicated region
    $region6: #{tpu_custom_call.1} parent=1 // pred_check
      _
    $region7: #{tpu_custom_call.1} parent=1 // pred_check_branch
      %30 = sbr.rel (0) target = $region9
    $region8: #{tpu_custom_call.1} parent=1 // pred_region
      %s32 = ssub.s32 512, 512
      %33 = vsyncadd [#allocation6], %s32
      %s34 = sshll.u32 [#allocation5], 4
      %s35 = int_to_ptr.vmem [resolvable:$true] %s34
      %40 = dma.hbm_to_vmem [thread:$0]  %s1, 512, %s35, [#allocation6], 128, 128, 8
    $region9: #{tpu_custom_call.1} parent=1 // pred_fallthru
      _
    // Predicated region
    $region10: #{tpu_custom_call.1} parent=1 // pred_check
      _
    $region11: #{tpu_custom_call.1} parent=1 // pred_check_branch
      %42 = sbr.rel (0) target = $region13
    $region12: #{tpu_custom_call.1} parent=1 // pred_region
      %s44 = ssub.s32 512, 512
      %45 = vsyncadd [#allocation6], %s44
      %s46 = sshll.u32 [#allocation7], 4
      %s47 = int_to_ptr.vmem [resolvable:$true] %s46
      %52 = dma.hbm_to_vmem [thread:$0]  %s2, 512, %s47, [#allocation6], 128, 128, 8
    $region13: #{tpu_custom_call.1} parent=1 // pred_fallthru
      _
    // Predicated region
    $region14: #{tpu_custom_call.1} parent=1 // pred_check
      _
    $region15: #{tpu_custom_call.1} parent=1 // pred_check_branch
      %54 = sbr.rel (0) target = $region17
    $region16: #{tpu_custom_call.1} parent=1 // pred_region
      %s56 = ssub.s32 512, 512
      %57 = vsyncadd [#allocation9], %s56
      %s58 = sshll.u32 [#allocation8], 4
      %s59 = int_to_ptr.vmem [resolvable:$true] %s58
      %64 = dma.hbm_to_vmem [thread:$0]  %s3, 512, %s59, [#allocation9], 128, 128, 8
    $region17: #{tpu_custom_call.1} parent=1 // pred_fallthru
      _
    // Predicated region
    $region18: #{tpu_custom_call.1} parent=1 // pred_check
      _
    $region19: #{tpu_custom_call.1} parent=1 // pred_check_branch
      %66 = sbr.rel (0) target = $region21
    $region20: #{tpu_custom_call.1} parent=1 // pred_region
      _
    $region21: #{tpu_custom_call.1} parent=1 // pred_fallthru
      _
    // Predicated region
    $region22: #{tpu_custom_call.1} parent=1 // pred_check
      _
    $region23: #{tpu_custom_call.1} parent=1 // pred_check_branch
      %68 = sbr.rel (0) target = $region25
    $region24: #{tpu_custom_call.1} parent=1 // pred_region
      _
    $region25: #{tpu_custom_call.1} parent=1 // pred_fallthru
      _
    // Predicated region
    $region26: #{tpu_custom_call.1} parent=1 // pred_check
      _
    $region27: #{tpu_custom_call.1} parent=1 // pred_check_branch
      %70 = sbr.rel (0) target = $region29
    $region28: #{tpu_custom_call.1} parent=1 // pred_region
      %71 = dma.done [#allocation3], 2048
    $region29: #{tpu_custom_call.1} parent=1 // pred_fallthru
      _
    // Predicated region
    $region30: #{tpu_custom_call.1} parent=1 // pred_check
      _
    $region31: #{tpu_custom_call.1} parent=1 // pred_check_branch
      %73 = sbr.rel (0) target = $region33
    $region32: #{tpu_custom_call.1} parent=1 // pred_region
      %74 = dma.done [#allocation6], 512
    $region33: #{tpu_custom_call.1} parent=1 // pred_fallthru
      _
    // Predicated region
    $region34: #{tpu_custom_call.1} parent=1 // pred_check
      _
    $region35: #{tpu_custom_call.1} parent=1 // pred_check_branch
      %76 = sbr.rel (0) target = $region37
    $region36: #{tpu_custom_call.1} parent=1 // pred_region
      %77 = dma.done [#allocation6], 512
    $region37: #{tpu_custom_call.1} parent=1 // pred_fallthru
      _
    // Predicated region
    $region38: #{tpu_custom_call.1} parent=1 // pred_check
      _
    $region39: #{tpu_custom_call.1} parent=1 // pred_check_branch
      %79 = sbr.rel (0) target = $region41
    $region40: #{tpu_custom_call.1} parent=1 // pred_region
      %80 = dma.done [#allocation9], 512
    $region41: #{tpu_custom_call.1} parent=1 // pred_fallthru
      _
    %v81 = vld [vmem:[#allocation2] sm:$0xff]
    %v82 = vld [vmem:[#allocation2 + $0x8] sm:$0xff]
    %v83 = vld [vmem:[#allocation2 + $0x10] sm:$0xff]
    %v84 = vld [vmem:[#allocation2 + $0x18] sm:$0xff]
    %v85 = vld [vmem:[#allocation2 + $0x20] sm:$0xff]
    %v86 = vld [vmem:[#allocation2 + $0x28] sm:$0xff]
    %v87 = vld [vmem:[#allocation2 + $0x30] sm:$0xff]
    %v88 = vld [vmem:[#allocation2 + $0x38] sm:$0xff]
    %v89 = vld [vmem:[#allocation2 + $0x40] sm:$0xff]
    %v90 = vld [vmem:[#allocation2 + $0x48] sm:$0xff]
    %v91 = vld [vmem:[#allocation2 + $0x50] sm:$0xff]
    %v92 = vld [vmem:[#allocation2 + $0x58] sm:$0xff]
    %v93 = vld [vmem:[#allocation2 + $0x60] sm:$0xff]
    %v94 = vld [vmem:[#allocation2 + $0x68] sm:$0xff]
    %v95 = vld [vmem:[#allocation2 + $0x70] sm:$0xff]
    %v96 = vld [vmem:[#allocation2 + $0x78] sm:$0xff]
    %v97 = vld [vmem:[#allocation5] sm:$0xff]
    %v98 = vld [vmem:[#allocation5 + $0x8] sm:$0xff]
    %v99 = vld [vmem:[#allocation5 + $0x10] sm:$0xff]
    %v100 = vld [vmem:[#allocation5 + $0x18] sm:$0xff]
    %vm101 = vcmask 261120
    %v103 = vsel %vm101, %v81, 0
    %v106 = vsel %vm101, %v82, 0
    %v109 = vsel %vm101, %v83, 0
    %v112 = vsel %vm101, %v84, 0
    %v115 = vsel %vm101, %v85, 0
    %v118 = vsel %vm101, %v86, 0
    %v121 = vsel %vm101, %v87, 0
    %v124 = vsel %vm101, %v88, 0
    %v127 = vsel %vm101, %v89, 0
    %v130 = vsel %vm101, %v90, 0
    %v133 = vsel %vm101, %v91, 0
    %v136 = vsel %vm101, %v92, 0
    %v139 = vsel %vm101, %v93, 0
    %v142 = vsel %vm101, %v94, 0
    %v145 = vsel %vm101, %v95, 0
    %v148 = vsel %vm101, %v96, 0
    %150 = vmatprep.subr.mxu0 0.0
    %151 = vmatpush1.msra.mxu0 %v97
    %152 = vmatprep.subr.mxu0 0.0
    %153 = vmatpush1.msra.mxu0 %v98
    %154 = vmatprep.subr.mxu0 0.0
    %155 = vmatpush1.msra.mxu0 %v99
    %156 = vmatprep.subr.mxu0 0.0
    %157 = vmatpush1.msra.mxu0 %v100
    %158 = vmatprep.subr.mxu0 0.0
    %159 = vmatpush1.msra.mxu0 0.0
    %160 = vmatprep.subr.mxu0 0.0
    %161 = vmatpush1.msra.mxu0 0.0
    %162 = vmatprep.subr.mxu0 0.0
    %163 = vmatpush1.msra.mxu0 0.0
    %164 = vmatprep.subr.mxu0 0.0
    %165 = vmatpush1.msra.mxu0 0.0
    %166 = vmatprep.subr.mxu0 0.0
    %167 = vmatpush1.msra.mxu0 0.0
    %168 = vmatprep.subr.mxu0 0.0
    %169 = vmatpush1.msra.mxu0 0.0
    %170 = vmatprep.subr.mxu0 0.0
    %171 = vmatpush1.msra.mxu0 0.0
    %172 = vmatprep.subr.mxu0 0.0
    %173 = vmatpush1.msra.mxu0 0.0
    %174 = vmatprep.subr.mxu0 0.0
    %175 = vmatpush1.msra.mxu0 0.0
    %176 = vmatprep.subr.mxu0 0.0
    %177 = vmatpush1.msra.mxu0 0.0
    %178 = vmatprep.subr.mxu0 0.0
    %179 = vmatpush1.msra.mxu0 0.0
    %180 = vmatprep.subr.mxu0 0.0
    %181 = vmatpush1.msra.mxu0 0.0
    %182 = vmatprep.subr.mxu0 0.0
    %183 = vmatpush1.msra.mxu0 0.0
    %184 = vmatprep.subr.mxu0 0.0
    %185 = vmatpush1.msra.mxu0 0.0
    %186 = vmatprep.subr.mxu0 0.0
    %187 = vmatpush1.msra.mxu0 0.0
    %188 = vmatprep.subr.mxu0 0.0
    %189 = vmatpush1.msra.mxu0 0.0
    %190 = vmatprep.subr.mxu0 0.0
    %191 = vmatpush1.msra.mxu0 0.0
    %192 = vmatprep.subr.mxu0 0.0
    %193 = vmatpush1.msra.mxu0 0.0
    %194 = vmatprep.subr.mxu0 0.0
    %195 = vmatpush1.msra.mxu0 0.0
    %196 = vmatprep.subr.mxu0 0.0
    %197 = vmatpush1.msra.mxu0 0.0
    %198 = vmatprep.subr.mxu0 0.0
    %199 = vmatpush1.msra.mxu0 0.0
    %200 = vmatprep.subr.mxu0 0.0
    %201 = vmatpush1.msra.mxu0 0.0
    %202 = vmatprep.subr.mxu0 0.0
    %203 = vmatpush1.msra.mxu0 0.0
    %204 = vmatprep.subr.mxu0 0.0
    %205 = vmatpush1.msra.mxu0 0.0
    %206 = vmatprep.subr.mxu0 0.0
    %207 = vmatpush1.msra.mxu0 0.0
    %208 = vmatprep.subr.mxu0 0.0
    %209 = vmatpush1.msra.mxu0 0.0
    %210 = vmatprep.subr.mxu0 0.0
    %211 = vmatpush1.msra.mxu0 0.0
    %212 = vmatprep.subr.mxu0 0.0
    %213 = vmatpush1.msra.mxu0 0.0
    %214 = vmatprep.mubr.f32.mxu0 0.0
    %215 = vmatmul.mubr.f32.gmra.mrb[0].mxu0 %v103
    %v216 = vpop.f32.mrb[0].mxu0
    %v217 = vadd.f32 0.0, %v216
    %v218 = vpop.f32.mrb[0].mxu0
    %219 = vmatprep.mubr.f32.mxu0 0.0
    %220 = vmatmul.mubr.f32.gmra.mrb[0].mxu0 %v106
    %v221 = vpop.f32.mrb[0].mxu0
    %v222 = vadd.f32 0.0, %v221
    %v223 = vpop.f32.mrb[0].mxu0
    %224 = vmatprep.mubr.f32.mxu0 0.0
    %225 = vmatmul.mubr.f32.gmra.mrb[0].mxu0 %v109
    %v226 = vpop.f32.mrb[0].mxu0
    %v227 = vadd.f32 0.0, %v226
    %v228 = vpop.f32.mrb[0].mxu0
    %229 = vmatprep.mubr.f32.mxu0 0.0
    %230 = vmatmul.mubr.f32.gmra.mrb[0].mxu0 %v112
    %v231 = vpop.f32.mrb[0].mxu0
    %v232 = vadd.f32 0.0, %v231
    %v233 = vpop.f32.mrb[0].mxu0
    %234 = vmatprep.mubr.f32.mxu0 0.0
    %235 = vmatmul.mubr.f32.gmra.mrb[0].mxu0 %v115
    %v236 = vpop.f32.mrb[0].mxu0
    %v237 = vadd.f32 0.0, %v236
    %v238 = vpop.f32.mrb[0].mxu0
    %239 = vmatprep.mubr.f32.mxu0 0.0
    %240 = vmatmul.mubr.f32.gmra.mrb[0].mxu0 %v118
    %v241 = vpop.f32.mrb[0].mxu0
    %v242 = vadd.f32 0.0, %v241
    %v243 = vpop.f32.mrb[0].mxu0
    %244 = vmatprep.mubr.f32.mxu0 0.0
    %245 = vmatmul.mubr.f32.gmra.mrb[0].mxu0 %v121
    %v246 = vpop.f32.mrb[0].mxu0
    %v247 = vadd.f32 0.0, %v246
    %v248 = vpop.f32.mrb[0].mxu0
    %249 = vmatprep.mubr.f32.mxu0 0.0
    %250 = vmatmul.mubr.f32.gmra.mrb[0].mxu0 %v124
    %v251 = vpop.f32.mrb[0].mxu0
    %v252 = vadd.f32 0.0, %v251
    %v253 = vpop.f32.mrb[0].mxu0
    %254 = vmatprep.mubr.f32.mxu0 0.0
    %255 = vmatmul.mubr.f32.gmra.mrb[0].mxu0 %v127
    %v256 = vpop.f32.mrb[0].mxu0
    %v257 = vadd.f32 0.0, %v256
    %v258 = vpop.f32.mrb[0].mxu0
    %259 = vmatprep.mubr.f32.mxu0 0.0
    %260 = vmatmul.mubr.f32.gmra.mrb[0].mxu0 %v130
    %v261 = vpop.f32.mrb[0].mxu0
    %v262 = vadd.f32 0.0, %v261
    %v263 = vpop.f32.mrb[0].mxu0
    %264 = vmatprep.mubr.f32.mxu0 0.0
    %265 = vmatmul.mubr.f32.gmra.mrb[0].mxu0 %v133
    %v266 = vpop.f32.mrb[0].mxu0
    %v267 = vadd.f32 0.0, %v266
    %v268 = vpop.f32.mrb[0].mxu0
    %269 = vmatprep.mubr.f32.mxu0 0.0
    %270 = vmatmul.mubr.f32.gmra.mrb[0].mxu0 %v136
    %v271 = vpop.f32.mrb[0].mxu0
    %v272 = vadd.f32 0.0, %v271
    %v273 = vpop.f32.mrb[0].mxu0
    %274 = vmatprep.mubr.f32.mxu0 0.0
    %275 = vmatmul.mubr.f32.gmra.mrb[0].mxu0 %v139
    %v276 = vpop.f32.mrb[0].mxu0
    %v277 = vadd.f32 0.0, %v276
    %v278 = vpop.f32.mrb[0].mxu0
    %279 = vmatprep.mubr.f32.mxu0 0.0
    %280 = vmatmul.mubr.f32.gmra.mrb[0].mxu0 %v142
    %v281 = vpop.f32.mrb[0].mxu0
    %v282 = vadd.f32 0.0, %v281
    %v283 = vpop.f32.mrb[0].mxu0
    %284 = vmatprep.mubr.f32.mxu0 0.0
    %285 = vmatmul.mubr.f32.gmra.mrb[0].mxu0 %v145
    %v286 = vpop.f32.mrb[0].mxu0
    %v287 = vadd.f32 0.0, %v286
    %v288 = vpop.f32.mrb[0].mxu0
    %289 = vmatprep.mubr.f32.mxu0 0.0
    %290 = vmatmul.mubr.f32.gmra.mrb[0].mxu0 %v148
    %v291 = vpop.f32.mrb[0].mxu0
    %v292 = vadd.f32 0.0, %v291
    %v293 = vpop.f32.mrb[0].mxu0
    %294 = vdwg.mxu0
    %v295 = vmul.f32 %v217, 0.25
    %v296 = vmul.f32 %v222, 0.25
    %v297 = vmul.f32 %v227, 0.25
    %v298 = vmul.f32 %v232, 0.25
    %v299 = vmul.f32 %v237, 0.25
    %v300 = vmul.f32 %v242, 0.25
    %v301 = vmul.f32 %v247, 0.25
    %v302 = vmul.f32 %v252, 0.25
    %v303 = vmul.f32 %v257, 0.25
    %v304 = vmul.f32 %v262, 0.25
    %v305 = vmul.f32 %v267, 0.25
    %v306 = vmul.f32 %v272, 0.25
    %v307 = vmul.f32 %v277, 0.25
    %v308 = vmul.f32 %v282, 0.25
    %v309 = vmul.f32 %v287, 0.25
    %v310 = vmul.f32 %v292, 0.25
    %v311 = vld [vmem:[#allocation7] sm:$0xff]
    %v312 = vld [vmem:[#allocation7 + $0x8] sm:$0xff]
    %v313 = vld [vmem:[#allocation7 + $0x10] sm:$0xff]
    %v314 = vld [vmem:[#allocation7 + $0x18] sm:$0xff]
    %315 = vmatprep.subr.mxu0 0.0
    %316 = vmatpush1.msra.mxu0 %v311
    %317 = vmatprep.subr.mxu0 0.0
    %318 = vmatpush1.msra.mxu0 %v312
    %319 = vmatprep.subr.mxu0 0.0
    %320 = vmatpush1.msra.mxu0 %v313
    %321 = vmatprep.subr.mxu0 0.0
    %322 = vmatpush1.msra.mxu0 %v314
    %323 = vmatprep.subr.mxu0 0.0
    %324 = vmatpush1.msra.mxu0 0.0
    %325 = vmatprep.subr.mxu0 0.0
    %326 = vmatpush1.msra.mxu0 0.0
    %327 = vmatprep.subr.mxu0 0.0
    %328 = vmatpush1.msra.mxu0 0.0
    %329 = vmatprep.subr.mxu0 0.0
    %330 = vmatpush1.msra.mxu0 0.0
    %331 = vmatprep.subr.mxu0 0.0
    %332 = vmatpush1.msra.mxu0 0.0
    %333 = vmatprep.subr.mxu0 0.0
    %334 = vmatpush1.msra.mxu0 0.0
    %335 = vmatprep.subr.mxu0 0.0
    %336 = vmatpush1.msra.mxu0 0.0
    %337 = vmatprep.subr.mxu0 0.0
    %338 = vmatpush1.msra.mxu0 0.0
    %339 = vmatprep.subr.mxu0 0.0
    %340 = vmatpush1.msra.mxu0 0.0
    %341 = vmatprep.subr.mxu0 0.0
    %342 = vmatpush1.msra.mxu0 0.0
    %343 = vmatprep.subr.mxu0 0.0
    %344 = vmatpush1.msra.mxu0 0.0
    %345 = vmatprep.subr.mxu0 0.0
    %346 = vmatpush1.msra.mxu0 0.0
    %347 = vmatprep.subr.mxu0 0.0
    %348 = vmatpush1.msra.mxu0 0.0
    %349 = vmatprep.subr.mxu0 0.0
    %350 = vmatpush1.msra.mxu0 0.0
    %351 = vmatprep.subr.mxu0 0.0
    %352 = vmatpush1.msra.mxu0 0.0
    %353 = vmatprep.subr.mxu0 0.0
    %354 = vmatpush1.msra.mxu0 0.0
    %355 = vmatprep.subr.mxu0 0.0
    %356 = vmatpush1.msra.mxu0 0.0
    %357 = vmatprep.subr.mxu0 0.0
    %358 = vmatpush1.msra.mxu0 0.0
    %359 = vmatprep.subr.mxu0 0.0
    %360 = vmatpush1.msra.mxu0 0.0
    %361 = vmatprep.subr.mxu0 0.0
    %362 = vmatpush1.msra.mxu0 0.0
    %363 = vmatprep.subr.mxu0 0.0
    %364 = vmatpush1.msra.mxu0 0.0
    %365 = vmatprep.subr.mxu0 0.0
    %366 = vmatpush1.msra.mxu0 0.0
    %367 = vmatprep.subr.mxu0 0.0
    %368 = vmatpush1.msra.mxu0 0.0
    %369 = vmatprep.subr.mxu0 0.0
    %370 = vmatpush1.msra.mxu0 0.0
    %371 = vmatprep.subr.mxu0 0.0
    %372 = vmatpush1.msra.mxu0 0.0
    %373 = vmatprep.subr.mxu0 0.0
    %374 = vmatpush1.msra.mxu0 0.0
    %375 = vmatprep.subr.mxu0 0.0
    %376 = vmatpush1.msra.mxu0 0.0
    %377 = vmatprep.subr.mxu0 0.0
    %378 = vmatpush1.msra.mxu0 0.0
    %379 = vmatprep.mubr.f32.mxu0 0.0
    %380 = vmatmul.mubr.f32.gmra.mrb[0].mxu0 %v103
    %v381 = vpop.f32.mrb[0].mxu0
    %v382 = vadd.f32 0.0, %v381
    %v383 = vpop.f32.mrb[0].mxu0
    %384 = vmatprep.mubr.f32.mxu0 0.0
    %385 = vmatmul.mubr.f32.gmra.mrb[0].mxu0 %v106
    %v386 = vpop.f32.mrb[0].mxu0
    %v387 = vadd.f32 0.0, %v386
    %v388 = vpop.f32.mrb[0].mxu0
    %389 = vmatprep.mubr.f32.mxu0 0.0
    %390 = vmatmul.mubr.f32.gmra.mrb[0].mxu0 %v109
    %v391 = vpop.f32.mrb[0].mxu0
    %v392 = vadd.f32 0.0, %v391
    %v393 = vpop.f32.mrb[0].mxu0
    %394 = vmatprep.mubr.f32.mxu0 0.0
    %395 = vmatmul.mubr.f32.gmra.mrb[0].mxu0 %v112
    %v396 = vpop.f32.mrb[0].mxu0
    %v397 = vadd.f32 0.0, %v396
    %v398 = vpop.f32.mrb[0].mxu0
    %399 = vmatprep.mubr.f32.mxu0 0.0
    %400 = vmatmul.mubr.f32.gmra.mrb[0].mxu0 %v115
    %v401 = vpop.f32.mrb[0].mxu0
    %v402 = vadd.f32 0.0, %v401
    %v403 = vpop.f32.mrb[0].mxu0
    %404 = vmatprep.mubr.f32.mxu0 0.0
    %405 = vmatmul.mubr.f32.gmra.mrb[0].mxu0 %v118
    %v406 = vpop.f32.mrb[0].mxu0
    %v407 = vadd.f32 0.0, %v406
    %v408 = vpop.f32.mrb[0].mxu0
    %409 = vmatprep.mubr.f32.mxu0 0.0
    %410 = vmatmul.mubr.f32.gmra.mrb[0].mxu0 %v121
    %v411 = vpop.f32.mrb[0].mxu0
    %v412 = vadd.f32 0.0, %v411
    %v413 = vpop.f32.mrb[0].mxu0
    %414 = vmatprep.mubr.f32.mxu0 0.0
    %415 = vmatmul.mubr.f32.gmra.mrb[0].mxu0 %v124
    %v416 = vpop.f32.mrb[0].mxu0
    %v417 = vadd.f32 0.0, %v416
    %v418 = vpop.f32.mrb[0].mxu0
    %419 = vmatprep.mubr.f32.mxu0 0.0
    %420 = vmatmul.mubr.f32.gmra.mrb[0].mxu0 %v127
    %v421 = vpop.f32.mrb[0].mxu0
    %v422 = vadd.f32 0.0, %v421
    %v423 = vpop.f32.mrb[0].mxu0
    %424 = vmatprep.mubr.f32.mxu0 0.0
    %425 = vmatmul.mubr.f32.gmra.mrb[0].mxu0 %v130
    %v426 = vpop.f32.mrb[0].mxu0
    %v427 = vadd.f32 0.0, %v426
    %v428 = vpop.f32.mrb[0].mxu0
    %429 = vmatprep.mubr.f32.mxu0 0.0
    %430 = vmatmul.mubr.f32.gmra.mrb[0].mxu0 %v133
    %v431 = vpop.f32.mrb[0].mxu0
    %v432 = vadd.f32 0.0, %v431
    %v433 = vpop.f32.mrb[0].mxu0
    %434 = vmatprep.mubr.f32.mxu0 0.0
    %435 = vmatmul.mubr.f32.gmra.mrb[0].mxu0 %v136
    %v436 = vpop.f32.mrb[0].mxu0
    %v437 = vadd.f32 0.0, %v436
    %v438 = vpop.f32.mrb[0].mxu0
    %439 = vmatprep.mubr.f32.mxu0 0.0
    %440 = vmatmul.mubr.f32.gmra.mrb[0].mxu0 %v139
    %v441 = vpop.f32.mrb[0].mxu0
    %v442 = vadd.f32 0.0, %v441
    %v443 = vpop.f32.mrb[0].mxu0
    %444 = vmatprep.mubr.f32.mxu0 0.0
    %445 = vmatmul.mubr.f32.gmra.mrb[0].mxu0 %v142
    %v446 = vpop.f32.mrb[0].mxu0
    %v447 = vadd.f32 0.0, %v446
    %v448 = vpop.f32.mrb[0].mxu0
    %449 = vmatprep.mubr.f32.mxu0 0.0
    %450 = vmatmul.mubr.f32.gmra.mrb[0].mxu0 %v145
    %v451 = vpop.f32.mrb[0].mxu0
    %v452 = vadd.f32 0.0, %v451
    %v453 = vpop.f32.mrb[0].mxu0
    %454 = vmatprep.mubr.f32.mxu0 0.0
    %455 = vmatmul.mubr.f32.gmra.mrb[0].mxu0 %v148
    %v456 = vpop.f32.mrb[0].mxu0
    %v457 = vadd.f32 0.0, %v456
    %v458 = vpop.f32.mrb[0].mxu0
    %459 = vdwg.mxu0
    %vm460 = vcmask 130048
    %v462 = vsel %vm460, %v295, 0
    %v465 = vsel %vm460, %v296, 0
    %v468 = vsel %vm460, %v217, 0
    %v471 = vsel %vm460, %v222, 0
    %473 = vmatprep.subr.mxu0 0.0
    %474 = vmatpush1.xpose.msra.mxu0 %v468
    %475 = vmatprep.subr.mxu0 0.0
    %476 = vmatpush1.xpose.msra.mxu0 %v471
    %477 = vmatprep.subr.mxu0 0.0
    %478 = vmatpush1.xpose.msra.mxu0 0.0
    %479 = vmatprep.subr.mxu0 0.0
    %480 = vmatpush1.xpose.msra.mxu0 0.0
    %481 = vmatprep.subr.mxu0 0.0
    %482 = vmatpush1.xpose.msra.mxu0 0.0
    %483 = vmatprep.subr.mxu0 0.0
    %484 = vmatpush1.xpose.msra.mxu0 0.0
    %485 = vmatprep.subr.mxu0 0.0
    %486 = vmatpush1.xpose.msra.mxu0 0.0
    %487 = vmatprep.subr.mxu0 0.0
    %488 = vmatpush1.xpose.msra.mxu0 0.0
    %489 = vmatprep.subr.mxu0 0.0
    %490 = vmatpush1.xpose.msra.mxu0 0.0
    %491 = vmatprep.subr.mxu0 0.0
    %492 = vmatpush1.xpose.msra.mxu0 0.0
    %493 = vmatprep.subr.mxu0 0.0
    %494 = vmatpush1.xpose.msra.mxu0 0.0
    %495 = vmatprep.subr.mxu0 0.0
    %496 = vmatpush1.xpose.msra.mxu0 0.0
    %497 = vmatprep.subr.mxu0 0.0
    %498 = vmatpush1.xpose.msra.mxu0 0.0
    %499 = vmatprep.subr.mxu0 0.0
    %500 = vmatpush1.xpose.msra.mxu0 0.0
    %501 = vmatprep.subr.mxu0 0.0
    %502 = vmatpush1.xpose.msra.mxu0 0.0
    %503 = vmatprep.subr.mxu0 0.0
    %504 = vmatpush1.xpose.msra.mxu0 0.0
    %505 = vmatprep.subr.mxu0 0.0
    %506 = vmatpush1.xpose.msra.mxu0 0.0
    %507 = vmatprep.subr.mxu0 0.0
    %508 = vmatpush1.xpose.msra.mxu0 0.0
    %509 = vmatprep.subr.mxu0 0.0
    %510 = vmatpush1.xpose.msra.mxu0 0.0
    %511 = vmatprep.subr.mxu0 0.0
    %512 = vmatpush1.xpose.msra.mxu0 0.0
    %513 = vmatprep.subr.mxu0 0.0
    %514 = vmatpush1.xpose.msra.mxu0 0.0
    %515 = vmatprep.subr.mxu0 0.0
    %516 = vmatpush1.xpose.msra.mxu0 0.0
    %517 = vmatprep.subr.mxu0 0.0
    %518 = vmatpush1.xpose.msra.mxu0 0.0
    %519 = vmatprep.subr.mxu0 0.0
    %520 = vmatpush1.xpose.msra.mxu0 0.0
    %521 = vmatprep.subr.mxu0 0.0
    %522 = vmatpush1.xpose.msra.mxu0 0.0
    %523 = vmatprep.subr.mxu0 0.0
    %524 = vmatpush1.xpose.msra.mxu0 0.0
    %525 = vmatprep.subr.mxu0 0.0
    %526 = vmatpush1.xpose.msra.mxu0 0.0
    %527 = vmatprep.subr.mxu0 0.0
    %528 = vmatpush1.xpose.msra.mxu0 0.0
    %529 = vmatprep.subr.mxu0 0.0
    %530 = vmatpush1.xpose.msra.mxu0 0.0
    %531 = vmatprep.subr.mxu0 0.0
    %532 = vmatpush1.xpose.msra.mxu0 0.0
    %533 = vmatprep.subr.mxu0 0.0
    %534 = vmatpush1.xpose.msra.mxu0 0.0
    %535 = vmatprep.subr.mxu0 0.0
    %536 = vmatpush1.xpose.msra.mxu0 0.0
    %537 = vmatprep.mubr.f32.mxu0 0.0
    %538 = vmatmul.mubr.f32.gmra.mrb[0].mxu0 %v462
    %v539 = vpop.f32.mrb[0].mxu0
    %v540 = vadd.f32 0.0, %v539
    %v541 = vpop.f32.mrb[0].mxu0
    %542 = vmatprep.mubr.f32.mxu0 0.0
    %543 = vmatmul.mubr.f32.gmra.mrb[0].mxu0 %v465
    %v544 = vpop.f32.mrb[0].mxu0
    %v545 = vadd.f32 0.0, %v544
    %v546 = vpop.f32.mrb[0].mxu0
    %547 = vdwg.mxu0
    %v549 = vsel %vm460, %v297, 0
    %v552 = vsel %vm460, %v298, 0
    %v555 = vsel %vm460, %v227, 0
    %v558 = vsel %vm460, %v232, 0
    %560 = vmatprep.subr.mxu0 0.0
    %561 = vmatpush1.xpose.msra.mxu0 %v555
    %562 = vmatprep.subr.mxu0 0.0
    %563 = vmatpush1.xpose.msra.mxu0 %v558
    %564 = vmatprep.subr.mxu0 0.0
    %565 = vmatpush1.xpose.msra.mxu0 0.0
    %566 = vmatprep.subr.mxu0 0.0
    %567 = vmatpush1.xpose.msra.mxu0 0.0
    %568 = vmatprep.subr.mxu0 0.0
    %569 = vmatpush1.xpose.msra.mxu0 0.0
    %570 = vmatprep.subr.mxu0 0.0
    %571 = vmatpush1.xpose.msra.mxu0 0.0
    %572 = vmatprep.subr.mxu0 0.0
    %573 = vmatpush1.xpose.msra.mxu0 0.0
    %574 = vmatprep.subr.mxu0 0.0
    %575 = vmatpush1.xpose.msra.mxu0 0.0
    %576 = vmatprep.subr.mxu0 0.0
    %577 = vmatpush1.xpose.msra.mxu0 0.0
    %578 = vmatprep.subr.mxu0 0.0
    %579 = vmatpush1.xpose.msra.mxu0 0.0
    %580 = vmatprep.subr.mxu0 0.0
    %581 = vmatpush1.xpose.msra.mxu0 0.0
    %582 = vmatprep.subr.mxu0 0.0
    %583 = vmatpush1.xpose.msra.mxu0 0.0
    %584 = vmatprep.subr.mxu0 0.0
    %585 = vmatpush1.xpose.msra.mxu0 0.0
    %586 = vmatprep.subr.mxu0 0.0
    %587 = vmatpush1.xpose.msra.mxu0 0.0
    %588 = vmatprep.subr.mxu0 0.0
    %589 = vmatpush1.xpose.msra.mxu0 0.0
    %590 = vmatprep.subr.mxu0 0.0
    %591 = vmatpush1.xpose.msra.mxu0 0.0
    %592 = vmatprep.subr.mxu0 0.0
    %593 = vmatpush1.xpose.msra.mxu0 0.0
    %594 = vmatprep.subr.mxu0 0.0
    %595 = vmatpush1.xpose.msra.mxu0 0.0
    %596 = vmatprep.subr.mxu0 0.0
    %597 = vmatpush1.xpose.msra.mxu0 0.0
    %598 = vmatprep.subr.mxu0 0.0
    %599 = vmatpush1.xpose.msra.mxu0 0.0
    %600 = vmatprep.subr.mxu0 0.0
    %601 = vmatpush1.xpose.msra.mxu0 0.0
    %602 = vmatprep.subr.mxu0 0.0
    %603 = vmatpush1.xpose.msra.mxu0 0.0
    %604 = vmatprep.subr.mxu0 0.0
    %605 = vmatpush1.xpose.msra.mxu0 0.0
    %606 = vmatprep.subr.mxu0 0.0
    %607 = vmatpush1.xpose.msra.mxu0 0.0
    %608 = vmatprep.subr.mxu0 0.0
    %609 = vmatpush1.xpose.msra.mxu0 0.0
    %610 = vmatprep.subr.mxu0 0.0
    %611 = vmatpush1.xpose.msra.mxu0 0.0
    %612 = vmatprep.subr.mxu0 0.0
    %613 = vmatpush1.xpose.msra.mxu0 0.0
    %614 = vmatprep.subr.mxu0 0.0
    %615 = vmatpush1.xpose.msra.mxu0 0.0
    %616 = vmatprep.subr.mxu0 0.0
    %617 = vmatpush1.xpose.msra.mxu0 0.0
    %618 = vmatprep.subr.mxu0 0.0
    %619 = vmatpush1.xpose.msra.mxu0 0.0
    %620 = vmatprep.subr.mxu0 0.0
    %621 = vmatpush1.xpose.msra.mxu0 0.0
    %622 = vmatprep.subr.mxu0 0.0
    %623 = vmatpush1.xpose.msra.mxu0 0.0
    %624 = vmatprep.mubr.f32.mxu0 0.0
    %625 = vmatmul.mubr.f32.gmra.mrb[0].mxu0 %v549
    %v626 = vpop.f32.mrb[0].mxu0
    %v627 = vadd.f32 0.0, %v626
    %v628 = vpop.f32.mrb[0].mxu0
    %629 = vmatprep.mubr.f32.mxu0 0.0
    %630 = vmatmul.mubr.f32.gmra.mrb[0].mxu0 %v552
    %v631 = vpop.f32.mrb[0].mxu0
    %v632 = vadd.f32 0.0, %v631
    %v633 = vpop.f32.mrb[0].mxu0
    %634 = vdwg.mxu0
    %v636 = vsel %vm460, %v299, 0
    %v639 = vsel %vm460, %v300, 0
    %v642 = vsel %vm460, %v237, 0
    %v645 = vsel %vm460, %v242, 0
    %647 = vmatprep.subr.mxu0 0.0
    %648 = vmatpush1.xpose.msra.mxu0 %v642
    %649 = vmatprep.subr.mxu0 0.0
    %650 = vmatpush1.xpose.msra.mxu0 %v645
    %651 = vmatprep.subr.mxu0 0.0
    %652 = vmatpush1.xpose.msra.mxu0 0.0
    %653 = vmatprep.subr.mxu0 0.0
    %654 = vmatpush1.xpose.msra.mxu0 0.0
    %655 = vmatprep.subr.mxu0 0.0
    %656 = vmatpush1.xpose.msra.mxu0 0.0
    %657 = vmatprep.subr.mxu0 0.0
    %658 = vmatpush1.xpose.msra.mxu0 0.0
    %659 = vmatprep.subr.mxu0 0.0
    %660 = vmatpush1.xpose.msra.mxu0 0.0
    %661 = vmatprep.subr.mxu0 0.0
    %662 = vmatpush1.xpose.msra.mxu0 0.0
    %663 = vmatprep.subr.mxu0 0.0
    %664 = vmatpush1.xpose.msra.mxu0 0.0
    %665 = vmatprep.subr.mxu0 0.0
    %666 = vmatpush1.xpose.msra.mxu0 0.0
    %667 = vmatprep.subr.mxu0 0.0
    %668 = vmatpush1.xpose.msra.mxu0 0.0
    %669 = vmatprep.subr.mxu0 0.0
    %670 = vmatpush1.xpose.msra.mxu0 0.0
    %671 = vmatprep.subr.mxu0 0.0
    %672 = vmatpush1.xpose.msra.mxu0 0.0
    %673 = vmatprep.subr.mxu0 0.0
    %674 = vmatpush1.xpose.msra.mxu0 0.0
    %675 = vmatprep.subr.mxu0 0.0
    %676 = vmatpush1.xpose.msra.mxu0 0.0
    %677 = vmatprep.subr.mxu0 0.0
    %678 = vmatpush1.xpose.msra.mxu0 0.0
    %679 = vmatprep.subr.mxu0 0.0
    %680 = vmatpush1.xpose.msra.mxu0 0.0
    %681 = vmatprep.subr.mxu0 0.0
    %682 = vmatpush1.xpose.msra.mxu0 0.0
    %683 = vmatprep.subr.mxu0 0.0
    %684 = vmatpush1.xpose.msra.mxu0 0.0
    %685 = vmatprep.subr.mxu0 0.0
    %686 = vmatpush1.xpose.msra.mxu0 0.0
    %687 = vmatprep.subr.mxu0 0.0
    %688 = vmatpush1.xpose.msra.mxu0 0.0
    %689 = vmatprep.subr.mxu0 0.0
    %690 = vmatpush1.xpose.msra.mxu0 0.0
    %691 = vmatprep.subr.mxu0 0.0
    %692 = vmatpush1.xpose.msra.mxu0 0.0
    %693 = vmatprep.subr.mxu0 0.0
    %694 = vmatpush1.xpose.msra.mxu0 0.0
    %695 = vmatprep.subr.mxu0 0.0
    %696 = vmatpush1.xpose.msra.mxu0 0.0
    %697 = vmatprep.subr.mxu0 0.0
    %698 = vmatpush1.xpose.msra.mxu0 0.0
    %699 = vmatprep.subr.mxu0 0.0
    %700 = vmatpush1.xpose.msra.mxu0 0.0
    %701 = vmatprep.subr.mxu0 0.0
    %702 = vmatpush1.xpose.msra.mxu0 0.0
    %703 = vmatprep.subr.mxu0 0.0
    %704 = vmatpush1.xpose.msra.mxu0 0.0
    %705 = vmatprep.subr.mxu0 0.0
    %706 = vmatpush1.xpose.msra.mxu0 0.0
    %707 = vmatprep.subr.mxu0 0.0
    %708 = vmatpush1.xpose.msra.mxu0 0.0
    %709 = vmatprep.subr.mxu0 0.0
    %710 = vmatpush1.xpose.msra.mxu0 0.0
    %711 = vmatprep.mubr.f32.mxu0 0.0
    %712 = vmatmul.mubr.f32.gmra.mrb[0].mxu0 %v636
    %v713 = vpop.f32.mrb[0].mxu0
    %v714 = vadd.f32 0.0, %v713
    %v715 = vpop.f32.mrb[0].mxu0
    %716 = vmatprep.mubr.f32.mxu0 0.0
    %717 = vmatmul.mubr.f32.gmra.mrb[0].mxu0 %v639
    %v718 = vpop.f32.mrb[0].mxu0
    %v719 = vadd.f32 0.0, %v718
    %v720 = vpop.f32.mrb[0].mxu0
    %721 = vdwg.mxu0
    %v723 = vsel %vm460, %v301, 0
    %v726 = vsel %vm460, %v302, 0
    %v729 = vsel %vm460, %v247, 0
    %v732 = vsel %vm460, %v252, 0
    %734 = vmatprep.subr.mxu0 0.0
    %735 = vmatpush1.xpose.msra.mxu0 %v729
    %736 = vmatprep.subr.mxu0 0.0
    %737 = vmatpush1.xpose.msra.mxu0 %v732
    %738 = vmatprep.subr.mxu0 0.0
    %739 = vmatpush1.xpose.msra.mxu0 0.0
    %740 = vmatprep.subr.mxu0 0.0
    %741 = vmatpush1.xpose.msra.mxu0 0.0
    %742 = vmatprep.subr.mxu0 0.0
    %743 = vmatpush1.xpose.msra.mxu0 0.0
    %744 = vmatprep.subr.mxu0 0.0
    %745 = vmatpush1.xpose.msra.mxu0 0.0
    %746 = vmatprep.subr.mxu0 0.0
    %747 = vmatpush1.xpose.msra.mxu0 0.0
    %748 = vmatprep.subr.mxu0 0.0
    %749 = vmatpush1.xpose.msra.mxu0 0.0
    %750 = vmatprep.subr.mxu0 0.0
    %751 = vmatpush1.xpose.msra.mxu0 0.0
    %752 = vmatprep.subr.mxu0 0.0
    %753 = vmatpush1.xpose.msra.mxu0 0.0
    %754 = vmatprep.subr.mxu0 0.0
    %755 = vmatpush1.xpose.msra.mxu0 0.0
    %756 = vmatprep.subr.mxu0 0.0
    %757 = vmatpush1.xpose.msra.mxu0 0.0
    %758 = vmatprep.subr.mxu0 0.0
    %759 = vmatpush1.xpose.msra.mxu0 0.0
    %760 = vmatprep.subr.mxu0 0.0
    %761 = vmatpush1.xpose.msra.mxu0 0.0
    %762 = vmatprep.subr.mxu0 0.0
    %763 = vmatpush1.xpose.msra.mxu0 0.0
    %764 = vmatprep.subr.mxu0 0.0
    %765 = vmatpush1.xpose.msra.mxu0 0.0
    %766 = vmatprep.subr.mxu0 0.0
    %767 = vmatpush1.xpose.msra.mxu0 0.0
    %768 = vmatprep.subr.mxu0 0.0
    %769 = vmatpush1.xpose.msra.mxu0 0.0
    %770 = vmatprep.subr.mxu0 0.0
    %771 = vmatpush1.xpose.msra.mxu0 0.0
    %772 = vmatprep.subr.mxu0 0.0
    %773 = vmatpush1.xpose.msra.mxu0 0.0
    %774 = vmatprep.subr.mxu0 0.0
    %775 = vmatpush1.xpose.msra.mxu0 0.0
    %776 = vmatprep.subr.mxu0 0.0
    %777 = vmatpush1.xpose.msra.mxu0 0.0
    %778 = vmatprep.subr.mxu0 0.0
    %779 = vmatpush1.xpose.msra.mxu0 0.0
    %780 = vmatprep.subr.mxu0 0.0
    %781 = vmatpush1.xpose.msra.mxu0 0.0
    %782 = vmatprep.subr.mxu0 0.0
    %783 = vmatpush1.xpose.msra.mxu0 0.0
    %784 = vmatprep.subr.mxu0 0.0
    %785 = vmatpush1.xpose.msra.mxu0 0.0
    %786 = vmatprep.subr.mxu0 0.0
    %787 = vmatpush1.xpose.msra.mxu0 0.0
    %788 = vmatprep.subr.mxu0 0.0
    %789 = vmatpush1.xpose.msra.mxu0 0.0
    %790 = vmatprep.subr.mxu0 0.0
    %791 = vmatpush1.xpose.msra.mxu0 0.0
    %792 = vmatprep.subr.mxu0 0.0
    %793 = vmatpush1.xpose.msra.mxu0 0.0
    %794 = vmatprep.subr.mxu0 0.0
    %795 = vmatpush1.xpose.msra.mxu0 0.0
    %796 = vmatprep.subr.mxu0 0.0
    %797 = vmatpush1.xpose.msra.mxu0 0.0
    %798 = vmatprep.mubr.f32.mxu0 0.0
    %799 = vmatmul.mubr.f32.gmra.mrb[0].mxu0 %v723
    %v800 = vpop.f32.mrb[0].mxu0
    %v801 = vadd.f32 0.0, %v800
    %v802 = vpop.f32.mrb[0].mxu0
    %803 = vmatprep.mubr.f32.mxu0 0.0
    %804 = vmatmul.mubr.f32.gmra.mrb[0].mxu0 %v726
    %v805 = vpop.f32.mrb[0].mxu0
    %v806 = vadd.f32 0.0, %v805
    %v807 = vpop.f32.mrb[0].mxu0
    %808 = vdwg.mxu0
    %v810 = vsel %vm460, %v303, 0
    %v813 = vsel %vm460, %v304, 0
    %v816 = vsel %vm460, %v257, 0
    %v819 = vsel %vm460, %v262, 0
    %821 = vmatprep.subr.mxu0 0.0
    %822 = vmatpush1.xpose.msra.mxu0 %v816
    %823 = vmatprep.subr.mxu0 0.0
    %824 = vmatpush1.xpose.msra.mxu0 %v819
    %825 = vmatprep.subr.mxu0 0.0
    %826 = vmatpush1.xpose.msra.mxu0 0.0
    %827 = vmatprep.subr.mxu0 0.0
    %828 = vmatpush1.xpose.msra.mxu0 0.0
    %829 = vmatprep.subr.mxu0 0.0
    %830 = vmatpush1.xpose.msra.mxu0 0.0
    %831 = vmatprep.subr.mxu0 0.0
    %832 = vmatpush1.xpose.msra.mxu0 0.0
    %833 = vmatprep.subr.mxu0 0.0
    %834 = vmatpush1.xpose.msra.mxu0 0.0
    %835 = vmatprep.subr.mxu0 0.0
    %836 = vmatpush1.xpose.msra.mxu0 0.0
    %837 = vmatprep.subr.mxu0 0.0
    %838 = vmatpush1.xpose.msra.mxu0 0.0
    %839 = vmatprep.subr.mxu0 0.0
    %840 = vmatpush1.xpose.msra.mxu0 0.0
    %841 = vmatprep.subr.mxu0 0.0
    %842 = vmatpush1.xpose.msra.mxu0 0.0
    %843 = vmatprep.subr.mxu0 0.0
    %844 = vmatpush1.xpose.msra.mxu0 0.0
    %845 = vmatprep.subr.mxu0 0.0
    %846 = vmatpush1.xpose.msra.mxu0 0.0
    %847 = vmatprep.subr.mxu0 0.0
    %848 = vmatpush1.xpose.msra.mxu0 0.0
    %849 = vmatprep.subr.mxu0 0.0
    %850 = vmatpush1.xpose.msra.mxu0 0.0
    %851 = vmatprep.subr.mxu0 0.0
    %852 = vmatpush1.xpose.msra.mxu0 0.0
    %853 = vmatprep.subr.mxu0 0.0
    %854 = vmatpush1.xpose.msra.mxu0 0.0
    %855 = vmatprep.subr.mxu0 0.0
    %856 = vmatpush1.xpose.msra.mxu0 0.0
    %857 = vmatprep.subr.mxu0 0.0
    %858 = vmatpush1.xpose.msra.mxu0 0.0
    %859 = vmatprep.subr.mxu0 0.0
    %860 = vmatpush1.xpose.msra.mxu0 0.0
    %861 = vmatprep.subr.mxu0 0.0
    %862 = vmatpush1.xpose.msra.mxu0 0.0
    %863 = vmatprep.subr.mxu0 0.0
    %864 = vmatpush1.xpose.msra.mxu0 0.0
    %865 = vmatprep.subr.mxu0 0.0
    %866 = vmatpush1.xpose.msra.mxu0 0.0
    %867 = vmatprep.subr.mxu0 0.0
    %868 = vmatpush1.xpose.msra.mxu0 0.0
    %869 = vmatprep.subr.mxu0 0.0
    %870 = vmatpush1.xpose.msra.mxu0 0.0
    %871 = vmatprep.subr.mxu0 0.0
    %872 = vmatpush1.xpose.msra.mxu0 0.0
    %873 = vmatprep.subr.mxu0 0.0
    %874 = vmatpush1.xpose.msra.mxu0 0.0
    %875 = vmatprep.subr.mxu0 0.0
    %876 = vmatpush1.xpose.msra.mxu0 0.0
    %877 = vmatprep.subr.mxu0 0.0
    %878 = vmatpush1.xpose.msra.mxu0 0.0
    %879 = vmatprep.subr.mxu0 0.0
    %880 = vmatpush1.xpose.msra.mxu0 0.0
    %881 = vmatprep.subr.mxu0 0.0
    %882 = vmatpush1.xpose.msra.mxu0 0.0
    %883 = vmatprep.subr.mxu0 0.0
    %884 = vmatpush1.xpose.msra.mxu0 0.0
    %885 = vmatprep.mubr.f32.mxu0 0.0
    %886 = vmatmul.mubr.f32.gmra.mrb[0].mxu0 %v810
    %v887 = vpop.f32.mrb[0].mxu0
    %v888 = vadd.f32 0.0, %v887
    %v889 = vpop.f32.mrb[0].mxu0
    %890 = vmatprep.mubr.f32.mxu0 0.0
    %891 = vmatmul.mubr.f32.gmra.mrb[0].mxu0 %v813
    %v892 = vpop.f32.mrb[0].mxu0
    %v893 = vadd.f32 0.0, %v892
    %v894 = vpop.f32.mrb[0].mxu0
    %895 = vdwg.mxu0
    %v897 = vsel %vm460, %v305, 0
    %v900 = vsel %vm460, %v306, 0
    %v903 = vsel %vm460, %v267, 0
    %v906 = vsel %vm460, %v272, 0
    %908 = vmatprep.subr.mxu0 0.0
    %909 = vmatpush1.xpose.msra.mxu0 %v903
    %910 = vmatprep.subr.mxu0 0.0
    %911 = vmatpush1.xpose.msra.mxu0 %v906
    %912 = vmatprep.subr.mxu0 0.0
    %913 = vmatpush1.xpose.msra.mxu0 0.0
    %914 = vmatprep.subr.mxu0 0.0
    %915 = vmatpush1.xpose.msra.mxu0 0.0
    %916 = vmatprep.subr.mxu0 0.0
    %917 = vmatpush1.xpose.msra.mxu0 0.0
    %918 = vmatprep.subr.mxu0 0.0
    %919 = vmatpush1.xpose.msra.mxu0 0.0
    %920 = vmatprep.subr.mxu0 0.0
    %921 = vmatpush1.xpose.msra.mxu0 0.0
    %922 = vmatprep.subr.mxu0 0.0
    %923 = vmatpush1.xpose.msra.mxu0 0.0
    %924 = vmatprep.subr.mxu0 0.0
    %925 = vmatpush1.xpose.msra.mxu0 0.0
    %926 = vmatprep.subr.mxu0 0.0
    %927 = vmatpush1.xpose.msra.mxu0 0.0
    %928 = vmatprep.subr.mxu0 0.0
    %929 = vmatpush1.xpose.msra.mxu0 0.0
    %930 = vmatprep.subr.mxu0 0.0
    %931 = vmatpush1.xpose.msra.mxu0 0.0
    %932 = vmatprep.subr.mxu0 0.0
    %933 = vmatpush1.xpose.msra.mxu0 0.0
    %934 = vmatprep.subr.mxu0 0.0
    %935 = vmatpush1.xpose.msra.mxu0 0.0
    %936 = vmatprep.subr.mxu0 0.0
    %937 = vmatpush1.xpose.msra.mxu0 0.0
    %938 = vmatprep.subr.mxu0 0.0
    %939 = vmatpush1.xpose.msra.mxu0 0.0
    %940 = vmatprep.subr.mxu0 0.0
    %941 = vmatpush1.xpose.msra.mxu0 0.0
    %942 = vmatprep.subr.mxu0 0.0
    %943 = vmatpush1.xpose.msra.mxu0 0.0
    %944 = vmatprep.subr.mxu0 0.0
    %945 = vmatpush1.xpose.msra.mxu0 0.0
    %946 = vmatprep.subr.mxu0 0.0
    %947 = vmatpush1.xpose.msra.mxu0 0.0
    %948 = vmatprep.subr.mxu0 0.0
    %949 = vmatpush1.xpose.msra.mxu0 0.0
    %950 = vmatprep.subr.mxu0 0.0
    %951 = vmatpush1.xpose.msra.mxu0 0.0
    %952 = vmatprep.subr.mxu0 0.0
    %953 = vmatpush1.xpose.msra.mxu0 0.0
    %954 = vmatprep.subr.mxu0 0.0
    %955 = vmatpush1.xpose.msra.mxu0 0.0
    %956 = vmatprep.subr.mxu0 0.0
    %957 = vmatpush1.xpose.msra.mxu0 0.0
    %958 = vmatprep.subr.mxu0 0.0
    %959 = vmatpush1.xpose.msra.mxu0 0.0
    %960 = vmatprep.subr.mxu0 0.0
    %961 = vmatpush1.xpose.msra.mxu0 0.0
    %962 = vmatprep.subr.mxu0 0.0
    %963 = vmatpush1.xpose.msra.mxu0 0.0
    %964 = vmatprep.subr.mxu0 0.0
    %965 = vmatpush1.xpose.msra.mxu0 0.0
    %966 = vmatprep.subr.mxu0 0.0
    %967 = vmatpush1.xpose.msra.mxu0 0.0
    %968 = vmatprep.subr.mxu0 0.0
    %969 = vmatpush1.xpose.msra.mxu0 0.0
    %970 = vmatprep.subr.mxu0 0.0
    %971 = vmatpush1.xpose.msra.mxu0 0.0
    %972 = vmatprep.mubr.f32.mxu0 0.0
    %973 = vmatmul.mubr.f32.gmra.mrb[0].mxu0 %v897
    %v974 = vpop.f32.mrb[0].mxu0
    %v975 = vadd.f32 0.0, %v974
    %v976 = vpop.f32.mrb[0].mxu0
    %977 = vmatprep.mubr.f32.mxu0 0.0
    %978 = vmatmul.mubr.f32.gmra.mrb[0].mxu0 %v900
    %v979 = vpop.f32.mrb[0].mxu0
    %v980 = vadd.f32 0.0, %v979
    %v981 = vpop.f32.mrb[0].mxu0
    %982 = vdwg.mxu0
    %v984 = vsel %vm460, %v307, 0
    %v987 = vsel %vm460, %v308, 0
    %v990 = vsel %vm460, %v277, 0
    %v993 = vsel %vm460, %v282, 0
    %995 = vmatprep.subr.mxu0 0.0
    %996 = vmatpush1.xpose.msra.mxu0 %v990
    %997 = vmatprep.subr.mxu0 0.0
    %998 = vmatpush1.xpose.msra.mxu0 %v993
    %999 = vmatprep.subr.mxu0 0.0
    %1000 = vmatpush1.xpose.msra.mxu0 0.0
    %1001 = vmatprep.subr.mxu0 0.0
    %1002 = vmatpush1.xpose.msra.mxu0 0.0
    %1003 = vmatprep.subr.mxu0 0.0
    %1004 = vmatpush1.xpose.msra.mxu0 0.0
    %1005 = vmatprep.subr.mxu0 0.0
    %1006 = vmatpush1.xpose.msra.mxu0 0.0
    %1007 = vmatprep.subr.mxu0 0.0
    %1008 = vmatpush1.xpose.msra.mxu0 0.0
    %1009 = vmatprep.subr.mxu0 0.0
    %1010 = vmatpush1.xpose.msra.mxu0 0.0
    %1011 = vmatprep.subr.mxu0 0.0
    %1012 = vmatpush1.xpose.msra.mxu0 0.0
    %1013 = vmatprep.subr.mxu0 0.0
    %1014 = vmatpush1.xpose.msra.mxu0 0.0
    %1015 = vmatprep.subr.mxu0 0.0
    %1016 = vmatpush1.xpose.msra.mxu0 0.0
    %1017 = vmatprep.subr.mxu0 0.0
    %1018 = vmatpush1.xpose.msra.mxu0 0.0
    %1019 = vmatprep.subr.mxu0 0.0
    %1020 = vmatpush1.xpose.msra.mxu0 0.0
    %1021 = vmatprep.subr.mxu0 0.0
    %1022 = vmatpush1.xpose.msra.mxu0 0.0
    %1023 = vmatprep.subr.mxu0 0.0
    %1024 = vmatpush1.xpose.msra.mxu0 0.0
    %1025 = vmatprep.subr.mxu0 0.0
    %1026 = vmatpush1.xpose.msra.mxu0 0.0
    %1027 = vmatprep.subr.mxu0 0.0
    %1028 = vmatpush1.xpose.msra.mxu0 0.0
    %1029 = vmatprep.subr.mxu0 0.0
    %1030 = vmatpush1.xpose.msra.mxu0 0.0
    %1031 = vmatprep.subr.mxu0 0.0
    %1032 = vmatpush1.xpose.msra.mxu0 0.0
    %1033 = vmatprep.subr.mxu0 0.0
    %1034 = vmatpush1.xpose.msra.mxu0 0.0
    %1035 = vmatprep.subr.mxu0 0.0
    %1036 = vmatpush1.xpose.msra.mxu0 0.0
    %1037 = vmatprep.subr.mxu0 0.0
    %1038 = vmatpush1.xpose.msra.mxu0 0.0
    %1039 = vmatprep.subr.mxu0 0.0
    %1040 = vmatpush1.xpose.msra.mxu0 0.0
    %1041 = vmatprep.subr.mxu0 0.0
    %1042 = vmatpush1.xpose.msra.mxu0 0.0
    %1043 = vmatprep.subr.mxu0 0.0
    %1044 = vmatpush1.xpose.msra.mxu0 0.0
    %1045 = vmatprep.subr.mxu0 0.0
    %1046 = vmatpush1.xpose.msra.mxu0 0.0
    %1047 = vmatprep.subr.mxu0 0.0
    %1048 = vmatpush1.xpose.msra.mxu0 0.0
    %1049 = vmatprep.subr.mxu0 0.0
    %1050 = vmatpush1.xpose.msra.mxu0 0.0
    %1051 = vmatprep.subr.mxu0 0.0
    %1052 = vmatpush1.xpose.msra.mxu0 0.0
    %1053 = vmatprep.subr.mxu0 0.0
    %1054 = vmatpush1.xpose.msra.mxu0 0.0
    %1055 = vmatprep.subr.mxu0 0.0
    %1056 = vmatpush1.xpose.msra.mxu0 0.0
    %1057 = vmatprep.subr.mxu0 0.0
    %1058 = vmatpush1.xpose.msra.mxu0 0.0
    %1059 = vmatprep.mubr.f32.mxu0 0.0
    %1060 = vmatmul.mubr.f32.gmra.mrb[0].mxu0 %v984
    %v1061 = vpop.f32.mrb[0].mxu0
    %v1062 = vadd.f32 0.0, %v1061
    %v1063 = vpop.f32.mrb[0].mxu0
    %1064 = vmatprep.mubr.f32.mxu0 0.0
    %1065 = vmatmul.mubr.f32.gmra.mrb[0].mxu0 %v987
    %v1066 = vpop.f32.mrb[0].mxu0
    %v1067 = vadd.f32 0.0, %v1066
    %v1068 = vpop.f32.mrb[0].mxu0
    %1069 = vdwg.mxu0
    %v1071 = vsel %vm460, %v309, 0
    %v1074 = vsel %vm460, %v310, 0
    %v1077 = vsel %vm460, %v287, 0
    %v1080 = vsel %vm460, %v292, 0
    %1082 = vmatprep.subr.mxu0 0.0
    %1083 = vmatpush1.xpose.msra.mxu0 %v1077
    %1084 = vmatprep.subr.mxu0 0.0
    %1085 = vmatpush1.xpose.msra.mxu0 %v1080
    %1086 = vmatprep.subr.mxu0 0.0
    %1087 = vmatpush1.xpose.msra.mxu0 0.0
    %1088 = vmatprep.subr.mxu0 0.0
    %1089 = vmatpush1.xpose.msra.mxu0 0.0
    %1090 = vmatprep.subr.mxu0 0.0
    %1091 = vmatpush1.xpose.msra.mxu0 0.0
    %1092 = vmatprep.subr.mxu0 0.0
    %1093 = vmatpush1.xpose.msra.mxu0 0.0
    %1094 = vmatprep.subr.mxu0 0.0
    %1095 = vmatpush1.xpose.msra.mxu0 0.0
    %1096 = vmatprep.subr.mxu0 0.0
    %1097 = vmatpush1.xpose.msra.mxu0 0.0
    %1098 = vmatprep.subr.mxu0 0.0
    %1099 = vmatpush1.xpose.msra.mxu0 0.0
    %1100 = vmatprep.subr.mxu0 0.0
    %1101 = vmatpush1.xpose.msra.mxu0 0.0
    %1102 = vmatprep.subr.mxu0 0.0
    %1103 = vmatpush1.xpose.msra.mxu0 0.0
    %1104 = vmatprep.subr.mxu0 0.0
    %1105 = vmatpush1.xpose.msra.mxu0 0.0
    %1106 = vmatprep.subr.mxu0 0.0
    %1107 = vmatpush1.xpose.msra.mxu0 0.0
    %1108 = vmatprep.subr.mxu0 0.0
    %1109 = vmatpush1.xpose.msra.mxu0 0.0
    %1110 = vmatprep.subr.mxu0 0.0
    %1111 = vmatpush1.xpose.msra.mxu0 0.0
    %1112 = vmatprep.subr.mxu0 0.0
    %1113 = vmatpush1.xpose.msra.mxu0 0.0
    %1114 = vmatprep.subr.mxu0 0.0
    %1115 = vmatpush1.xpose.msra.mxu0 0.0
    %1116 = vmatprep.subr.mxu0 0.0
    %1117 = vmatpush1.xpose.msra.mxu0 0.0
    %1118 = vmatprep.subr.mxu0 0.0
    %1119 = vmatpush1.xpose.msra.mxu0 0.0
    %1120 = vmatprep.subr.mxu0 0.0
    %1121 = vmatpush1.xpose.msra.mxu0 0.0
    %1122 = vmatprep.subr.mxu0 0.0
    %1123 = vmatpush1.xpose.msra.mxu0 0.0
    %1124 = vmatprep.subr.mxu0 0.0
    %1125 = vmatpush1.xpose.msra.mxu0 0.0
    %1126 = vmatprep.subr.mxu0 0.0
    %1127 = vmatpush1.xpose.msra.mxu0 0.0
    %1128 = vmatprep.subr.mxu0 0.0
    %1129 = vmatpush1.xpose.msra.mxu0 0.0
    %1130 = vmatprep.subr.mxu0 0.0
    %1131 = vmatpush1.xpose.msra.mxu0 0.0
    %1132 = vmatprep.subr.mxu0 0.0
    %1133 = vmatpush1.xpose.msra.mxu0 0.0
    %1134 = vmatprep.subr.mxu0 0.0
    %1135 = vmatpush1.xpose.msra.mxu0 0.0
    %1136 = vmatprep.subr.mxu0 0.0
    %1137 = vmatpush1.xpose.msra.mxu0 0.0
    %1138 = vmatprep.subr.mxu0 0.0
    %1139 = vmatpush1.xpose.msra.mxu0 0.0
    %1140 = vmatprep.subr.mxu0 0.0
    %1141 = vmatpush1.xpose.msra.mxu0 0.0
    %1142 = vmatprep.subr.mxu0 0.0
    %1143 = vmatpush1.xpose.msra.mxu0 0.0
    %1144 = vmatprep.subr.mxu0 0.0
    %1145 = vmatpush1.xpose.msra.mxu0 0.0
    %1146 = vmatprep.mubr.f32.mxu0 0.0
    %1147 = vmatmul.mubr.f32.gmra.mrb[0].mxu0 %v1071
    %v1148 = vpop.f32.mrb[0].mxu0
    %v1149 = vadd.f32 0.0, %v1148
    %v1150 = vpop.f32.mrb[0].mxu0
    %1151 = vmatprep.mubr.f32.mxu0 0.0
    %1152 = vmatmul.mubr.f32.gmra.mrb[0].mxu0 %v1074
    %v1153 = vpop.f32.mrb[0].mxu0
    %v1154 = vadd.f32 0.0, %v1153
    %v1155 = vpop.f32.mrb[0].mxu0
    %1156 = vdwg.mxu0
    %v1157 = vsel %vm460, %v540, -inf
    %1158 = vmax.xlane.f32.xlu0 %v1157
    %v1159 = vpop.xlane.xlu0 %1158
    %v1160 = vsel %vm460, %v545, -inf
    %1161 = vmax.xlane.f32.xlu0 %v1160
    %v1162 = vpop.xlane.xlu0 %1161
    %v1163 = vsel %vm460, %v627, -inf
    %1164 = vmax.xlane.f32.xlu0 %v1163
    %v1165 = vpop.xlane.xlu0 %1164
    %v1166 = vsel %vm460, %v632, -inf
    %1167 = vmax.xlane.f32.xlu0 %v1166
    %v1168 = vpop.xlane.xlu0 %1167
    %v1169 = vsel %vm460, %v714, -inf
    %1170 = vmax.xlane.f32.xlu0 %v1169
    %v1171 = vpop.xlane.xlu0 %1170
    %v1172 = vsel %vm460, %v719, -inf
    %1173 = vmax.xlane.f32.xlu0 %v1172
    %v1174 = vpop.xlane.xlu0 %1173
    %v1175 = vsel %vm460, %v801, -inf
    %1176 = vmax.xlane.f32.xlu0 %v1175
    %v1177 = vpop.xlane.xlu0 %1176
    %v1178 = vsel %vm460, %v806, -inf
    %1179 = vmax.xlane.f32.xlu0 %v1178
    %v1180 = vpop.xlane.xlu0 %1179
    %v1181 = vsel %vm460, %v888, -inf
    %1182 = vmax.xlane.f32.xlu0 %v1181
    %v1183 = vpop.xlane.xlu0 %1182
    %v1184 = vsel %vm460, %v893, -inf
    %1185 = vmax.xlane.f32.xlu0 %v1184
    %v1186 = vpop.xlane.xlu0 %1185
    %v1187 = vsel %vm460, %v975, -inf
    %1188 = vmax.xlane.f32.xlu0 %v1187
    %v1189 = vpop.xlane.xlu0 %1188
    %v1190 = vsel %vm460, %v980, -inf
    %1191 = vmax.xlane.f32.xlu0 %v1190
    %v1192 = vpop.xlane.xlu0 %1191
    %v1193 = vsel %vm460, %v1062, -inf
    %1194 = vmax.xlane.f32.xlu0 %v1193
    %v1195 = vpop.xlane.xlu0 %1194
    %v1196 = vsel %vm460, %v1067, -inf
    %1197 = vmax.xlane.f32.xlu0 %v1196
    %v1198 = vpop.xlane.xlu0 %1197
    %v1199 = vsel %vm460, %v1149, -inf
    %1200 = vmax.xlane.f32.xlu0 %v1199
    %v1201 = vpop.xlane.xlu0 %1200
    %v1202 = vsel %vm460, %v1154, -inf
    %1203 = vmax.xlane.f32.xlu0 %v1202
    %v1204 = vpop.xlane.xlu0 %1203
    %v1205 = vsub.f32 %v540, %v1159
    %v1206 = vsub.f32 %v545, %v1162
    %v1207 = vsub.f32 %v627, %v1165
    %v1208 = vsub.f32 %v632, %v1168
    %v1209 = vsub.f32 %v714, %v1171
    %v1210 = vsub.f32 %v719, %v1174
    %v1211 = vsub.f32 %v801, %v1177
    %v1212 = vsub.f32 %v806, %v1180
    %v1213 = vsub.f32 %v888, %v1183
    %v1214 = vsub.f32 %v893, %v1186
    %v1215 = vsub.f32 %v975, %v1189
    %v1216 = vsub.f32 %v980, %v1192
    %v1217 = vsub.f32 %v1062, %v1195
    %v1218 = vsub.f32 %v1067, %v1198
    %v1219 = vsub.f32 %v1149, %v1201
    %v1220 = vsub.f32 %v1154, %v1204
    %v1221 = vmul.f32 %v1205, 1.442695
    %v1222 = vpow.pop %v1221
    %v1223 = vmul.f32 %v1206, 1.442695
    %v1224 = vpow.pop %v1223
    %v1225 = vmul.f32 %v1207, 1.442695
    %v1226 = vpow.pop %v1225
    %v1227 = vmul.f32 %v1208, 1.442695
    %v1228 = vpow.pop %v1227
    %v1229 = vmul.f32 %v1209, 1.442695
    %v1230 = vpow.pop %v1229
    %v1231 = vmul.f32 %v1210, 1.442695
    %v1232 = vpow.pop %v1231
    %v1233 = vmul.f32 %v1211, 1.442695
    %v1234 = vpow.pop %v1233
    %v1235 = vmul.f32 %v1212, 1.442695
    %v1236 = vpow.pop %v1235
    %v1237 = vmul.f32 %v1213, 1.442695
    %v1238 = vpow.pop %v1237
    %v1239 = vmul.f32 %v1214, 1.442695
    %v1240 = vpow.pop %v1239
    %v1241 = vmul.f32 %v1215, 1.442695
    %v1242 = vpow.pop %v1241
    %v1243 = vmul.f32 %v1216, 1.442695
    %v1244 = vpow.pop %v1243
    %v1245 = vmul.f32 %v1217, 1.442695
    %v1246 = vpow.pop %v1245
    %v1247 = vmul.f32 %v1218, 1.442695
    %v1248 = vpow.pop %v1247
    %v1249 = vmul.f32 %v1219, 1.442695
    %v1250 = vpow.pop %v1249
    %v1251 = vmul.f32 %v1220, 1.442695
    %v1252 = vpow.pop %v1251
    %v1253 = vsel %vm460, %v1222, 0.0
    %1254 = vadd.xlane.f32.xlu0 %v1253
    %v1255 = vpop.xlane.xlu0 %1254
    %v1256 = vsel %vm460, %v1224, 0.0
    %1257 = vadd.xlane.f32.xlu0 %v1256
    %v1258 = vpop.xlane.xlu0 %1257
    %v1259 = vsel %vm460, %v1226, 0.0
    %1260 = vadd.xlane.f32.xlu0 %v1259
    %v1261 = vpop.xlane.xlu0 %1260
    %v1262 = vsel %vm460, %v1228, 0.0
    %1263 = vadd.xlane.f32.xlu0 %v1262
    %v1264 = vpop.xlane.xlu0 %1263
    %v1265 = vsel %vm460, %v1230, 0.0
    %1266 = vadd.xlane.f32.xlu0 %v1265
    %v1267 = vpop.xlane.xlu0 %1266
    %v1268 = vsel %vm460, %v1232, 0.0
    %1269 = vadd.xlane.f32.xlu0 %v1268
    %v1270 = vpop.xlane.xlu0 %1269
    %v1271 = vsel %vm460, %v1234, 0.0
    %1272 = vadd.xlane.f32.xlu0 %v1271
    %v1273 = vpop.xlane.xlu0 %1272
    %v1274 = vsel %vm460, %v1236, 0.0
    %1275 = vadd.xlane.f32.xlu0 %v1274
    %v1276 = vpop.xlane.xlu0 %1275
    %v1277 = vsel %vm460, %v1238, 0.0
    %1278 = vadd.xlane.f32.xlu0 %v1277
    %v1279 = vpop.xlane.xlu0 %1278
    %v1280 = vsel %vm460, %v1240, 0.0
    %1281 = vadd.xlane.f32.xlu0 %v1280
    %v1282 = vpop.xlane.xlu0 %1281
    %v1283 = vsel %vm460, %v1242, 0.0
    %1284 = vadd.xlane.f32.xlu0 %v1283
    %v1285 = vpop.xlane.xlu0 %1284
    %v1286 = vsel %vm460, %v1244, 0.0
    %1287 = vadd.xlane.f32.xlu0 %v1286
    %v1288 = vpop.xlane.xlu0 %1287
    %v1289 = vsel %vm460, %v1246, 0.0
    %1290 = vadd.xlane.f32.xlu0 %v1289
    %v1291 = vpop.xlane.xlu0 %1290
    %v1292 = vsel %vm460, %v1248, 0.0
    %1293 = vadd.xlane.f32.xlu0 %v1292
    %v1294 = vpop.xlane.xlu0 %1293
    %v1295 = vsel %vm460, %v1250, 0.0
    %1296 = vadd.xlane.f32.xlu0 %v1295
    %v1297 = vpop.xlane.xlu0 %1296
    %v1298 = vsel %vm460, %v1252, 0.0
    %1299 = vadd.xlane.f32.xlu0 %v1298
    %v1300 = vpop.xlane.xlu0 %1299
    %v1301 = vrcp.pop %v1255
    %v1302 = vrcp.pop %v1258
    %v1303 = vrcp.pop %v1261
    %v1304 = vrcp.pop %v1264
    %v1305 = vrcp.pop %v1267
    %v1306 = vrcp.pop %v1270
    %v1307 = vrcp.pop %v1273
    %v1308 = vrcp.pop %v1276
    %v1309 = vrcp.pop %v1279
    %v1310 = vrcp.pop %v1282
    %v1311 = vrcp.pop %v1285
    %v1312 = vrcp.pop %v1288
    %v1313 = vrcp.pop %v1291
    %v1314 = vrcp.pop %v1294
    %v1315 = vrcp.pop %v1297
    %v1316 = vrcp.pop %v1300
    %v1317 = vmul.f32 %v1255, %v1301
    %v1318 = vmul.f32 %v1258, %v1302
    %v1319 = vmul.f32 %v1261, %v1303
    %v1320 = vmul.f32 %v1264, %v1304
    %v1321 = vmul.f32 %v1267, %v1305
    %v1322 = vmul.f32 %v1270, %v1306
    %v1323 = vmul.f32 %v1273, %v1307
    %v1324 = vmul.f32 %v1276, %v1308
    %v1325 = vmul.f32 %v1279, %v1309
    %v1326 = vmul.f32 %v1282, %v1310
    %v1327 = vmul.f32 %v1285, %v1311
    %v1328 = vmul.f32 %v1288, %v1312
    %v1329 = vmul.f32 %v1291, %v1313
    %v1330 = vmul.f32 %v1294, %v1314
    %v1331 = vmul.f32 %v1297, %v1315
    %v1332 = vmul.f32 %v1300, %v1316
    %v1333 = vsub.f32 2.0, %v1317
    %v1334 = vsub.f32 2.0, %v1318
    %v1335 = vsub.f32 2.0, %v1319
    %v1336 = vsub.f32 2.0, %v1320
    %v1337 = vsub.f32 2.0, %v1321
    %v1338 = vsub.f32 2.0, %v1322
    %v1339 = vsub.f32 2.0, %v1323
    %v1340 = vsub.f32 2.0, %v1324
    %v1341 = vsub.f32 2.0, %v1325
    %v1342 = vsub.f32 2.0, %v1326
    %v1343 = vsub.f32 2.0, %v1327
    %v1344 = vsub.f32 2.0, %v1328
    %v1345 = vsub.f32 2.0, %v1329
    %v1346 = vsub.f32 2.0, %v1330
    %v1347 = vsub.f32 2.0, %v1331
    %v1348 = vsub.f32 2.0, %v1332
    %v1349 = vmul.f32 %v1301, %v1333
    %v1350 = vmul.f32 %v1302, %v1334
    %v1351 = vmul.f32 %v1303, %v1335
    %v1352 = vmul.f32 %v1304, %v1336
    %v1353 = vmul.f32 %v1305, %v1337
    %v1354 = vmul.f32 %v1306, %v1338
    %v1355 = vmul.f32 %v1307, %v1339
    %v1356 = vmul.f32 %v1308, %v1340
    %v1357 = vmul.f32 %v1309, %v1341
    %v1358 = vmul.f32 %v1310, %v1342
    %v1359 = vmul.f32 %v1311, %v1343
    %v1360 = vmul.f32 %v1312, %v1344
    %v1361 = vmul.f32 %v1313, %v1345
    %v1362 = vmul.f32 %v1314, %v1346
    %v1363 = vmul.f32 %v1315, %v1347
    %v1364 = vmul.f32 %v1316, %v1348
    %v1365 = vmul.f32 %v1222, %v1349
    %v1366 = vmul.f32 %v1224, %v1350
    %v1367 = vmul.f32 %v1226, %v1351
    %v1368 = vmul.f32 %v1228, %v1352
    %v1369 = vmul.f32 %v1230, %v1353
    %v1370 = vmul.f32 %v1232, %v1354
    %v1371 = vmul.f32 %v1234, %v1355
    %v1372 = vmul.f32 %v1236, %v1356
    %v1373 = vmul.f32 %v1238, %v1357
    %v1374 = vmul.f32 %v1240, %v1358
    %v1375 = vmul.f32 %v1242, %v1359
    %v1376 = vmul.f32 %v1244, %v1360
    %v1377 = vmul.f32 %v1246, %v1361
    %v1378 = vmul.f32 %v1248, %v1362
    %v1379 = vmul.f32 %v1250, %v1363
    %v1380 = vmul.f32 %v1252, %v1364
    %v1382 = vsel %vm460, %v1365, 0
    %v1385 = vsel %vm460, %v1366, 0
    %1387 = vmatprep.subr.mxu0 0.0
    %1388 = vmatpush1.msra.mxu0 %v382
    %1389 = vmatprep.subr.mxu0 0.0
    %1390 = vmatpush1.msra.mxu0 %v387
    %1391 = vmatprep.subr.mxu0 0.0
    %1392 = vmatpush1.msra.mxu0 0.0
    %1393 = vmatprep.subr.mxu0 0.0
    %1394 = vmatpush1.msra.mxu0 0.0
    %1395 = vmatprep.subr.mxu0 0.0
    %1396 = vmatpush1.msra.mxu0 0.0
    %1397 = vmatprep.subr.mxu0 0.0
    %1398 = vmatpush1.msra.mxu0 0.0
    %1399 = vmatprep.subr.mxu0 0.0
    %1400 = vmatpush1.msra.mxu0 0.0
    %1401 = vmatprep.subr.mxu0 0.0
    %1402 = vmatpush1.msra.mxu0 0.0
    %1403 = vmatprep.subr.mxu0 0.0
    %1404 = vmatpush1.msra.mxu0 0.0
    %1405 = vmatprep.subr.mxu0 0.0
    %1406 = vmatpush1.msra.mxu0 0.0
    %1407 = vmatprep.subr.mxu0 0.0
    %1408 = vmatpush1.msra.mxu0 0.0
    %1409 = vmatprep.subr.mxu0 0.0
    %1410 = vmatpush1.msra.mxu0 0.0
    %1411 = vmatprep.subr.mxu0 0.0
    %1412 = vmatpush1.msra.mxu0 0.0
    %1413 = vmatprep.subr.mxu0 0.0
    %1414 = vmatpush1.msra.mxu0 0.0
    %1415 = vmatprep.subr.mxu0 0.0
    %1416 = vmatpush1.msra.mxu0 0.0
    %1417 = vmatprep.subr.mxu0 0.0
    %1418 = vmatpush1.msra.mxu0 0.0
    %1419 = vmatprep.subr.mxu0 0.0
    %1420 = vmatpush1.msra.mxu0 0.0
    %1421 = vmatprep.subr.mxu0 0.0
    %1422 = vmatpush1.msra.mxu0 0.0
    %1423 = vmatprep.subr.mxu0 0.0
    %1424 = vmatpush1.msra.mxu0 0.0
    %1425 = vmatprep.subr.mxu0 0.0
    %1426 = vmatpush1.msra.mxu0 0.0
    %1427 = vmatprep.subr.mxu0 0.0
    %1428 = vmatpush1.msra.mxu0 0.0
    %1429 = vmatprep.subr.mxu0 0.0
    %1430 = vmatpush1.msra.mxu0 0.0
    %1431 = vmatprep.subr.mxu0 0.0
    %1432 = vmatpush1.msra.mxu0 0.0
    %1433 = vmatprep.subr.mxu0 0.0
    %1434 = vmatpush1.msra.mxu0 0.0
    %1435 = vmatprep.subr.mxu0 0.0
    %1436 = vmatpush1.msra.mxu0 0.0
    %1437 = vmatprep.subr.mxu0 0.0
    %1438 = vmatpush1.msra.mxu0 0.0
    %1439 = vmatprep.subr.mxu0 0.0
    %1440 = vmatpush1.msra.mxu0 0.0
    %1441 = vmatprep.subr.mxu0 0.0
    %1442 = vmatpush1.msra.mxu0 0.0
    %1443 = vmatprep.subr.mxu0 0.0
    %1444 = vmatpush1.msra.mxu0 0.0
    %1445 = vmatprep.subr.mxu0 0.0
    %1446 = vmatpush1.msra.mxu0 0.0
    %1447 = vmatprep.subr.mxu0 0.0
    %1448 = vmatpush1.msra.mxu0 0.0
    %1449 = vmatprep.subr.mxu0 0.0
    %1450 = vmatpush1.msra.mxu0 0.0
    %1451 = vmatprep.mubr.f32.mxu0 0.0
    %1452 = vmatmul.mubr.f32.gmra.mrb[0].mxu0 %v1382
    %v1453 = vpop.f32.mrb[0].mxu0
    %v1454 = vadd.f32 0.0, %v1453
    %v1455 = vpop.f32.mrb[0].mxu0
    %1456 = vmatprep.mubr.f32.mxu0 0.0
    %1457 = vmatmul.mubr.f32.gmra.mrb[0].mxu0 %v1385
    %v1458 = vpop.f32.mrb[0].mxu0
    %v1459 = vadd.f32 0.0, %v1458
    %v1460 = vpop.f32.mrb[0].mxu0
    %1461 = vdwg.mxu0
    %v1463 = vsel %vm460, %v1367, 0
    %v1466 = vsel %vm460, %v1368, 0
    %1468 = vmatprep.subr.mxu0 0.0
    %1469 = vmatpush1.msra.mxu0 %v392
    %1470 = vmatprep.subr.mxu0 0.0
    %1471 = vmatpush1.msra.mxu0 %v397
    %1472 = vmatprep.subr.mxu0 0.0
    %1473 = vmatpush1.msra.mxu0 0.0
    %1474 = vmatprep.subr.mxu0 0.0
    %1475 = vmatpush1.msra.mxu0 0.0
    %1476 = vmatprep.subr.mxu0 0.0
    %1477 = vmatpush1.msra.mxu0 0.0
    %1478 = vmatprep.subr.mxu0 0.0
    %1479 = vmatpush1.msra.mxu0 0.0
    %1480 = vmatprep.subr.mxu0 0.0
    %1481 = vmatpush1.msra.mxu0 0.0
    %1482 = vmatprep.subr.mxu0 0.0
    %1483 = vmatpush1.msra.mxu0 0.0
    %1484 = vmatprep.subr.mxu0 0.0
    %1485 = vmatpush1.msra.mxu0 0.0
    %1486 = vmatprep.subr.mxu0 0.0
    %1487 = vmatpush1.msra.mxu0 0.0
    %1488 = vmatprep.subr.mxu0 0.0
    %1489 = vmatpush1.msra.mxu0 0.0
    %1490 = vmatprep.subr.mxu0 0.0
    %1491 = vmatpush1.msra.mxu0 0.0
    %1492 = vmatprep.subr.mxu0 0.0
    %1493 = vmatpush1.msra.mxu0 0.0
    %1494 = vmatprep.subr.mxu0 0.0
    %1495 = vmatpush1.msra.mxu0 0.0
    %1496 = vmatprep.subr.mxu0 0.0
    %1497 = vmatpush1.msra.mxu0 0.0
    %1498 = vmatprep.subr.mxu0 0.0
    %1499 = vmatpush1.msra.mxu0 0.0
    %1500 = vmatprep.subr.mxu0 0.0
    %1501 = vmatpush1.msra.mxu0 0.0
    %1502 = vmatprep.subr.mxu0 0.0
    %1503 = vmatpush1.msra.mxu0 0.0
    %1504 = vmatprep.subr.mxu0 0.0
    %1505 = vmatpush1.msra.mxu0 0.0
    %1506 = vmatprep.subr.mxu0 0.0
    %1507 = vmatpush1.msra.mxu0 0.0
    %1508 = vmatprep.subr.mxu0 0.0
    %1509 = vmatpush1.msra.mxu0 0.0
    %1510 = vmatprep.subr.mxu0 0.0
    %1511 = vmatpush1.msra.mxu0 0.0
    %1512 = vmatprep.subr.mxu0 0.0
    %1513 = vmatpush1.msra.mxu0 0.0
    %1514 = vmatprep.subr.mxu0 0.0
    %1515 = vmatpush1.msra.mxu0 0.0
    %1516 = vmatprep.subr.mxu0 0.0
    %1517 = vmatpush1.msra.mxu0 0.0
    %1518 = vmatprep.subr.mxu0 0.0
    %1519 = vmatpush1.msra.mxu0 0.0
    %1520 = vmatprep.subr.mxu0 0.0
    %1521 = vmatpush1.msra.mxu0 0.0
    %1522 = vmatprep.subr.mxu0 0.0
    %1523 = vmatpush1.msra.mxu0 0.0
    %1524 = vmatprep.subr.mxu0 0.0
    %1525 = vmatpush1.msra.mxu0 0.0
    %1526 = vmatprep.subr.mxu0 0.0
    %1527 = vmatpush1.msra.mxu0 0.0
    %1528 = vmatprep.subr.mxu0 0.0
    %1529 = vmatpush1.msra.mxu0 0.0
    %1530 = vmatprep.subr.mxu0 0.0
    %1531 = vmatpush1.msra.mxu0 0.0
    %1532 = vmatprep.mubr.f32.mxu0 0.0
    %1533 = vmatmul.mubr.f32.gmra.mrb[0].mxu0 %v1463
    %v1534 = vpop.f32.mrb[0].mxu0
    %v1535 = vadd.f32 0.0, %v1534
    %v1536 = vpop.f32.mrb[0].mxu0
    %1537 = vmatprep.mubr.f32.mxu0 0.0
    %1538 = vmatmul.mubr.f32.gmra.mrb[0].mxu0 %v1466
    %v1539 = vpop.f32.mrb[0].mxu0
    %v1540 = vadd.f32 0.0, %v1539
    %v1541 = vpop.f32.mrb[0].mxu0
    %1542 = vdwg.mxu0
    %v1544 = vsel %vm460, %v1369, 0
    %v1547 = vsel %vm460, %v1370, 0
    %1549 = vmatprep.subr.mxu0 0.0
    %1550 = vmatpush1.msra.mxu0 %v402
    %1551 = vmatprep.subr.mxu0 0.0
    %1552 = vmatpush1.msra.mxu0 %v407
    %1553 = vmatprep.subr.mxu0 0.0
    %1554 = vmatpush1.msra.mxu0 0.0
    %1555 = vmatprep.subr.mxu0 0.0
    %1556 = vmatpush1.msra.mxu0 0.0
    %1557 = vmatprep.subr.mxu0 0.0
    %1558 = vmatpush1.msra.mxu0 0.0
    %1559 = vmatprep.subr.mxu0 0.0
    %1560 = vmatpush1.msra.mxu0 0.0
    %1561 = vmatprep.subr.mxu0 0.0
    %1562 = vmatpush1.msra.mxu0 0.0
    %1563 = vmatprep.subr.mxu0 0.0
    %1564 = vmatpush1.msra.mxu0 0.0
    %1565 = vmatprep.subr.mxu0 0.0
    %1566 = vmatpush1.msra.mxu0 0.0
    %1567 = vmatprep.subr.mxu0 0.0
    %1568 = vmatpush1.msra.mxu0 0.0
    %1569 = vmatprep.subr.mxu0 0.0
    %1570 = vmatpush1.msra.mxu0 0.0
    %1571 = vmatprep.subr.mxu0 0.0
    %1572 = vmatpush1.msra.mxu0 0.0
    %1573 = vmatprep.subr.mxu0 0.0
    %1574 = vmatpush1.msra.mxu0 0.0
    %1575 = vmatprep.subr.mxu0 0.0
    %1576 = vmatpush1.msra.mxu0 0.0
    %1577 = vmatprep.subr.mxu0 0.0
    %1578 = vmatpush1.msra.mxu0 0.0
    %1579 = vmatprep.subr.mxu0 0.0
    %1580 = vmatpush1.msra.mxu0 0.0
    %1581 = vmatprep.subr.mxu0 0.0
    %1582 = vmatpush1.msra.mxu0 0.0
    %1583 = vmatprep.subr.mxu0 0.0
    %1584 = vmatpush1.msra.mxu0 0.0
    %1585 = vmatprep.subr.mxu0 0.0
    %1586 = vmatpush1.msra.mxu0 0.0
    %1587 = vmatprep.subr.mxu0 0.0
    %1588 = vmatpush1.msra.mxu0 0.0
    %1589 = vmatprep.subr.mxu0 0.0
    %1590 = vmatpush1.msra.mxu0 0.0
    %1591 = vmatprep.subr.mxu0 0.0
    %1592 = vmatpush1.msra.mxu0 0.0
    %1593 = vmatprep.subr.mxu0 0.0
    %1594 = vmatpush1.msra.mxu0 0.0
    %1595 = vmatprep.subr.mxu0 0.0
    %1596 = vmatpush1.msra.mxu0 0.0
    %1597 = vmatprep.subr.mxu0 0.0
    %1598 = vmatpush1.msra.mxu0 0.0
    %1599 = vmatprep.subr.mxu0 0.0
    %1600 = vmatpush1.msra.mxu0 0.0
    %1601 = vmatprep.subr.mxu0 0.0
    %1602 = vmatpush1.msra.mxu0 0.0
    %1603 = vmatprep.subr.mxu0 0.0
    %1604 = vmatpush1.msra.mxu0 0.0
    %1605 = vmatprep.subr.mxu0 0.0
    %1606 = vmatpush1.msra.mxu0 0.0
    %1607 = vmatprep.subr.mxu0 0.0
    %1608 = vmatpush1.msra.mxu0 0.0
    %1609 = vmatprep.subr.mxu0 0.0
    %1610 = vmatpush1.msra.mxu0 0.0
    %1611 = vmatprep.subr.mxu0 0.0
    %1612 = vmatpush1.msra.mxu0 0.0
    %1613 = vmatprep.mubr.f32.mxu0 0.0
    %1614 = vmatmul.mubr.f32.gmra.mrb[0].mxu0 %v1544
    %v1615 = vpop.f32.mrb[0].mxu0
    %v1616 = vadd.f32 0.0, %v1615
    %v1617 = vpop.f32.mrb[0].mxu0
    %1618 = vmatprep.mubr.f32.mxu0 0.0
    %1619 = vmatmul.mubr.f32.gmra.mrb[0].mxu0 %v1547
    %v1620 = vpop.f32.mrb[0].mxu0
    %v1621 = vadd.f32 0.0, %v1620
    %v1622 = vpop.f32.mrb[0].mxu0
    %1623 = vdwg.mxu0
    %v1625 = vsel %vm460, %v1371, 0
    %v1628 = vsel %vm460, %v1372, 0
    %1630 = vmatprep.subr.mxu0 0.0
    %1631 = vmatpush1.msra.mxu0 %v412
    %1632 = vmatprep.subr.mxu0 0.0
    %1633 = vmatpush1.msra.mxu0 %v417
    %1634 = vmatprep.subr.mxu0 0.0
    %1635 = vmatpush1.msra.mxu0 0.0
    %1636 = vmatprep.subr.mxu0 0.0
    %1637 = vmatpush1.msra.mxu0 0.0
    %1638 = vmatprep.subr.mxu0 0.0
    %1639 = vmatpush1.msra.mxu0 0.0
    %1640 = vmatprep.subr.mxu0 0.0
    %1641 = vmatpush1.msra.mxu0 0.0
    %1642 = vmatprep.subr.mxu0 0.0
    %1643 = vmatpush1.msra.mxu0 0.0
    %1644 = vmatprep.subr.mxu0 0.0
    %1645 = vmatpush1.msra.mxu0 0.0
    %1646 = vmatprep.subr.mxu0 0.0
    %1647 = vmatpush1.msra.mxu0 0.0
    %1648 = vmatprep.subr.mxu0 0.0
    %1649 = vmatpush1.msra.mxu0 0.0
    %1650 = vmatprep.subr.mxu0 0.0
    %1651 = vmatpush1.msra.mxu0 0.0
    %1652 = vmatprep.subr.mxu0 0.0
    %1653 = vmatpush1.msra.mxu0 0.0
    %1654 = vmatprep.subr.mxu0 0.0
    %1655 = vmatpush1.msra.mxu0 0.0
    %1656 = vmatprep.subr.mxu0 0.0
    %1657 = vmatpush1.msra.mxu0 0.0
    %1658 = vmatprep.subr.mxu0 0.0
    %1659 = vmatpush1.msra.mxu0 0.0
    %1660 = vmatprep.subr.mxu0 0.0
    %1661 = vmatpush1.msra.mxu0 0.0
    %1662 = vmatprep.subr.mxu0 0.0
    %1663 = vmatpush1.msra.mxu0 0.0
    %1664 = vmatprep.subr.mxu0 0.0
    %1665 = vmatpush1.msra.mxu0 0.0
    %1666 = vmatprep.subr.mxu0 0.0
    %1667 = vmatpush1.msra.mxu0 0.0
    %1668 = vmatprep.subr.mxu0 0.0
    %1669 = vmatpush1.msra.mxu0 0.0
    %1670 = vmatprep.subr.mxu0 0.0
    %1671 = vmatpush1.msra.mxu0 0.0
    %1672 = vmatprep.subr.mxu0 0.0
    %1673 = vmatpush1.msra.mxu0 0.0
    %1674 = vmatprep.subr.mxu0 0.0
    %1675 = vmatpush1.msra.mxu0 0.0
    %1676 = vmatprep.subr.mxu0 0.0
    %1677 = vmatpush1.msra.mxu0 0.0
    %1678 = vmatprep.subr.mxu0 0.0
    %1679 = vmatpush1.msra.mxu0 0.0
    %1680 = vmatprep.subr.mxu0 0.0
    %1681 = vmatpush1.msra.mxu0 0.0
    %1682 = vmatprep.subr.mxu0 0.0
    %1683 = vmatpush1.msra.mxu0 0.0
    %1684 = vmatprep.subr.mxu0 0.0
    %1685 = vmatpush1.msra.mxu0 0.0
    %1686 = vmatprep.subr.mxu0 0.0
    %1687 = vmatpush1.msra.mxu0 0.0
    %1688 = vmatprep.subr.mxu0 0.0
    %1689 = vmatpush1.msra.mxu0 0.0
    %1690 = vmatprep.subr.mxu0 0.0
    %1691 = vmatpush1.msra.mxu0 0.0
    %1692 = vmatprep.subr.mxu0 0.0
    %1693 = vmatpush1.msra.mxu0 0.0
    %1694 = vmatprep.mubr.f32.mxu0 0.0
    %1695 = vmatmul.mubr.f32.gmra.mrb[0].mxu0 %v1625
    %v1696 = vpop.f32.mrb[0].mxu0
    %v1697 = vadd.f32 0.0, %v1696
    %v1698 = vpop.f32.mrb[0].mxu0
    %1699 = vmatprep.mubr.f32.mxu0 0.0
    %1700 = vmatmul.mubr.f32.gmra.mrb[0].mxu0 %v1628
    %v1701 = vpop.f32.mrb[0].mxu0
    %v1702 = vadd.f32 0.0, %v1701
    %v1703 = vpop.f32.mrb[0].mxu0
    %1704 = vdwg.mxu0
    %v1706 = vsel %vm460, %v1373, 0
    %v1709 = vsel %vm460, %v1374, 0
    %1711 = vmatprep.subr.mxu0 0.0
    %1712 = vmatpush1.msra.mxu0 %v422
    %1713 = vmatprep.subr.mxu0 0.0
    %1714 = vmatpush1.msra.mxu0 %v427
    %1715 = vmatprep.subr.mxu0 0.0
    %1716 = vmatpush1.msra.mxu0 0.0
    %1717 = vmatprep.subr.mxu0 0.0
    %1718 = vmatpush1.msra.mxu0 0.0
    %1719 = vmatprep.subr.mxu0 0.0
    %1720 = vmatpush1.msra.mxu0 0.0
    %1721 = vmatprep.subr.mxu0 0.0
    %1722 = vmatpush1.msra.mxu0 0.0
    %1723 = vmatprep.subr.mxu0 0.0
    %1724 = vmatpush1.msra.mxu0 0.0
    %1725 = vmatprep.subr.mxu0 0.0
    %1726 = vmatpush1.msra.mxu0 0.0
    %1727 = vmatprep.subr.mxu0 0.0
    %1728 = vmatpush1.msra.mxu0 0.0
    %1729 = vmatprep.subr.mxu0 0.0
    %1730 = vmatpush1.msra.mxu0 0.0
    %1731 = vmatprep.subr.mxu0 0.0
    %1732 = vmatpush1.msra.mxu0 0.0
    %1733 = vmatprep.subr.mxu0 0.0
    %1734 = vmatpush1.msra.mxu0 0.0
    %1735 = vmatprep.subr.mxu0 0.0
    %1736 = vmatpush1.msra.mxu0 0.0
    %1737 = vmatprep.subr.mxu0 0.0
    %1738 = vmatpush1.msra.mxu0 0.0
    %1739 = vmatprep.subr.mxu0 0.0
    %1740 = vmatpush1.msra.mxu0 0.0
    %1741 = vmatprep.subr.mxu0 0.0
    %1742 = vmatpush1.msra.mxu0 0.0
    %1743 = vmatprep.subr.mxu0 0.0
    %1744 = vmatpush1.msra.mxu0 0.0
    %1745 = vmatprep.subr.mxu0 0.0
    %1746 = vmatpush1.msra.mxu0 0.0
    %1747 = vmatprep.subr.mxu0 0.0
    %1748 = vmatpush1.msra.mxu0 0.0
    %1749 = vmatprep.subr.mxu0 0.0
    %1750 = vmatpush1.msra.mxu0 0.0
    %1751 = vmatprep.subr.mxu0 0.0
    %1752 = vmatpush1.msra.mxu0 0.0
    %1753 = vmatprep.subr.mxu0 0.0
    %1754 = vmatpush1.msra.mxu0 0.0
    %1755 = vmatprep.subr.mxu0 0.0
    %1756 = vmatpush1.msra.mxu0 0.0
    %1757 = vmatprep.subr.mxu0 0.0
    %1758 = vmatpush1.msra.mxu0 0.0
    %1759 = vmatprep.subr.mxu0 0.0
    %1760 = vmatpush1.msra.mxu0 0.0
    %1761 = vmatprep.subr.mxu0 0.0
    %1762 = vmatpush1.msra.mxu0 0.0
    %1763 = vmatprep.subr.mxu0 0.0
    %1764 = vmatpush1.msra.mxu0 0.0
    %1765 = vmatprep.subr.mxu0 0.0
    %1766 = vmatpush1.msra.mxu0 0.0
    %1767 = vmatprep.subr.mxu0 0.0
    %1768 = vmatpush1.msra.mxu0 0.0
    %1769 = vmatprep.subr.mxu0 0.0
    %1770 = vmatpush1.msra.mxu0 0.0
    %1771 = vmatprep.subr.mxu0 0.0
    %1772 = vmatpush1.msra.mxu0 0.0
    %1773 = vmatprep.subr.mxu0 0.0
    %1774 = vmatpush1.msra.mxu0 0.0
    %1775 = vmatprep.mubr.f32.mxu0 0.0
    %1776 = vmatmul.mubr.f32.gmra.mrb[0].mxu0 %v1706
    %v1777 = vpop.f32.mrb[0].mxu0
    %v1778 = vadd.f32 0.0, %v1777
    %v1779 = vpop.f32.mrb[0].mxu0
    %1780 = vmatprep.mubr.f32.mxu0 0.0
    %1781 = vmatmul.mubr.f32.gmra.mrb[0].mxu0 %v1709
    %v1782 = vpop.f32.mrb[0].mxu0
    %v1783 = vadd.f32 0.0, %v1782
    %v1784 = vpop.f32.mrb[0].mxu0
    %1785 = vdwg.mxu0
    %v1787 = vsel %vm460, %v1375, 0
    %v1790 = vsel %vm460, %v1376, 0
    %1792 = vmatprep.subr.mxu0 0.0
    %1793 = vmatpush1.msra.mxu0 %v432
    %1794 = vmatprep.subr.mxu0 0.0
    %1795 = vmatpush1.msra.mxu0 %v437
    %1796 = vmatprep.subr.mxu0 0.0
    %1797 = vmatpush1.msra.mxu0 0.0
    %1798 = vmatprep.subr.mxu0 0.0
    %1799 = vmatpush1.msra.mxu0 0.0
    %1800 = vmatprep.subr.mxu0 0.0
    %1801 = vmatpush1.msra.mxu0 0.0
    %1802 = vmatprep.subr.mxu0 0.0
    %1803 = vmatpush1.msra.mxu0 0.0
    %1804 = vmatprep.subr.mxu0 0.0
    %1805 = vmatpush1.msra.mxu0 0.0
    %1806 = vmatprep.subr.mxu0 0.0
    %1807 = vmatpush1.msra.mxu0 0.0
    %1808 = vmatprep.subr.mxu0 0.0
    %1809 = vmatpush1.msra.mxu0 0.0
    %1810 = vmatprep.subr.mxu0 0.0
    %1811 = vmatpush1.msra.mxu0 0.0
    %1812 = vmatprep.subr.mxu0 0.0
    %1813 = vmatpush1.msra.mxu0 0.0
    %1814 = vmatprep.subr.mxu0 0.0
    %1815 = vmatpush1.msra.mxu0 0.0
    %1816 = vmatprep.subr.mxu0 0.0
    %1817 = vmatpush1.msra.mxu0 0.0
    %1818 = vmatprep.subr.mxu0 0.0
    %1819 = vmatpush1.msra.mxu0 0.0
    %1820 = vmatprep.subr.mxu0 0.0
    %1821 = vmatpush1.msra.mxu0 0.0
    %1822 = vmatprep.subr.mxu0 0.0
    %1823 = vmatpush1.msra.mxu0 0.0
    %1824 = vmatprep.subr.mxu0 0.0
    %1825 = vmatpush1.msra.mxu0 0.0
    %1826 = vmatprep.subr.mxu0 0.0
    %1827 = vmatpush1.msra.mxu0 0.0
    %1828 = vmatprep.subr.mxu0 0.0
    %1829 = vmatpush1.msra.mxu0 0.0
    %1830 = vmatprep.subr.mxu0 0.0
    %1831 = vmatpush1.msra.mxu0 0.0
    %1832 = vmatprep.subr.mxu0 0.0
    %1833 = vmatpush1.msra.mxu0 0.0
    %1834 = vmatprep.subr.mxu0 0.0
    %1835 = vmatpush1.msra.mxu0 0.0
    %1836 = vmatprep.subr.mxu0 0.0
    %1837 = vmatpush1.msra.mxu0 0.0
    %1838 = vmatprep.subr.mxu0 0.0
    %1839 = vmatpush1.msra.mxu0 0.0
    %1840 = vmatprep.subr.mxu0 0.0
    %1841 = vmatpush1.msra.mxu0 0.0
    %1842 = vmatprep.subr.mxu0 0.0
    %1843 = vmatpush1.msra.mxu0 0.0
    %1844 = vmatprep.subr.mxu0 0.0
    %1845 = vmatpush1.msra.mxu0 0.0
    %1846 = vmatprep.subr.mxu0 0.0
    %1847 = vmatpush1.msra.mxu0 0.0
    %1848 = vmatprep.subr.mxu0 0.0
    %1849 = vmatpush1.msra.mxu0 0.0
    %1850 = vmatprep.subr.mxu0 0.0
    %1851 = vmatpush1.msra.mxu0 0.0
    %1852 = vmatprep.subr.mxu0 0.0
    %1853 = vmatpush1.msra.mxu0 0.0
    %1854 = vmatprep.subr.mxu0 0.0
    %1855 = vmatpush1.msra.mxu0 0.0
    %1856 = vmatprep.mubr.f32.mxu0 0.0
    %1857 = vmatmul.mubr.f32.gmra.mrb[0].mxu0 %v1787
    %v1858 = vpop.f32.mrb[0].mxu0
    %v1859 = vadd.f32 0.0, %v1858
    %v1860 = vpop.f32.mrb[0].mxu0
    %1861 = vmatprep.mubr.f32.mxu0 0.0
    %1862 = vmatmul.mubr.f32.gmra.mrb[0].mxu0 %v1790
    %v1863 = vpop.f32.mrb[0].mxu0
    %v1864 = vadd.f32 0.0, %v1863
    %v1865 = vpop.f32.mrb[0].mxu0
    %1866 = vdwg.mxu0
    %v1868 = vsel %vm460, %v1377, 0
    %v1871 = vsel %vm460, %v1378, 0
    %1873 = vmatprep.subr.mxu0 0.0
    %1874 = vmatpush1.msra.mxu0 %v442
    %1875 = vmatprep.subr.mxu0 0.0
    %1876 = vmatpush1.msra.mxu0 %v447
    %1877 = vmatprep.subr.mxu0 0.0
    %1878 = vmatpush1.msra.mxu0 0.0
    %1879 = vmatprep.subr.mxu0 0.0
    %1880 = vmatpush1.msra.mxu0 0.0
    %1881 = vmatprep.subr.mxu0 0.0
    %1882 = vmatpush1.msra.mxu0 0.0
    %1883 = vmatprep.subr.mxu0 0.0
    %1884 = vmatpush1.msra.mxu0 0.0
    %1885 = vmatprep.subr.mxu0 0.0
    %1886 = vmatpush1.msra.mxu0 0.0
    %1887 = vmatprep.subr.mxu0 0.0
    %1888 = vmatpush1.msra.mxu0 0.0
    %1889 = vmatprep.subr.mxu0 0.0
    %1890 = vmatpush1.msra.mxu0 0.0
    %1891 = vmatprep.subr.mxu0 0.0
    %1892 = vmatpush1.msra.mxu0 0.0
    %1893 = vmatprep.subr.mxu0 0.0
    %1894 = vmatpush1.msra.mxu0 0.0
    %1895 = vmatprep.subr.mxu0 0.0
    %1896 = vmatpush1.msra.mxu0 0.0
    %1897 = vmatprep.subr.mxu0 0.0
    %1898 = vmatpush1.msra.mxu0 0.0
    %1899 = vmatprep.subr.mxu0 0.0
    %1900 = vmatpush1.msra.mxu0 0.0
    %1901 = vmatprep.subr.mxu0 0.0
    %1902 = vmatpush1.msra.mxu0 0.0
    %1903 = vmatprep.subr.mxu0 0.0
    %1904 = vmatpush1.msra.mxu0 0.0
    %1905 = vmatprep.subr.mxu0 0.0
    %1906 = vmatpush1.msra.mxu0 0.0
    %1907 = vmatprep.subr.mxu0 0.0
    %1908 = vmatpush1.msra.mxu0 0.0
    %1909 = vmatprep.subr.mxu0 0.0
    %1910 = vmatpush1.msra.mxu0 0.0
    %1911 = vmatprep.subr.mxu0 0.0
    %1912 = vmatpush1.msra.mxu0 0.0
    %1913 = vmatprep.subr.mxu0 0.0
    %1914 = vmatpush1.msra.mxu0 0.0
    %1915 = vmatprep.subr.mxu0 0.0
    %1916 = vmatpush1.msra.mxu0 0.0
    %1917 = vmatprep.subr.mxu0 0.0
    %1918 = vmatpush1.msra.mxu0 0.0
    %1919 = vmatprep.subr.mxu0 0.0
    %1920 = vmatpush1.msra.mxu0 0.0
    %1921 = vmatprep.subr.mxu0 0.0
    %1922 = vmatpush1.msra.mxu0 0.0
    %1923 = vmatprep.subr.mxu0 0.0
    %1924 = vmatpush1.msra.mxu0 0.0
    %1925 = vmatprep.subr.mxu0 0.0
    %1926 = vmatpush1.msra.mxu0 0.0
    %1927 = vmatprep.subr.mxu0 0.0
    %1928 = vmatpush1.msra.mxu0 0.0
    %1929 = vmatprep.subr.mxu0 0.0
    %1930 = vmatpush1.msra.mxu0 0.0
    %1931 = vmatprep.subr.mxu0 0.0
    %1932 = vmatpush1.msra.mxu0 0.0
    %1933 = vmatprep.subr.mxu0 0.0
    %1934 = vmatpush1.msra.mxu0 0.0
    %1935 = vmatprep.subr.mxu0 0.0
    %1936 = vmatpush1.msra.mxu0 0.0
    %1937 = vmatprep.mubr.f32.mxu0 0.0
    %1938 = vmatmul.mubr.f32.gmra.mrb[0].mxu0 %v1868
    %v1939 = vpop.f32.mrb[0].mxu0
    %v1940 = vadd.f32 0.0, %v1939
    %v1941 = vpop.f32.mrb[0].mxu0
    %1942 = vmatprep.mubr.f32.mxu0 0.0
    %1943 = vmatmul.mubr.f32.gmra.mrb[0].mxu0 %v1871
    %v1944 = vpop.f32.mrb[0].mxu0
    %v1945 = vadd.f32 0.0, %v1944
    %v1946 = vpop.f32.mrb[0].mxu0
    %1947 = vdwg.mxu0
    %v1949 = vsel %vm460, %v1379, 0
    %v1952 = vsel %vm460, %v1380, 0
    %1954 = vmatprep.subr.mxu0 0.0
    %1955 = vmatpush1.msra.mxu0 %v452
    %1956 = vmatprep.subr.mxu0 0.0
    %1957 = vmatpush1.msra.mxu0 %v457
    %1958 = vmatprep.subr.mxu0 0.0
    %1959 = vmatpush1.msra.mxu0 0.0
    %1960 = vmatprep.subr.mxu0 0.0
    %1961 = vmatpush1.msra.mxu0 0.0
    %1962 = vmatprep.subr.mxu0 0.0
    %1963 = vmatpush1.msra.mxu0 0.0
    %1964 = vmatprep.subr.mxu0 0.0
    %1965 = vmatpush1.msra.mxu0 0.0
    %1966 = vmatprep.subr.mxu0 0.0
    %1967 = vmatpush1.msra.mxu0 0.0
    %1968 = vmatprep.subr.mxu0 0.0
    %1969 = vmatpush1.msra.mxu0 0.0
    %1970 = vmatprep.subr.mxu0 0.0
    %1971 = vmatpush1.msra.mxu0 0.0
    %1972 = vmatprep.subr.mxu0 0.0
    %1973 = vmatpush1.msra.mxu0 0.0
    %1974 = vmatprep.subr.mxu0 0.0
    %1975 = vmatpush1.msra.mxu0 0.0
    %1976 = vmatprep.subr.mxu0 0.0
    %1977 = vmatpush1.msra.mxu0 0.0
    %1978 = vmatprep.subr.mxu0 0.0
    %1979 = vmatpush1.msra.mxu0 0.0
    %1980 = vmatprep.subr.mxu0 0.0
    %1981 = vmatpush1.msra.mxu0 0.0
    %1982 = vmatprep.subr.mxu0 0.0
    %1983 = vmatpush1.msra.mxu0 0.0
    %1984 = vmatprep.subr.mxu0 0.0
    %1985 = vmatpush1.msra.mxu0 0.0
    %1986 = vmatprep.subr.mxu0 0.0
    %1987 = vmatpush1.msra.mxu0 0.0
    %1988 = vmatprep.subr.mxu0 0.0
    %1989 = vmatpush1.msra.mxu0 0.0
    %1990 = vmatprep.subr.mxu0 0.0
    %1991 = vmatpush1.msra.mxu0 0.0
    %1992 = vmatprep.subr.mxu0 0.0
    %1993 = vmatpush1.msra.mxu0 0.0
    %1994 = vmatprep.subr.mxu0 0.0
    %1995 = vmatpush1.msra.mxu0 0.0
    %1996 = vmatprep.subr.mxu0 0.0
    %1997 = vmatpush1.msra.mxu0 0.0
    %1998 = vmatprep.subr.mxu0 0.0
    %1999 = vmatpush1.msra.mxu0 0.0
    %2000 = vmatprep.subr.mxu0 0.0
    %2001 = vmatpush1.msra.mxu0 0.0
    %2002 = vmatprep.subr.mxu0 0.0
    %2003 = vmatpush1.msra.mxu0 0.0
    %2004 = vmatprep.subr.mxu0 0.0
    %2005 = vmatpush1.msra.mxu0 0.0
    %2006 = vmatprep.subr.mxu0 0.0
    %2007 = vmatpush1.msra.mxu0 0.0
    %2008 = vmatprep.subr.mxu0 0.0
    %2009 = vmatpush1.msra.mxu0 0.0
    %2010 = vmatprep.subr.mxu0 0.0
    %2011 = vmatpush1.msra.mxu0 0.0
    %2012 = vmatprep.subr.mxu0 0.0
    %2013 = vmatpush1.msra.mxu0 0.0
    %2014 = vmatprep.subr.mxu0 0.0
    %2015 = vmatpush1.msra.mxu0 0.0
    %2016 = vmatprep.subr.mxu0 0.0
    %2017 = vmatpush1.msra.mxu0 0.0
    %2018 = vmatprep.mubr.f32.mxu0 0.0
    %2019 = vmatmul.mubr.f32.gmra.mrb[0].mxu0 %v1949
    %v2020 = vpop.f32.mrb[0].mxu0
    %v2021 = vadd.f32 0.0, %v2020
    %v2022 = vpop.f32.mrb[0].mxu0
    %2023 = vmatprep.mubr.f32.mxu0 0.0
    %2024 = vmatmul.mubr.f32.gmra.mrb[0].mxu0 %v1952
    %v2025 = vpop.f32.mrb[0].mxu0
    %v2026 = vadd.f32 0.0, %v2025
    %v2027 = vpop.f32.mrb[0].mxu0
    %2028 = vdwg.mxu0
    %v2029 = vld [vmem:[#allocation8] sm:$0xff]
    %v2030 = vld [vmem:[#allocation8 + $0x8] sm:$0xff]
    %v2032 = vsel %vm460, %v1454, 0
    %v2035 = vsel %vm460, %v1459, 0
    %v2038 = vsel %vm460, %v1535, 0
    %v2041 = vsel %vm460, %v1540, 0
    %v2044 = vsel %vm460, %v1616, 0
    %v2047 = vsel %vm460, %v1621, 0
    %v2050 = vsel %vm460, %v1697, 0
    %v2053 = vsel %vm460, %v1702, 0
    %v2056 = vsel %vm460, %v1778, 0
    %v2059 = vsel %vm460, %v1783, 0
    %v2062 = vsel %vm460, %v1859, 0
    %v2065 = vsel %vm460, %v1864, 0
    %v2068 = vsel %vm460, %v1940, 0
    %v2071 = vsel %vm460, %v1945, 0
    %v2074 = vsel %vm460, %v2021, 0
    %v2077 = vsel %vm460, %v2026, 0
    %2079 = vmatprep.subr.mxu0 0.0
    %2080 = vmatpush1.msra.mxu0 %v2029
    %2081 = vmatprep.subr.mxu0 0.0
    %2082 = vmatpush1.msra.mxu0 %v2030
    %2083 = vmatprep.subr.mxu0 0.0
    %2084 = vmatpush1.msra.mxu0 0.0
    %2085 = vmatprep.subr.mxu0 0.0
    %2086 = vmatpush1.msra.mxu0 0.0
    %2087 = vmatprep.subr.mxu0 0.0
    %2088 = vmatpush1.msra.mxu0 0.0
    %2089 = vmatprep.subr.mxu0 0.0
    %2090 = vmatpush1.msra.mxu0 0.0
    %2091 = vmatprep.subr.mxu0 0.0
    %2092 = vmatpush1.msra.mxu0 0.0
    %2093 = vmatprep.subr.mxu0 0.0
    %2094 = vmatpush1.msra.mxu0 0.0
    %2095 = vmatprep.subr.mxu0 0.0
    %2096 = vmatpush1.msra.mxu0 0.0
    %2097 = vmatprep.subr.mxu0 0.0
    %2098 = vmatpush1.msra.mxu0 0.0
    %2099 = vmatprep.subr.mxu0 0.0
    %2100 = vmatpush1.msra.mxu0 0.0
    %2101 = vmatprep.subr.mxu0 0.0
    %2102 = vmatpush1.msra.mxu0 0.0
    %2103 = vmatprep.subr.mxu0 0.0
    %2104 = vmatpush1.msra.mxu0 0.0
    %2105 = vmatprep.subr.mxu0 0.0
    %2106 = vmatpush1.msra.mxu0 0.0
    %2107 = vmatprep.subr.mxu0 0.0
    %2108 = vmatpush1.msra.mxu0 0.0
    %2109 = vmatprep.subr.mxu0 0.0
    %2110 = vmatpush1.msra.mxu0 0.0
    %2111 = vmatprep.subr.mxu0 0.0
    %2112 = vmatpush1.msra.mxu0 0.0
    %2113 = vmatprep.subr.mxu0 0.0
    %2114 = vmatpush1.msra.mxu0 0.0
    %2115 = vmatprep.subr.mxu0 0.0
    %2116 = vmatpush1.msra.mxu0 0.0
    %2117 = vmatprep.subr.mxu0 0.0
    %2118 = vmatpush1.msra.mxu0 0.0
    %2119 = vmatprep.subr.mxu0 0.0
    %2120 = vmatpush1.msra.mxu0 0.0
    %2121 = vmatprep.subr.mxu0 0.0
    %2122 = vmatpush1.msra.mxu0 0.0
    %2123 = vmatprep.subr.mxu0 0.0
    %2124 = vmatpush1.msra.mxu0 0.0
    %2125 = vmatprep.subr.mxu0 0.0
    %2126 = vmatpush1.msra.mxu0 0.0
    %2127 = vmatprep.subr.mxu0 0.0
    %2128 = vmatpush1.msra.mxu0 0.0
    %2129 = vmatprep.subr.mxu0 0.0
    %2130 = vmatpush1.msra.mxu0 0.0
    %2131 = vmatprep.subr.mxu0 0.0
    %2132 = vmatpush1.msra.mxu0 0.0
    %2133 = vmatprep.subr.mxu0 0.0
    %2134 = vmatpush1.msra.mxu0 0.0
    %2135 = vmatprep.subr.mxu0 0.0
    %2136 = vmatpush1.msra.mxu0 0.0
    %2137 = vmatprep.subr.mxu0 0.0
    %2138 = vmatpush1.msra.mxu0 0.0
    %2139 = vmatprep.subr.mxu0 0.0
    %2140 = vmatpush1.msra.mxu0 0.0
    %2141 = vmatprep.subr.mxu0 0.0
    %2142 = vmatpush1.msra.mxu0 0.0
    %2143 = vmatprep.mubr.f32.mxu0 0.0
    %2144 = vmatmul.mubr.f32.gmra.mrb[0].mxu0 %v2032
    %v2145 = vpop.f32.mrb[0].mxu0
    %v2146 = vadd.f32 0.0, %v2145
    %v2147 = vpop.f32.mrb[0].mxu0
    %2148 = vmatprep.mubr.f32.mxu0 0.0
    %2149 = vmatmul.mubr.f32.gmra.mrb[0].mxu0 %v2035
    %v2150 = vpop.f32.mrb[0].mxu0
    %v2151 = vadd.f32 0.0, %v2150
    %v2152 = vpop.f32.mrb[0].mxu0
    %2153 = vmatprep.mubr.f32.mxu0 0.0
    %2154 = vmatmul.mubr.f32.gmra.mrb[0].mxu0 %v2038
    %v2155 = vpop.f32.mrb[0].mxu0
    %v2156 = vadd.f32 0.0, %v2155
    %v2157 = vpop.f32.mrb[0].mxu0
    %2158 = vmatprep.mubr.f32.mxu0 0.0
    %2159 = vmatmul.mubr.f32.gmra.mrb[0].mxu0 %v2041
    %v2160 = vpop.f32.mrb[0].mxu0
    %v2161 = vadd.f32 0.0, %v2160
    %v2162 = vpop.f32.mrb[0].mxu0
    %2163 = vmatprep.mubr.f32.mxu0 0.0
    %2164 = vmatmul.mubr.f32.gmra.mrb[0].mxu0 %v2044
    %v2165 = vpop.f32.mrb[0].mxu0
    %v2166 = vadd.f32 0.0, %v2165
    %v2167 = vpop.f32.mrb[0].mxu0
    %2168 = vmatprep.mubr.f32.mxu0 0.0
    %2169 = vmatmul.mubr.f32.gmra.mrb[0].mxu0 %v2047
    %v2170 = vpop.f32.mrb[0].mxu0
    %v2171 = vadd.f32 0.0, %v2170
    %v2172 = vpop.f32.mrb[0].mxu0
    %2173 = vmatprep.mubr.f32.mxu0 0.0
    %2174 = vmatmul.mubr.f32.gmra.mrb[0].mxu0 %v2050
    %v2175 = vpop.f32.mrb[0].mxu0
    %v2176 = vadd.f32 0.0, %v2175
    %v2177 = vpop.f32.mrb[0].mxu0
    %2178 = vmatprep.mubr.f32.mxu0 0.0
    %2179 = vmatmul.mubr.f32.gmra.mrb[0].mxu0 %v2053
    %v2180 = vpop.f32.mrb[0].mxu0
    %v2181 = vadd.f32 0.0, %v2180
    %v2182 = vpop.f32.mrb[0].mxu0
    %2183 = vmatprep.mubr.f32.mxu0 0.0
    %2184 = vmatmul.mubr.f32.gmra.mrb[0].mxu0 %v2056
    %v2185 = vpop.f32.mrb[0].mxu0
    %v2186 = vadd.f32 0.0, %v2185
    %v2187 = vpop.f32.mrb[0].mxu0
    %2188 = vmatprep.mubr.f32.mxu0 0.0
    %2189 = vmatmul.mubr.f32.gmra.mrb[0].mxu0 %v2059
    %v2190 = vpop.f32.mrb[0].mxu0
    %v2191 = vadd.f32 0.0, %v2190
    %v2192 = vpop.f32.mrb[0].mxu0
    %2193 = vmatprep.mubr.f32.mxu0 0.0
    %2194 = vmatmul.mubr.f32.gmra.mrb[0].mxu0 %v2062
    %v2195 = vpop.f32.mrb[0].mxu0
    %v2196 = vadd.f32 0.0, %v2195
    %v2197 = vpop.f32.mrb[0].mxu0
    %2198 = vmatprep.mubr.f32.mxu0 0.0
    %2199 = vmatmul.mubr.f32.gmra.mrb[0].mxu0 %v2065
    %v2200 = vpop.f32.mrb[0].mxu0
    %v2201 = vadd.f32 0.0, %v2200
    %v2202 = vpop.f32.mrb[0].mxu0
    %2203 = vmatprep.mubr.f32.mxu0 0.0
    %2204 = vmatmul.mubr.f32.gmra.mrb[0].mxu0 %v2068
    %v2205 = vpop.f32.mrb[0].mxu0
    %v2206 = vadd.f32 0.0, %v2205
    %v2207 = vpop.f32.mrb[0].mxu0
    %2208 = vmatprep.mubr.f32.mxu0 0.0
    %2209 = vmatmul.mubr.f32.gmra.mrb[0].mxu0 %v2071
    %v2210 = vpop.f32.mrb[0].mxu0
    %v2211 = vadd.f32 0.0, %v2210
    %v2212 = vpop.f32.mrb[0].mxu0
    %2213 = vmatprep.mubr.f32.mxu0 0.0
    %2214 = vmatmul.mubr.f32.gmra.mrb[0].mxu0 %v2074
    %v2215 = vpop.f32.mrb[0].mxu0
    %v2216 = vadd.f32 0.0, %v2215
    %v2217 = vpop.f32.mrb[0].mxu0
    %2218 = vmatprep.mubr.f32.mxu0 0.0
    %2219 = vmatmul.mubr.f32.gmra.mrb[0].mxu0 %v2077
    %v2220 = vpop.f32.mrb[0].mxu0
    %v2221 = vadd.f32 0.0, %v2220
    %v2222 = vpop.f32.mrb[0].mxu0
    %2223 = vdwg.mxu0
    %v2224 = vadd.f32 %v81, %v2146
    %v2225 = vadd.f32 %v82, %v2151
    %v2226 = vadd.f32 %v83, %v2156
    %v2227 = vadd.f32 %v84, %v2161
    %v2228 = vadd.f32 %v85, %v2166
    %v2229 = vadd.f32 %v86, %v2171
    %v2230 = vadd.f32 %v87, %v2176
    %v2231 = vadd.f32 %v88, %v2181
    %v2232 = vadd.f32 %v89, %v2186
    %v2233 = vadd.f32 %v90, %v2191
    %v2234 = vadd.f32 %v91, %v2196
    %v2235 = vadd.f32 %v92, %v2201
    %v2236 = vadd.f32 %v93, %v2206
    %v2237 = vadd.f32 %v94, %v2211
    %v2238 = vadd.f32 %v95, %v2216
    %v2239 = vadd.f32 %v96, %v2221
    %2240 = vrot.lane.b32.xlu0 %v295, 112
    %v2241 = vpop.permute.xlu0 %2240
    %2242 = vrot.lane.b32.xlu0 %v296, 112
    %v2243 = vpop.permute.xlu0 %2242
    %2244 = vrot.lane.b32.xlu0 %v217, 112
    %v2245 = vpop.permute.xlu0 %2244
    %2246 = vrot.lane.b32.xlu0 %v222, 112
    %v2247 = vpop.permute.xlu0 %2246
    %v2248 = vsel %vm460, %v2241, 0
    %v2250 = vsel %vm460, %v2243, 0
    %v2252 = vsel %vm460, %v2245, 0
    %v2254 = vsel %vm460, %v2247, 0
    %2256 = vmatprep.subr.mxu0 0.0
    %2257 = vmatpush1.xpose.msra.mxu0 %v2252
    %2258 = vmatprep.subr.mxu0 0.0
    %2259 = vmatpush1.xpose.msra.mxu0 %v2254
    %2260 = vmatprep.subr.mxu0 0.0
    %2261 = vmatpush1.xpose.msra.mxu0 0.0
    %2262 = vmatprep.subr.mxu0 0.0
    %2263 = vmatpush1.xpose.msra.mxu0 0.0
    %2264 = vmatprep.subr.mxu0 0.0
    %2265 = vmatpush1.xpose.msra.mxu0 0.0
    %2266 = vmatprep.subr.mxu0 0.0
    %2267 = vmatpush1.xpose.msra.mxu0 0.0
    %2268 = vmatprep.subr.mxu0 0.0
    %2269 = vmatpush1.xpose.msra.mxu0 0.0
    %2270 = vmatprep.subr.mxu0 0.0
    %2271 = vmatpush1.xpose.msra.mxu0 0.0
    %2272 = vmatprep.subr.mxu0 0.0
    %2273 = vmatpush1.xpose.msra.mxu0 0.0
    %2274 = vmatprep.subr.mxu0 0.0
    %2275 = vmatpush1.xpose.msra.mxu0 0.0
    %2276 = vmatprep.subr.mxu0 0.0
    %2277 = vmatpush1.xpose.msra.mxu0 0.0
    %2278 = vmatprep.subr.mxu0 0.0
    %2279 = vmatpush1.xpose.msra.mxu0 0.0
    %2280 = vmatprep.subr.mxu0 0.0
    %2281 = vmatpush1.xpose.msra.mxu0 0.0
    %2282 = vmatprep.subr.mxu0 0.0
    %2283 = vmatpush1.xpose.msra.mxu0 0.0
    %2284 = vmatprep.subr.mxu0 0.0
    %2285 = vmatpush1.xpose.msra.mxu0 0.0
    %2286 = vmatprep.subr.mxu0 0.0
    %2287 = vmatpush1.xpose.msra.mxu0 0.0
    %2288 = vmatprep.subr.mxu0 0.0
    %2289 = vmatpush1.xpose.msra.mxu0 0.0
    %2290 = vmatprep.subr.mxu0 0.0
    %2291 = vmatpush1.xpose.msra.mxu0 0.0
    %2292 = vmatprep.subr.mxu0 0.0
    %2293 = vmatpush1.xpose.msra.mxu0 0.0
    %2294 = vmatprep.subr.mxu0 0.0
    %2295 = vmatpush1.xpose.msra.mxu0 0.0
    %2296 = vmatprep.subr.mxu0 0.0
    %2297 = vmatpush1.xpose.msra.mxu0 0.0
    %2298 = vmatprep.subr.mxu0 0.0
    %2299 = vmatpush1.xpose.msra.mxu0 0.0
    %2300 = vmatprep.subr.mxu0 0.0
    %2301 = vmatpush1.xpose.msra.mxu0 0.0
    %2302 = vmatprep.subr.mxu0 0.0
    %2303 = vmatpush1.xpose.msra.mxu0 0.0
    %2304 = vmatprep.subr.mxu0 0.0
    %2305 = vmatpush1.xpose.msra.mxu0 0.0
    %2306 = vmatprep.subr.mxu0 0.0
    %2307 = vmatpush1.xpose.msra.mxu0 0.0
    %2308 = vmatprep.subr.mxu0 0.0
    %2309 = vmatpush1.xpose.msra.mxu0 0.0
    %2310 = vmatprep.subr.mxu0 0.0
    %2311 = vmatpush1.xpose.msra.mxu0 0.0
    %2312 = vmatprep.subr.mxu0 0.0
    %2313 = vmatpush1.xpose.msra.mxu0 0.0
    %2314 = vmatprep.subr.mxu0 0.0
    %2315 = vmatpush1.xpose.msra.mxu0 0.0
    %2316 = vmatprep.subr.mxu0 0.0
    %2317 = vmatpush1.xpose.msra.mxu0 0.0
    %2318 = vmatprep.subr.mxu0 0.0
    %2319 = vmatpush1.xpose.msra.mxu0 0.0
    %2320 = vmatprep.mubr.f32.mxu0 0.0
    %2321 = vmatmul.mubr.f32.gmra.mrb[0].mxu0 %v2248
    %v2322 = vpop.f32.mrb[0].mxu0
    %v2323 = vadd.f32 0.0, %v2322
    %v2324 = vpop.f32.mrb[0].mxu0
    %2325 = vmatprep.mubr.f32.mxu0 0.0
    %2326 = vmatmul.mubr.f32.gmra.mrb[0].mxu0 %v2250
    %v2327 = vpop.f32.mrb[0].mxu0
    %v2328 = vadd.f32 0.0, %v2327
    %v2329 = vpop.f32.mrb[0].mxu0
    %2330 = vdwg.mxu0
    %2331 = vrot.lane.b32.xlu0 %v297, 112
    %v2332 = vpop.permute.xlu0 %2331
    %2333 = vrot.lane.b32.xlu0 %v298, 112
    %v2334 = vpop.permute.xlu0 %2333
    %2335 = vrot.lane.b32.xlu0 %v227, 112
    %v2336 = vpop.permute.xlu0 %2335
    %2337 = vrot.lane.b32.xlu0 %v232, 112
    %v2338 = vpop.permute.xlu0 %2337
    %v2339 = vsel %vm460, %v2332, 0
    %v2341 = vsel %vm460, %v2334, 0
    %v2343 = vsel %vm460, %v2336, 0
    %v2345 = vsel %vm460, %v2338, 0
    %2347 = vmatprep.subr.mxu0 0.0
    %2348 = vmatpush1.xpose.msra.mxu0 %v2343
    %2349 = vmatprep.subr.mxu0 0.0
    %2350 = vmatpush1.xpose.msra.mxu0 %v2345
    %2351 = vmatprep.subr.mxu0 0.0
    %2352 = vmatpush1.xpose.msra.mxu0 0.0
    %2353 = vmatprep.subr.mxu0 0.0
    %2354 = vmatpush1.xpose.msra.mxu0 0.0
    %2355 = vmatprep.subr.mxu0 0.0
    %2356 = vmatpush1.xpose.msra.mxu0 0.0
    %2357 = vmatprep.subr.mxu0 0.0
    %2358 = vmatpush1.xpose.msra.mxu0 0.0
    %2359 = vmatprep.subr.mxu0 0.0
    %2360 = vmatpush1.xpose.msra.mxu0 0.0
    %2361 = vmatprep.subr.mxu0 0.0
    %2362 = vmatpush1.xpose.msra.mxu0 0.0
    %2363 = vmatprep.subr.mxu0 0.0
    %2364 = vmatpush1.xpose.msra.mxu0 0.0
    %2365 = vmatprep.subr.mxu0 0.0
    %2366 = vmatpush1.xpose.msra.mxu0 0.0
    %2367 = vmatprep.subr.mxu0 0.0
    %2368 = vmatpush1.xpose.msra.mxu0 0.0
    %2369 = vmatprep.subr.mxu0 0.0
    %2370 = vmatpush1.xpose.msra.mxu0 0.0
    %2371 = vmatprep.subr.mxu0 0.0
    %2372 = vmatpush1.xpose.msra.mxu0 0.0
    %2373 = vmatprep.subr.mxu0 0.0
    %2374 = vmatpush1.xpose.msra.mxu0 0.0
    %2375 = vmatprep.subr.mxu0 0.0
    %2376 = vmatpush1.xpose.msra.mxu0 0.0
    %2377 = vmatprep.subr.mxu0 0.0
    %2378 = vmatpush1.xpose.msra.mxu0 0.0
    %2379 = vmatprep.subr.mxu0 0.0
    %2380 = vmatpush1.xpose.msra.mxu0 0.0
    %2381 = vmatprep.subr.mxu0 0.0
    %2382 = vmatpush1.xpose.msra.mxu0 0.0
    %2383 = vmatprep.subr.mxu0 0.0
    %2384 = vmatpush1.xpose.msra.mxu0 0.0
    %2385 = vmatprep.subr.mxu0 0.0
    %2386 = vmatpush1.xpose.msra.mxu0 0.0
    %2387 = vmatprep.subr.mxu0 0.0
    %2388 = vmatpush1.xpose.msra.mxu0 0.0
    %2389 = vmatprep.subr.mxu0 0.0
    %2390 = vmatpush1.xpose.msra.mxu0 0.0
    %2391 = vmatprep.subr.mxu0 0.0
    %2392 = vmatpush1.xpose.msra.mxu0 0.0
    %2393 = vmatprep.subr.mxu0 0.0
    %2394 = vmatpush1.xpose.msra.mxu0 0.0
    %2395 = vmatprep.subr.mxu0 0.0
    %2396 = vmatpush1.xpose.msra.mxu0 0.0
    %2397 = vmatprep.subr.mxu0 0.0
    %2398 = vmatpush1.xpose.msra.mxu0 0.0
    %2399 = vmatprep.subr.mxu0 0.0
    %2400 = vmatpush1.xpose.msra.mxu0 0.0
    %2401 = vmatprep.subr.mxu0 0.0
    %2402 = vmatpush1.xpose.msra.mxu0 0.0
    %2403 = vmatprep.subr.mxu0 0.0
    %2404 = vmatpush1.xpose.msra.mxu0 0.0
    %2405 = vmatprep.subr.mxu0 0.0
    %2406 = vmatpush1.xpose.msra.mxu0 0.0
    %2407 = vmatprep.subr.mxu0 0.0
    %2408 = vmatpush1.xpose.msra.mxu0 0.0
    %2409 = vmatprep.subr.mxu0 0.0
    %2410 = vmatpush1.xpose.msra.mxu0 0.0
    %2411 = vmatprep.mubr.f32.mxu0 0.0
    %2412 = vmatmul.mubr.f32.gmra.mrb[0].mxu0 %v2339
    %v2413 = vpop.f32.mrb[0].mxu0
    %v2414 = vadd.f32 0.0, %v2413
    %v2415 = vpop.f32.mrb[0].mxu0
    %2416 = vmatprep.mubr.f32.mxu0 0.0
    %2417 = vmatmul.mubr.f32.gmra.mrb[0].mxu0 %v2341
    %v2418 = vpop.f32.mrb[0].mxu0
    %v2419 = vadd.f32 0.0, %v2418
    %v2420 = vpop.f32.mrb[0].mxu0
    %2421 = vdwg.mxu0
    %2422 = vrot.lane.b32.xlu0 %v299, 112
    %v2423 = vpop.permute.xlu0 %2422
    %2424 = vrot.lane.b32.xlu0 %v300, 112
    %v2425 = vpop.permute.xlu0 %2424
    %2426 = vrot.lane.b32.xlu0 %v237, 112
    %v2427 = vpop.permute.xlu0 %2426
    %2428 = vrot.lane.b32.xlu0 %v242, 112
    %v2429 = vpop.permute.xlu0 %2428
    %v2430 = vsel %vm460, %v2423, 0
    %v2432 = vsel %vm460, %v2425, 0
    %v2434 = vsel %vm460, %v2427, 0
    %v2436 = vsel %vm460, %v2429, 0
    %2438 = vmatprep.subr.mxu0 0.0
    %2439 = vmatpush1.xpose.msra.mxu0 %v2434
    %2440 = vmatprep.subr.mxu0 0.0
    %2441 = vmatpush1.xpose.msra.mxu0 %v2436
    %2442 = vmatprep.subr.mxu0 0.0
    %2443 = vmatpush1.xpose.msra.mxu0 0.0
    %2444 = vmatprep.subr.mxu0 0.0
    %2445 = vmatpush1.xpose.msra.mxu0 0.0
    %2446 = vmatprep.subr.mxu0 0.0
    %2447 = vmatpush1.xpose.msra.mxu0 0.0
    %2448 = vmatprep.subr.mxu0 0.0
    %2449 = vmatpush1.xpose.msra.mxu0 0.0
    %2450 = vmatprep.subr.mxu0 0.0
    %2451 = vmatpush1.xpose.msra.mxu0 0.0
    %2452 = vmatprep.subr.mxu0 0.0
    %2453 = vmatpush1.xpose.msra.mxu0 0.0
    %2454 = vmatprep.subr.mxu0 0.0
    %2455 = vmatpush1.xpose.msra.mxu0 0.0
    %2456 = vmatprep.subr.mxu0 0.0
    %2457 = vmatpush1.xpose.msra.mxu0 0.0
    %2458 = vmatprep.subr.mxu0 0.0
    %2459 = vmatpush1.xpose.msra.mxu0 0.0
    %2460 = vmatprep.subr.mxu0 0.0
    %2461 = vmatpush1.xpose.msra.mxu0 0.0
    %2462 = vmatprep.subr.mxu0 0.0
    %2463 = vmatpush1.xpose.msra.mxu0 0.0
    %2464 = vmatprep.subr.mxu0 0.0
    %2465 = vmatpush1.xpose.msra.mxu0 0.0
    %2466 = vmatprep.subr.mxu0 0.0
    %2467 = vmatpush1.xpose.msra.mxu0 0.0
    %2468 = vmatprep.subr.mxu0 0.0
    %2469 = vmatpush1.xpose.msra.mxu0 0.0
    %2470 = vmatprep.subr.mxu0 0.0
    %2471 = vmatpush1.xpose.msra.mxu0 0.0
    %2472 = vmatprep.subr.mxu0 0.0
    %2473 = vmatpush1.xpose.msra.mxu0 0.0
    %2474 = vmatprep.subr.mxu0 0.0
    %2475 = vmatpush1.xpose.msra.mxu0 0.0
    %2476 = vmatprep.subr.mxu0 0.0
    %2477 = vmatpush1.xpose.msra.mxu0 0.0
    %2478 = vmatprep.subr.mxu0 0.0
    %2479 = vmatpush1.xpose.msra.mxu0 0.0
    %2480 = vmatprep.subr.mxu0 0.0
    %2481 = vmatpush1.xpose.msra.mxu0 0.0
    %2482 = vmatprep.subr.mxu0 0.0
    %2483 = vmatpush1.xpose.msra.mxu0 0.0
    %2484 = vmatprep.subr.mxu0 0.0
    %2485 = vmatpush1.xpose.msra.mxu0 0.0
    %2486 = vmatprep.subr.mxu0 0.0
    %2487 = vmatpush1.xpose.msra.mxu0 0.0
    %2488 = vmatprep.subr.mxu0 0.0
    %2489 = vmatpush1.xpose.msra.mxu0 0.0
    %2490 = vmatprep.subr.mxu0 0.0
    %2491 = vmatpush1.xpose.msra.mxu0 0.0
    %2492 = vmatprep.subr.mxu0 0.0
    %2493 = vmatpush1.xpose.msra.mxu0 0.0
    %2494 = vmatprep.subr.mxu0 0.0
    %2495 = vmatpush1.xpose.msra.mxu0 0.0
    %2496 = vmatprep.subr.mxu0 0.0
    %2497 = vmatpush1.xpose.msra.mxu0 0.0
    %2498 = vmatprep.subr.mxu0 0.0
    %2499 = vmatpush1.xpose.msra.mxu0 0.0
    %2500 = vmatprep.subr.mxu0 0.0
    %2501 = vmatpush1.xpose.msra.mxu0 0.0
    %2502 = vmatprep.mubr.f32.mxu0 0.0
    %2503 = vmatmul.mubr.f32.gmra.mrb[0].mxu0 %v2430
    %v2504 = vpop.f32.mrb[0].mxu0
    %v2505 = vadd.f32 0.0, %v2504
    %v2506 = vpop.f32.mrb[0].mxu0
    %2507 = vmatprep.mubr.f32.mxu0 0.0
    %2508 = vmatmul.mubr.f32.gmra.mrb[0].mxu0 %v2432
    %v2509 = vpop.f32.mrb[0].mxu0
    %v2510 = vadd.f32 0.0, %v2509
    %v2511 = vpop.f32.mrb[0].mxu0
    %2512 = vdwg.mxu0
    %2513 = vrot.lane.b32.xlu0 %v301, 112
    %v2514 = vpop.permute.xlu0 %2513
    %2515 = vrot.lane.b32.xlu0 %v302, 112
    %v2516 = vpop.permute.xlu0 %2515
    %2517 = vrot.lane.b32.xlu0 %v247, 112
    %v2518 = vpop.permute.xlu0 %2517
    %2519 = vrot.lane.b32.xlu0 %v252, 112
    %v2520 = vpop.permute.xlu0 %2519
    %v2521 = vsel %vm460, %v2514, 0
    %v2523 = vsel %vm460, %v2516, 0
    %v2525 = vsel %vm460, %v2518, 0
    %v2527 = vsel %vm460, %v2520, 0
    %2529 = vmatprep.subr.mxu0 0.0
    %2530 = vmatpush1.xpose.msra.mxu0 %v2525
    %2531 = vmatprep.subr.mxu0 0.0
    %2532 = vmatpush1.xpose.msra.mxu0 %v2527
    %2533 = vmatprep.subr.mxu0 0.0
    %2534 = vmatpush1.xpose.msra.mxu0 0.0
    %2535 = vmatprep.subr.mxu0 0.0
    %2536 = vmatpush1.xpose.msra.mxu0 0.0
    %2537 = vmatprep.subr.mxu0 0.0
    %2538 = vmatpush1.xpose.msra.mxu0 0.0
    %2539 = vmatprep.subr.mxu0 0.0
    %2540 = vmatpush1.xpose.msra.mxu0 0.0
    %2541 = vmatprep.subr.mxu0 0.0
    %2542 = vmatpush1.xpose.msra.mxu0 0.0
    %2543 = vmatprep.subr.mxu0 0.0
    %2544 = vmatpush1.xpose.msra.mxu0 0.0
    %2545 = vmatprep.subr.mxu0 0.0
    %2546 = vmatpush1.xpose.msra.mxu0 0.0
    %2547 = vmatprep.subr.mxu0 0.0
    %2548 = vmatpush1.xpose.msra.mxu0 0.0
    %2549 = vmatprep.subr.mxu0 0.0
    %2550 = vmatpush1.xpose.msra.mxu0 0.0
    %2551 = vmatprep.subr.mxu0 0.0
    %2552 = vmatpush1.xpose.msra.mxu0 0.0
    %2553 = vmatprep.subr.mxu0 0.0
    %2554 = vmatpush1.xpose.msra.mxu0 0.0
    %2555 = vmatprep.subr.mxu0 0.0
    %2556 = vmatpush1.xpose.msra.mxu0 0.0
    %2557 = vmatprep.subr.mxu0 0.0
    %2558 = vmatpush1.xpose.msra.mxu0 0.0
    %2559 = vmatprep.subr.mxu0 0.0
    %2560 = vmatpush1.xpose.msra.mxu0 0.0
    %2561 = vmatprep.subr.mxu0 0.0
    %2562 = vmatpush1.xpose.msra.mxu0 0.0
    %2563 = vmatprep.subr.mxu0 0.0
    %2564 = vmatpush1.xpose.msra.mxu0 0.0
    %2565 = vmatprep.subr.mxu0 0.0
    %2566 = vmatpush1.xpose.msra.mxu0 0.0
    %2567 = vmatprep.subr.mxu0 0.0
    %2568 = vmatpush1.xpose.msra.mxu0 0.0
    %2569 = vmatprep.subr.mxu0 0.0
    %2570 = vmatpush1.xpose.msra.mxu0 0.0
    %2571 = vmatprep.subr.mxu0 0.0
    %2572 = vmatpush1.xpose.msra.mxu0 0.0
    %2573 = vmatprep.subr.mxu0 0.0
    %2574 = vmatpush1.xpose.msra.mxu0 0.0
    %2575 = vmatprep.subr.mxu0 0.0
    %2576 = vmatpush1.xpose.msra.mxu0 0.0
    %2577 = vmatprep.subr.mxu0 0.0
    %2578 = vmatpush1.xpose.msra.mxu0 0.0
    %2579 = vmatprep.subr.mxu0 0.0
    %2580 = vmatpush1.xpose.msra.mxu0 0.0
    %2581 = vmatprep.subr.mxu0 0.0
    %2582 = vmatpush1.xpose.msra.mxu0 0.0
    %2583 = vmatprep.subr.mxu0 0.0
    %2584 = vmatpush1.xpose.msra.mxu0 0.0
    %2585 = vmatprep.subr.mxu0 0.0
    %2586 = vmatpush1.xpose.msra.mxu0 0.0
    %2587 = vmatprep.subr.mxu0 0.0
    %2588 = vmatpush1.xpose.msra.mxu0 0.0
    %2589 = vmatprep.subr.mxu0 0.0
    %2590 = vmatpush1.xpose.msra.mxu0 0.0
    %2591 = vmatprep.subr.mxu0 0.0
    %2592 = vmatpush1.xpose.msra.mxu0 0.0
    %2593 = vmatprep.mubr.f32.mxu0 0.0
    %2594 = vmatmul.mubr.f32.gmra.mrb[0].mxu0 %v2521
    %v2595 = vpop.f32.mrb[0].mxu0
    %v2596 = vadd.f32 0.0, %v2595
    %v2597 = vpop.f32.mrb[0].mxu0
    %2598 = vmatprep.mubr.f32.mxu0 0.0
    %2599 = vmatmul.mubr.f32.gmra.mrb[0].mxu0 %v2523
    %v2600 = vpop.f32.mrb[0].mxu0
    %v2601 = vadd.f32 0.0, %v2600
    %v2602 = vpop.f32.mrb[0].mxu0
    %2603 = vdwg.mxu0
    %2604 = vrot.lane.b32.xlu0 %v303, 112
    %v2605 = vpop.permute.xlu0 %2604
    %2606 = vrot.lane.b32.xlu0 %v304, 112
    %v2607 = vpop.permute.xlu0 %2606
    %2608 = vrot.lane.b32.xlu0 %v257, 112
    %v2609 = vpop.permute.xlu0 %2608
    %2610 = vrot.lane.b32.xlu0 %v262, 112
    %v2611 = vpop.permute.xlu0 %2610
    %v2612 = vsel %vm460, %v2605, 0
    %v2614 = vsel %vm460, %v2607, 0
    %v2616 = vsel %vm460, %v2609, 0
    %v2618 = vsel %vm460, %v2611, 0
    %2620 = vmatprep.subr.mxu0 0.0
    %2621 = vmatpush1.xpose.msra.mxu0 %v2616
    %2622 = vmatprep.subr.mxu0 0.0
    %2623 = vmatpush1.xpose.msra.mxu0 %v2618
    %2624 = vmatprep.subr.mxu0 0.0
    %2625 = vmatpush1.xpose.msra.mxu0 0.0
    %2626 = vmatprep.subr.mxu0 0.0
    %2627 = vmatpush1.xpose.msra.mxu0 0.0
    %2628 = vmatprep.subr.mxu0 0.0
    %2629 = vmatpush1.xpose.msra.mxu0 0.0
    %2630 = vmatprep.subr.mxu0 0.0
    %2631 = vmatpush1.xpose.msra.mxu0 0.0
    %2632 = vmatprep.subr.mxu0 0.0
    %2633 = vmatpush1.xpose.msra.mxu0 0.0
    %2634 = vmatprep.subr.mxu0 0.0
    %2635 = vmatpush1.xpose.msra.mxu0 0.0
    %2636 = vmatprep.subr.mxu0 0.0
    %2637 = vmatpush1.xpose.msra.mxu0 0.0
    %2638 = vmatprep.subr.mxu0 0.0
    %2639 = vmatpush1.xpose.msra.mxu0 0.0
    %2640 = vmatprep.subr.mxu0 0.0
    %2641 = vmatpush1.xpose.msra.mxu0 0.0
    %2642 = vmatprep.subr.mxu0 0.0
    %2643 = vmatpush1.xpose.msra.mxu0 0.0
    %2644 = vmatprep.subr.mxu0 0.0
    %2645 = vmatpush1.xpose.msra.mxu0 0.0
    %2646 = vmatprep.subr.mxu0 0.0
    %2647 = vmatpush1.xpose.msra.mxu0 0.0
    %2648 = vmatprep.subr.mxu0 0.0
    %2649 = vmatpush1.xpose.msra.mxu0 0.0
    %2650 = vmatprep.subr.mxu0 0.0
    %2651 = vmatpush1.xpose.msra.mxu0 0.0
    %2652 = vmatprep.subr.mxu0 0.0
    %2653 = vmatpush1.xpose.msra.mxu0 0.0
    %2654 = vmatprep.subr.mxu0 0.0
    %2655 = vmatpush1.xpose.msra.mxu0 0.0
    %2656 = vmatprep.subr.mxu0 0.0
    %2657 = vmatpush1.xpose.msra.mxu0 0.0
    %2658 = vmatprep.subr.mxu0 0.0
    %2659 = vmatpush1.xpose.msra.mxu0 0.0
    %2660 = vmatprep.subr.mxu0 0.0
    %2661 = vmatpush1.xpose.msra.mxu0 0.0
    %2662 = vmatprep.subr.mxu0 0.0
    %2663 = vmatpush1.xpose.msra.mxu0 0.0
    %2664 = vmatprep.subr.mxu0 0.0
    %2665 = vmatpush1.xpose.msra.mxu0 0.0
    %2666 = vmatprep.subr.mxu0 0.0
    %2667 = vmatpush1.xpose.msra.mxu0 0.0
    %2668 = vmatprep.subr.mxu0 0.0
    %2669 = vmatpush1.xpose.msra.mxu0 0.0
    %2670 = vmatprep.subr.mxu0 0.0
    %2671 = vmatpush1.xpose.msra.mxu0 0.0
    %2672 = vmatprep.subr.mxu0 0.0
    %2673 = vmatpush1.xpose.msra.mxu0 0.0
    %2674 = vmatprep.subr.mxu0 0.0
    %2675 = vmatpush1.xpose.msra.mxu0 0.0
    %2676 = vmatprep.subr.mxu0 0.0
    %2677 = vmatpush1.xpose.msra.mxu0 0.0
    %2678 = vmatprep.subr.mxu0 0.0
    %2679 = vmatpush1.xpose.msra.mxu0 0.0
    %2680 = vmatprep.subr.mxu0 0.0
    %2681 = vmatpush1.xpose.msra.mxu0 0.0
    %2682 = vmatprep.subr.mxu0 0.0
    %2683 = vmatpush1.xpose.msra.mxu0 0.0
    %2684 = vmatprep.mubr.f32.mxu0 0.0
    %2685 = vmatmul.mubr.f32.gmra.mrb[0].mxu0 %v2612
    %v2686 = vpop.f32.mrb[0].mxu0
    %v2687 = vadd.f32 0.0, %v2686
    %v2688 = vpop.f32.mrb[0].mxu0
    %2689 = vmatprep.mubr.f32.mxu0 0.0
    %2690 = vmatmul.mubr.f32.gmra.mrb[0].mxu0 %v2614
    %v2691 = vpop.f32.mrb[0].mxu0
    %v2692 = vadd.f32 0.0, %v2691
    %v2693 = vpop.f32.mrb[0].mxu0
    %2694 = vdwg.mxu0
    %2695 = vrot.lane.b32.xlu0 %v305, 112
    %v2696 = vpop.permute.xlu0 %2695
    %2697 = vrot.lane.b32.xlu0 %v306, 112
    %v2698 = vpop.permute.xlu0 %2697
    %2699 = vrot.lane.b32.xlu0 %v267, 112
    %v2700 = vpop.permute.xlu0 %2699
    %2701 = vrot.lane.b32.xlu0 %v272, 112
    %v2702 = vpop.permute.xlu0 %2701
    %v2703 = vsel %vm460, %v2696, 0
    %v2705 = vsel %vm460, %v2698, 0
    %v2707 = vsel %vm460, %v2700, 0
    %v2709 = vsel %vm460, %v2702, 0
    %2711 = vmatprep.subr.mxu0 0.0
    %2712 = vmatpush1.xpose.msra.mxu0 %v2707
    %2713 = vmatprep.subr.mxu0 0.0
    %2714 = vmatpush1.xpose.msra.mxu0 %v2709
    %2715 = vmatprep.subr.mxu0 0.0
    %2716 = vmatpush1.xpose.msra.mxu0 0.0
    %2717 = vmatprep.subr.mxu0 0.0
    %2718 = vmatpush1.xpose.msra.mxu0 0.0
    %2719 = vmatprep.subr.mxu0 0.0
    %2720 = vmatpush1.xpose.msra.mxu0 0.0
    %2721 = vmatprep.subr.mxu0 0.0
    %2722 = vmatpush1.xpose.msra.mxu0 0.0
    %2723 = vmatprep.subr.mxu0 0.0
    %2724 = vmatpush1.xpose.msra.mxu0 0.0
    %2725 = vmatprep.subr.mxu0 0.0
    %2726 = vmatpush1.xpose.msra.mxu0 0.0
    %2727 = vmatprep.subr.mxu0 0.0
    %2728 = vmatpush1.xpose.msra.mxu0 0.0
    %2729 = vmatprep.subr.mxu0 0.0
    %2730 = vmatpush1.xpose.msra.mxu0 0.0
    %2731 = vmatprep.subr.mxu0 0.0
    %2732 = vmatpush1.xpose.msra.mxu0 0.0
    %2733 = vmatprep.subr.mxu0 0.0
    %2734 = vmatpush1.xpose.msra.mxu0 0.0
    %2735 = vmatprep.subr.mxu0 0.0
    %2736 = vmatpush1.xpose.msra.mxu0 0.0
    %2737 = vmatprep.subr.mxu0 0.0
    %2738 = vmatpush1.xpose.msra.mxu0 0.0
    %2739 = vmatprep.subr.mxu0 0.0
    %2740 = vmatpush1.xpose.msra.mxu0 0.0
    %2741 = vmatprep.subr.mxu0 0.0
    %2742 = vmatpush1.xpose.msra.mxu0 0.0
    %2743 = vmatprep.subr.mxu0 0.0
    %2744 = vmatpush1.xpose.msra.mxu0 0.0
    %2745 = vmatprep.subr.mxu0 0.0
    %2746 = vmatpush1.xpose.msra.mxu0 0.0
    %2747 = vmatprep.subr.mxu0 0.0
    %2748 = vmatpush1.xpose.msra.mxu0 0.0
    %2749 = vmatprep.subr.mxu0 0.0
    %2750 = vmatpush1.xpose.msra.mxu0 0.0
    %2751 = vmatprep.subr.mxu0 0.0
    %2752 = vmatpush1.xpose.msra.mxu0 0.0
    %2753 = vmatprep.subr.mxu0 0.0
    %2754 = vmatpush1.xpose.msra.mxu0 0.0
    %2755 = vmatprep.subr.mxu0 0.0
    %2756 = vmatpush1.xpose.msra.mxu0 0.0
    %2757 = vmatprep.subr.mxu0 0.0
    %2758 = vmatpush1.xpose.msra.mxu0 0.0
    %2759 = vmatprep.subr.mxu0 0.0
    %2760 = vmatpush1.xpose.msra.mxu0 0.0
    %2761 = vmatprep.subr.mxu0 0.0
    %2762 = vmatpush1.xpose.msra.mxu0 0.0
    %2763 = vmatprep.subr.mxu0 0.0
    %2764 = vmatpush1.xpose.msra.mxu0 0.0
    %2765 = vmatprep.subr.mxu0 0.0
    %2766 = vmatpush1.xpose.msra.mxu0 0.0
    %2767 = vmatprep.subr.mxu0 0.0
    %2768 = vmatpush1.xpose.msra.mxu0 0.0
    %2769 = vmatprep.subr.mxu0 0.0
    %2770 = vmatpush1.xpose.msra.mxu0 0.0
    %2771 = vmatprep.subr.mxu0 0.0
    %2772 = vmatpush1.xpose.msra.mxu0 0.0
    %2773 = vmatprep.subr.mxu0 0.0
    %2774 = vmatpush1.xpose.msra.mxu0 0.0
    %2775 = vmatprep.mubr.f32.mxu0 0.0
    %2776 = vmatmul.mubr.f32.gmra.mrb[0].mxu0 %v2703
    %v2777 = vpop.f32.mrb[0].mxu0
    %v2778 = vadd.f32 0.0, %v2777
    %v2779 = vpop.f32.mrb[0].mxu0
    %2780 = vmatprep.mubr.f32.mxu0 0.0
    %2781 = vmatmul.mubr.f32.gmra.mrb[0].mxu0 %v2705
    %v2782 = vpop.f32.mrb[0].mxu0
    %v2783 = vadd.f32 0.0, %v2782
    %v2784 = vpop.f32.mrb[0].mxu0
    %2785 = vdwg.mxu0
    %2786 = vrot.lane.b32.xlu0 %v307, 112
    %v2787 = vpop.permute.xlu0 %2786
    %2788 = vrot.lane.b32.xlu0 %v308, 112
    %v2789 = vpop.permute.xlu0 %2788
    %2790 = vrot.lane.b32.xlu0 %v277, 112
    %v2791 = vpop.permute.xlu0 %2790
    %2792 = vrot.lane.b32.xlu0 %v282, 112
    %v2793 = vpop.permute.xlu0 %2792
    %v2794 = vsel %vm460, %v2787, 0
    %v2796 = vsel %vm460, %v2789, 0
    %v2798 = vsel %vm460, %v2791, 0
    %v2800 = vsel %vm460, %v2793, 0
    %2802 = vmatprep.subr.mxu0 0.0
    %2803 = vmatpush1.xpose.msra.mxu0 %v2798
    %2804 = vmatprep.subr.mxu0 0.0
    %2805 = vmatpush1.xpose.msra.mxu0 %v2800
    %2806 = vmatprep.subr.mxu0 0.0
    %2807 = vmatpush1.xpose.msra.mxu0 0.0
    %2808 = vmatprep.subr.mxu0 0.0
    %2809 = vmatpush1.xpose.msra.mxu0 0.0
    %2810 = vmatprep.subr.mxu0 0.0
    %2811 = vmatpush1.xpose.msra.mxu0 0.0
    %2812 = vmatprep.subr.mxu0 0.0
    %2813 = vmatpush1.xpose.msra.mxu0 0.0
    %2814 = vmatprep.subr.mxu0 0.0
    %2815 = vmatpush1.xpose.msra.mxu0 0.0
    %2816 = vmatprep.subr.mxu0 0.0
    %2817 = vmatpush1.xpose.msra.mxu0 0.0
    %2818 = vmatprep.subr.mxu0 0.0
    %2819 = vmatpush1.xpose.msra.mxu0 0.0
    %2820 = vmatprep.subr.mxu0 0.0
    %2821 = vmatpush1.xpose.msra.mxu0 0.0
    %2822 = vmatprep.subr.mxu0 0.0
    %2823 = vmatpush1.xpose.msra.mxu0 0.0
    %2824 = vmatprep.subr.mxu0 0.0
    %2825 = vmatpush1.xpose.msra.mxu0 0.0
    %2826 = vmatprep.subr.mxu0 0.0
    %2827 = vmatpush1.xpose.msra.mxu0 0.0
    %2828 = vmatprep.subr.mxu0 0.0
    %2829 = vmatpush1.xpose.msra.mxu0 0.0
    %2830 = vmatprep.subr.mxu0 0.0
    %2831 = vmatpush1.xpose.msra.mxu0 0.0
    %2832 = vmatprep.subr.mxu0 0.0
    %2833 = vmatpush1.xpose.msra.mxu0 0.0
    %2834 = vmatprep.subr.mxu0 0.0
    %2835 = vmatpush1.xpose.msra.mxu0 0.0
    %2836 = vmatprep.subr.mxu0 0.0
    %2837 = vmatpush1.xpose.msra.mxu0 0.0
    %2838 = vmatprep.subr.mxu0 0.0
    %2839 = vmatpush1.xpose.msra.mxu0 0.0
    %2840 = vmatprep.subr.mxu0 0.0
    %2841 = vmatpush1.xpose.msra.mxu0 0.0
    %2842 = vmatprep.subr.mxu0 0.0
    %2843 = vmatpush1.xpose.msra.mxu0 0.0
    %2844 = vmatprep.subr.mxu0 0.0
    %2845 = vmatpush1.xpose.msra.mxu0 0.0
    %2846 = vmatprep.subr.mxu0 0.0
    %2847 = vmatpush1.xpose.msra.mxu0 0.0
    %2848 = vmatprep.subr.mxu0 0.0
    %2849 = vmatpush1.xpose.msra.mxu0 0.0
    %2850 = vmatprep.subr.mxu0 0.0
    %2851 = vmatpush1.xpose.msra.mxu0 0.0
    %2852 = vmatprep.subr.mxu0 0.0
    %2853 = vmatpush1.xpose.msra.mxu0 0.0
    %2854 = vmatprep.subr.mxu0 0.0
    %2855 = vmatpush1.xpose.msra.mxu0 0.0
    %2856 = vmatprep.subr.mxu0 0.0
    %2857 = vmatpush1.xpose.msra.mxu0 0.0
    %2858 = vmatprep.subr.mxu0 0.0
    %2859 = vmatpush1.xpose.msra.mxu0 0.0
    %2860 = vmatprep.subr.mxu0 0.0
    %2861 = vmatpush1.xpose.msra.mxu0 0.0
    %2862 = vmatprep.subr.mxu0 0.0
    %2863 = vmatpush1.xpose.msra.mxu0 0.0
    %2864 = vmatprep.subr.mxu0 0.0
    %2865 = vmatpush1.xpose.msra.mxu0 0.0
    %2866 = vmatprep.mubr.f32.mxu0 0.0
    %2867 = vmatmul.mubr.f32.gmra.mrb[0].mxu0 %v2794
    %v2868 = vpop.f32.mrb[0].mxu0
    %v2869 = vadd.f32 0.0, %v2868
    %v2870 = vpop.f32.mrb[0].mxu0
    %2871 = vmatprep.mubr.f32.mxu0 0.0
    %2872 = vmatmul.mubr.f32.gmra.mrb[0].mxu0 %v2796
    %v2873 = vpop.f32.mrb[0].mxu0
    %v2874 = vadd.f32 0.0, %v2873
    %v2875 = vpop.f32.mrb[0].mxu0
    %2876 = vdwg.mxu0
    %2877 = vrot.lane.b32.xlu0 %v309, 112
    %v2878 = vpop.permute.xlu0 %2877
    %2879 = vrot.lane.b32.xlu0 %v310, 112
    %v2880 = vpop.permute.xlu0 %2879
    %2881 = vrot.lane.b32.xlu0 %v287, 112
    %v2882 = vpop.permute.xlu0 %2881
    %2883 = vrot.lane.b32.xlu0 %v292, 112
    %v2884 = vpop.permute.xlu0 %2883
    %v2885 = vsel %vm460, %v2878, 0
    %v2887 = vsel %vm460, %v2880, 0
    %v2889 = vsel %vm460, %v2882, 0
    %v2891 = vsel %vm460, %v2884, 0
    %2893 = vmatprep.subr.mxu0 0.0
    %2894 = vmatpush1.xpose.msra.mxu0 %v2889
    %2895 = vmatprep.subr.mxu0 0.0
    %2896 = vmatpush1.xpose.msra.mxu0 %v2891
    %2897 = vmatprep.subr.mxu0 0.0
    %2898 = vmatpush1.xpose.msra.mxu0 0.0
    %2899 = vmatprep.subr.mxu0 0.0
    %2900 = vmatpush1.xpose.msra.mxu0 0.0
    %2901 = vmatprep.subr.mxu0 0.0
    %2902 = vmatpush1.xpose.msra.mxu0 0.0
    %2903 = vmatprep.subr.mxu0 0.0
    %2904 = vmatpush1.xpose.msra.mxu0 0.0
    %2905 = vmatprep.subr.mxu0 0.0
    %2906 = vmatpush1.xpose.msra.mxu0 0.0
    %2907 = vmatprep.subr.mxu0 0.0
    %2908 = vmatpush1.xpose.msra.mxu0 0.0
    %2909 = vmatprep.subr.mxu0 0.0
    %2910 = vmatpush1.xpose.msra.mxu0 0.0
    %2911 = vmatprep.subr.mxu0 0.0
    %2912 = vmatpush1.xpose.msra.mxu0 0.0
    %2913 = vmatprep.subr.mxu0 0.0
    %2914 = vmatpush1.xpose.msra.mxu0 0.0
    %2915 = vmatprep.subr.mxu0 0.0
    %2916 = vmatpush1.xpose.msra.mxu0 0.0
    %2917 = vmatprep.subr.mxu0 0.0
    %2918 = vmatpush1.xpose.msra.mxu0 0.0
    %2919 = vmatprep.subr.mxu0 0.0
    %2920 = vmatpush1.xpose.msra.mxu0 0.0
    %2921 = vmatprep.subr.mxu0 0.0
    %2922 = vmatpush1.xpose.msra.mxu0 0.0
    %2923 = vmatprep.subr.mxu0 0.0
    %2924 = vmatpush1.xpose.msra.mxu0 0.0
    %2925 = vmatprep.subr.mxu0 0.0
    %2926 = vmatpush1.xpose.msra.mxu0 0.0
    %2927 = vmatprep.subr.mxu0 0.0
    %2928 = vmatpush1.xpose.msra.mxu0 0.0
    %2929 = vmatprep.subr.mxu0 0.0
    %2930 = vmatpush1.xpose.msra.mxu0 0.0
    %2931 = vmatprep.subr.mxu0 0.0
    %2932 = vmatpush1.xpose.msra.mxu0 0.0
    %2933 = vmatprep.subr.mxu0 0.0
    %2934 = vmatpush1.xpose.msra.mxu0 0.0
    %2935 = vmatprep.subr.mxu0 0.0
    %2936 = vmatpush1.xpose.msra.mxu0 0.0
    %2937 = vmatprep.subr.mxu0 0.0
    %2938 = vmatpush1.xpose.msra.mxu0 0.0
    %2939 = vmatprep.subr.mxu0 0.0
    %2940 = vmatpush1.xpose.msra.mxu0 0.0
    %2941 = vmatprep.subr.mxu0 0.0
    %2942 = vmatpush1.xpose.msra.mxu0 0.0
    %2943 = vmatprep.subr.mxu0 0.0
    %2944 = vmatpush1.xpose.msra.mxu0 0.0
    %2945 = vmatprep.subr.mxu0 0.0
    %2946 = vmatpush1.xpose.msra.mxu0 0.0
    %2947 = vmatprep.subr.mxu0 0.0
    %2948 = vmatpush1.xpose.msra.mxu0 0.0
    %2949 = vmatprep.subr.mxu0 0.0
    %2950 = vmatpush1.xpose.msra.mxu0 0.0
    %2951 = vmatprep.subr.mxu0 0.0
    %2952 = vmatpush1.xpose.msra.mxu0 0.0
    %2953 = vmatprep.subr.mxu0 0.0
    %2954 = vmatpush1.xpose.msra.mxu0 0.0
    %2955 = vmatprep.subr.mxu0 0.0
    %2956 = vmatpush1.xpose.msra.mxu0 0.0
    %2957 = vmatprep.mubr.f32.mxu0 0.0
    %2958 = vmatmul.mubr.f32.gmra.mrb[0].mxu0 %v2885
    %v2959 = vpop.f32.mrb[0].mxu0
    %v2960 = vadd.f32 0.0, %v2959
    %v2961 = vpop.f32.mrb[0].mxu0
    %2962 = vmatprep.mubr.f32.mxu0 0.0
    %2963 = vmatmul.mubr.f32.gmra.mrb[0].mxu0 %v2887
    %v2964 = vpop.f32.mrb[0].mxu0
    %v2965 = vadd.f32 0.0, %v2964
    %v2966 = vpop.f32.mrb[0].mxu0
    %2967 = vdwg.mxu0
    %v2968 = vsel %vm460, %v2323, -inf
    %2969 = vmax.xlane.f32.xlu0 %v2968
    %v2970 = vpop.xlane.xlu0 %2969
    %v2971 = vsel %vm460, %v2328, -inf
    %2972 = vmax.xlane.f32.xlu0 %v2971
    %v2973 = vpop.xlane.xlu0 %2972
    %v2974 = vsel %vm460, %v2414, -inf
    %2975 = vmax.xlane.f32.xlu0 %v2974
    %v2976 = vpop.xlane.xlu0 %2975
    %v2977 = vsel %vm460, %v2419, -inf
    %2978 = vmax.xlane.f32.xlu0 %v2977
    %v2979 = vpop.xlane.xlu0 %2978
    %v2980 = vsel %vm460, %v2505, -inf
    %2981 = vmax.xlane.f32.xlu0 %v2980
    %v2982 = vpop.xlane.xlu0 %2981
    %v2983 = vsel %vm460, %v2510, -inf
    %2984 = vmax.xlane.f32.xlu0 %v2983
    %v2985 = vpop.xlane.xlu0 %2984
    %v2986 = vsel %vm460, %v2596, -inf
    %2987 = vmax.xlane.f32.xlu0 %v2986
    %v2988 = vpop.xlane.xlu0 %2987
    %v2989 = vsel %vm460, %v2601, -inf
    %2990 = vmax.xlane.f32.xlu0 %v2989
    %v2991 = vpop.xlane.xlu0 %2990
    %v2992 = vsel %vm460, %v2687, -inf
    %2993 = vmax.xlane.f32.xlu0 %v2992
    %v2994 = vpop.xlane.xlu0 %2993
    %v2995 = vsel %vm460, %v2692, -inf
    %2996 = vmax.xlane.f32.xlu0 %v2995
    %v2997 = vpop.xlane.xlu0 %2996
    %v2998 = vsel %vm460, %v2778, -inf
    %2999 = vmax.xlane.f32.xlu0 %v2998
    %v3000 = vpop.xlane.xlu0 %2999
    %v3001 = vsel %vm460, %v2783, -inf
    %3002 = vmax.xlane.f32.xlu0 %v3001
    %v3003 = vpop.xlane.xlu0 %3002
    %v3004 = vsel %vm460, %v2869, -inf
    %3005 = vmax.xlane.f32.xlu0 %v3004
    %v3006 = vpop.xlane.xlu0 %3005
    %v3007 = vsel %vm460, %v2874, -inf
    %3008 = vmax.xlane.f32.xlu0 %v3007
    %v3009 = vpop.xlane.xlu0 %3008
    %v3010 = vsel %vm460, %v2960, -inf
    %3011 = vmax.xlane.f32.xlu0 %v3010
    %v3012 = vpop.xlane.xlu0 %3011
    %v3013 = vsel %vm460, %v2965, -inf
    %3014 = vmax.xlane.f32.xlu0 %v3013
    %v3015 = vpop.xlane.xlu0 %3014
    %v3016 = vsub.f32 %v2323, %v2970
    %v3017 = vsub.f32 %v2328, %v2973
    %v3018 = vsub.f32 %v2414, %v2976
    %v3019 = vsub.f32 %v2419, %v2979
    %v3020 = vsub.f32 %v2505, %v2982
    %v3021 = vsub.f32 %v2510, %v2985
    %v3022 = vsub.f32 %v2596, %v2988
    %v3023 = vsub.f32 %v2601, %v2991
    %v3024 = vsub.f32 %v2687, %v2994
    %v3025 = vsub.f32 %v2692, %v2997
    %v3026 = vsub.f32 %v2778, %v3000
    %v3027 = vsub.f32 %v2783, %v3003
    %v3028 = vsub.f32 %v2869, %v3006
    %v3029 = vsub.f32 %v2874, %v3009
    %v3030 = vsub.f32 %v2960, %v3012
    %v3031 = vsub.f32 %v2965, %v3015
    %v3032 = vmul.f32 %v3016, 1.442695
    %v3033 = vpow.pop %v3032
    %v3034 = vmul.f32 %v3017, 1.442695
    %v3035 = vpow.pop %v3034
    %v3036 = vmul.f32 %v3018, 1.442695
    %v3037 = vpow.pop %v3036
    %v3038 = vmul.f32 %v3019, 1.442695
    %v3039 = vpow.pop %v3038
    %v3040 = vmul.f32 %v3020, 1.442695
    %v3041 = vpow.pop %v3040
    %v3042 = vmul.f32 %v3021, 1.442695
    %v3043 = vpow.pop %v3042
    %v3044 = vmul.f32 %v3022, 1.442695
    %v3045 = vpow.pop %v3044
    %v3046 = vmul.f32 %v3023, 1.442695
    %v3047 = vpow.pop %v3046
    %v3048 = vmul.f32 %v3024, 1.442695
    %v3049 = vpow.pop %v3048
    %v3050 = vmul.f32 %v3025, 1.442695
    %v3051 = vpow.pop %v3050
    %v3052 = vmul.f32 %v3026, 1.442695
    %v3053 = vpow.pop %v3052
    %v3054 = vmul.f32 %v3027, 1.442695
    %v3055 = vpow.pop %v3054
    %v3056 = vmul.f32 %v3028, 1.442695
    %v3057 = vpow.pop %v3056
    %v3058 = vmul.f32 %v3029, 1.442695
    %v3059 = vpow.pop %v3058
    %v3060 = vmul.f32 %v3030, 1.442695
    %v3061 = vpow.pop %v3060
    %v3062 = vmul.f32 %v3031, 1.442695
    %v3063 = vpow.pop %v3062
    %v3064 = vsel %vm460, %v3033, 0.0
    %3065 = vadd.xlane.f32.xlu0 %v3064
    %v3066 = vpop.xlane.xlu0 %3065
    %v3067 = vsel %vm460, %v3035, 0.0
    %3068 = vadd.xlane.f32.xlu0 %v3067
    %v3069 = vpop.xlane.xlu0 %3068
    %v3070 = vsel %vm460, %v3037, 0.0
    %3071 = vadd.xlane.f32.xlu0 %v3070
    %v3072 = vpop.xlane.xlu0 %3071
    %v3073 = vsel %vm460, %v3039, 0.0
    %3074 = vadd.xlane.f32.xlu0 %v3073
    %v3075 = vpop.xlane.xlu0 %3074
    %v3076 = vsel %vm460, %v3041, 0.0
    %3077 = vadd.xlane.f32.xlu0 %v3076
    %v3078 = vpop.xlane.xlu0 %3077
    %v3079 = vsel %vm460, %v3043, 0.0
    %3080 = vadd.xlane.f32.xlu0 %v3079
    %v3081 = vpop.xlane.xlu0 %3080
    %v3082 = vsel %vm460, %v3045, 0.0
    %3083 = vadd.xlane.f32.xlu0 %v3082
    %v3084 = vpop.xlane.xlu0 %3083
    %v3085 = vsel %vm460, %v3047, 0.0
    %3086 = vadd.xlane.f32.xlu0 %v3085
    %v3087 = vpop.xlane.xlu0 %3086
    %v3088 = vsel %vm460, %v3049, 0.0
    %3089 = vadd.xlane.f32.xlu0 %v3088
    %v3090 = vpop.xlane.xlu0 %3089
    %v3091 = vsel %vm460, %v3051, 0.0
    %3092 = vadd.xlane.f32.xlu0 %v3091
    %v3093 = vpop.xlane.xlu0 %3092
    %v3094 = vsel %vm460, %v3053, 0.0
    %3095 = vadd.xlane.f32.xlu0 %v3094
    %v3096 = vpop.xlane.xlu0 %3095
    %v3097 = vsel %vm460, %v3055, 0.0
    %3098 = vadd.xlane.f32.xlu0 %v3097
    %v3099 = vpop.xlane.xlu0 %3098
    %v3100 = vsel %vm460, %v3057, 0.0
    %3101 = vadd.xlane.f32.xlu0 %v3100
    %v3102 = vpop.xlane.xlu0 %3101
    %v3103 = vsel %vm460, %v3059, 0.0
    %3104 = vadd.xlane.f32.xlu0 %v3103
    %v3105 = vpop.xlane.xlu0 %3104
    %v3106 = vsel %vm460, %v3061, 0.0
    %3107 = vadd.xlane.f32.xlu0 %v3106
    %v3108 = vpop.xlane.xlu0 %3107
    %v3109 = vsel %vm460, %v3063, 0.0
    %3110 = vadd.xlane.f32.xlu0 %v3109
    %v3111 = vpop.xlane.xlu0 %3110
    %v3112 = vrcp.pop %v3066
    %v3113 = vrcp.pop %v3069
    %v3114 = vrcp.pop %v3072
    %v3115 = vrcp.pop %v3075
    %v3116 = vrcp.pop %v3078
    %v3117 = vrcp.pop %v3081
    %v3118 = vrcp.pop %v3084
    %v3119 = vrcp.pop %v3087
    %v3120 = vrcp.pop %v3090
    %v3121 = vrcp.pop %v3093
    %v3122 = vrcp.pop %v3096
    %v3123 = vrcp.pop %v3099
    %v3124 = vrcp.pop %v3102
    %v3125 = vrcp.pop %v3105
    %v3126 = vrcp.pop %v3108
    %v3127 = vrcp.pop %v3111
    %v3128 = vmul.f32 %v3066, %v3112
    %v3129 = vmul.f32 %v3069, %v3113
    %v3130 = vmul.f32 %v3072, %v3114
    %v3131 = vmul.f32 %v3075, %v3115
    %v3132 = vmul.f32 %v3078, %v3116
    %v3133 = vmul.f32 %v3081, %v3117
    %v3134 = vmul.f32 %v3084, %v3118
    %v3135 = vmul.f32 %v3087, %v3119
    %v3136 = vmul.f32 %v3090, %v3120
    %v3137 = vmul.f32 %v3093, %v3121
    %v3138 = vmul.f32 %v3096, %v3122
    %v3139 = vmul.f32 %v3099, %v3123
    %v3140 = vmul.f32 %v3102, %v3124
    %v3141 = vmul.f32 %v3105, %v3125
    %v3142 = vmul.f32 %v3108, %v3126
    %v3143 = vmul.f32 %v3111, %v3127
    %v3144 = vsub.f32 2.0, %v3128
    %v3145 = vsub.f32 2.0, %v3129
    %v3146 = vsub.f32 2.0, %v3130
    %v3147 = vsub.f32 2.0, %v3131
    %v3148 = vsub.f32 2.0, %v3132
    %v3149 = vsub.f32 2.0, %v3133
    %v3150 = vsub.f32 2.0, %v3134
    %v3151 = vsub.f32 2.0, %v3135
    %v3152 = vsub.f32 2.0, %v3136
    %v3153 = vsub.f32 2.0, %v3137
    %v3154 = vsub.f32 2.0, %v3138
    %v3155 = vsub.f32 2.0, %v3139
    %v3156 = vsub.f32 2.0, %v3140
    %v3157 = vsub.f32 2.0, %v3141
    %v3158 = vsub.f32 2.0, %v3142
    %v3159 = vsub.f32 2.0, %v3143
    %v3160 = vmul.f32 %v3112, %v3144
    %v3161 = vmul.f32 %v3113, %v3145
    %v3162 = vmul.f32 %v3114, %v3146
    %v3163 = vmul.f32 %v3115, %v3147
    %v3164 = vmul.f32 %v3116, %v3148
    %v3165 = vmul.f32 %v3117, %v3149
    %v3166 = vmul.f32 %v3118, %v3150
    %v3167 = vmul.f32 %v3119, %v3151
    %v3168 = vmul.f32 %v3120, %v3152
    %v3169 = vmul.f32 %v3121, %v3153
    %v3170 = vmul.f32 %v3122, %v3154
    %v3171 = vmul.f32 %v3123, %v3155
    %v3172 = vmul.f32 %v3124, %v3156
    %v3173 = vmul.f32 %v3125, %v3157
    %v3174 = vmul.f32 %v3126, %v3158
    %v3175 = vmul.f32 %v3127, %v3159
    %v3176 = vmul.f32 %v3033, %v3160
    %v3177 = vmul.f32 %v3035, %v3161
    %v3178 = vmul.f32 %v3037, %v3162
    %v3179 = vmul.f32 %v3039, %v3163
    %v3180 = vmul.f32 %v3041, %v3164
    %v3181 = vmul.f32 %v3043, %v3165
    %v3182 = vmul.f32 %v3045, %v3166
    %v3183 = vmul.f32 %v3047, %v3167
    %v3184 = vmul.f32 %v3049, %v3168
    %v3185 = vmul.f32 %v3051, %v3169
    %v3186 = vmul.f32 %v3053, %v3170
    %v3187 = vmul.f32 %v3055, %v3171
    %v3188 = vmul.f32 %v3057, %v3172
    %v3189 = vmul.f32 %v3059, %v3173
    %v3190 = vmul.f32 %v3061, %v3174
    %v3191 = vmul.f32 %v3063, %v3175
    %3194 = vrot.lane.b32.xlu0 %v382, 112
    %v3195 = vpop.permute.xlu0 %3194
    %3196 = vrot.lane.b32.xlu0 %v387, 112
    %v3197 = vpop.permute.xlu0 %3196
    %v3201 = vsel %vm460, %v3176, 0
    %v3204 = vsel %vm460, %v3177, 0
    %3206 = vmatprep.subr.mxu0 0.0
    %3207 = vmatpush1.msra.mxu0 %v3195
    %3208 = vmatprep.subr.mxu0 0.0
    %3209 = vmatpush1.msra.mxu0 %v3197
    %3210 = vmatprep.subr.mxu0 0.0
    %3211 = vmatpush1.msra.mxu0 0.0
    %3212 = vmatprep.subr.mxu0 0.0
    %3213 = vmatpush1.msra.mxu0 0.0
    %3214 = vmatprep.subr.mxu0 0.0
    %3215 = vmatpush1.msra.mxu0 0.0
    %3216 = vmatprep.subr.mxu0 0.0
    %3217 = vmatpush1.msra.mxu0 0.0
    %3218 = vmatprep.subr.mxu0 0.0
    %3219 = vmatpush1.msra.mxu0 0.0
    %3220 = vmatprep.subr.mxu0 0.0
    %3221 = vmatpush1.msra.mxu0 0.0
    %3222 = vmatprep.subr.mxu0 0.0
    %3223 = vmatpush1.msra.mxu0 0.0
    %3224 = vmatprep.subr.mxu0 0.0
    %3225 = vmatpush1.msra.mxu0 0.0
    %3226 = vmatprep.subr.mxu0 0.0
    %3227 = vmatpush1.msra.mxu0 0.0
    %3228 = vmatprep.subr.mxu0 0.0
    %3229 = vmatpush1.msra.mxu0 0.0
    %3230 = vmatprep.subr.mxu0 0.0
    %3231 = vmatpush1.msra.mxu0 0.0
    %3232 = vmatprep.subr.mxu0 0.0
    %3233 = vmatpush1.msra.mxu0 0.0
    %3234 = vmatprep.subr.mxu0 0.0
    %3235 = vmatpush1.msra.mxu0 0.0
    %3236 = vmatprep.subr.mxu0 0.0
    %3237 = vmatpush1.msra.mxu0 0.0
    %3238 = vmatprep.subr.mxu0 0.0
    %3239 = vmatpush1.msra.mxu0 0.0
    %3240 = vmatprep.subr.mxu0 0.0
    %3241 = vmatpush1.msra.mxu0 0.0
    %3242 = vmatprep.subr.mxu0 0.0
    %3243 = vmatpush1.msra.mxu0 0.0
    %3244 = vmatprep.subr.mxu0 0.0
    %3245 = vmatpush1.msra.mxu0 0.0
    %3246 = vmatprep.subr.mxu0 0.0
    %3247 = vmatpush1.msra.mxu0 0.0
    %3248 = vmatprep.subr.mxu0 0.0
    %3249 = vmatpush1.msra.mxu0 0.0
    %3250 = vmatprep.subr.mxu0 0.0
    %3251 = vmatpush1.msra.mxu0 0.0
    %3252 = vmatprep.subr.mxu0 0.0
    %3253 = vmatpush1.msra.mxu0 0.0
    %3254 = vmatprep.subr.mxu0 0.0
    %3255 = vmatpush1.msra.mxu0 0.0
    %3256 = vmatprep.subr.mxu0 0.0
    %3257 = vmatpush1.msra.mxu0 0.0
    %3258 = vmatprep.subr.mxu0 0.0
    %3259 = vmatpush1.msra.mxu0 0.0
    %3260 = vmatprep.subr.mxu0 0.0
    %3261 = vmatpush1.msra.mxu0 0.0
    %3262 = vmatprep.subr.mxu0 0.0
    %3263 = vmatpush1.msra.mxu0 0.0
    %3264 = vmatprep.subr.mxu0 0.0
    %3265 = vmatpush1.msra.mxu0 0.0
    %3266 = vmatprep.subr.mxu0 0.0
    %3267 = vmatpush1.msra.mxu0 0.0
    %3268 = vmatprep.subr.mxu0 0.0
    %3269 = vmatpush1.msra.mxu0 0.0
    %3270 = vmatprep.mubr.f32.mxu0 0.0
    %3271 = vmatmul.mubr.f32.gmra.mrb[0].mxu0 %v3201
    %v3272 = vpop.f32.mrb[0].mxu0
    %v3273 = vadd.f32 0.0, %v3272
    %v3274 = vpop.f32.mrb[0].mxu0
    %3275 = vmatprep.mubr.f32.mxu0 0.0
    %3276 = vmatmul.mubr.f32.gmra.mrb[0].mxu0 %v3204
    %v3277 = vpop.f32.mrb[0].mxu0
    %v3278 = vadd.f32 0.0, %v3277
    %v3279 = vpop.f32.mrb[0].mxu0
    %3280 = vdwg.mxu0
    %3283 = vrot.lane.b32.xlu0 %v392, 112
    %v3284 = vpop.permute.xlu0 %3283
    %3285 = vrot.lane.b32.xlu0 %v397, 112
    %v3286 = vpop.permute.xlu0 %3285
    %v3290 = vsel %vm460, %v3178, 0
    %v3293 = vsel %vm460, %v3179, 0
    %3295 = vmatprep.subr.mxu0 0.0
    %3296 = vmatpush1.msra.mxu0 %v3284
    %3297 = vmatprep.subr.mxu0 0.0
    %3298 = vmatpush1.msra.mxu0 %v3286
    %3299 = vmatprep.subr.mxu0 0.0
    %3300 = vmatpush1.msra.mxu0 0.0
    %3301 = vmatprep.subr.mxu0 0.0
    %3302 = vmatpush1.msra.mxu0 0.0
    %3303 = vmatprep.subr.mxu0 0.0
    %3304 = vmatpush1.msra.mxu0 0.0
    %3305 = vmatprep.subr.mxu0 0.0
    %3306 = vmatpush1.msra.mxu0 0.0
    %3307 = vmatprep.subr.mxu0 0.0
    %3308 = vmatpush1.msra.mxu0 0.0
    %3309 = vmatprep.subr.mxu0 0.0
    %3310 = vmatpush1.msra.mxu0 0.0
    %3311 = vmatprep.subr.mxu0 0.0
    %3312 = vmatpush1.msra.mxu0 0.0
    %3313 = vmatprep.subr.mxu0 0.0
    %3314 = vmatpush1.msra.mxu0 0.0
    %3315 = vmatprep.subr.mxu0 0.0
    %3316 = vmatpush1.msra.mxu0 0.0
    %3317 = vmatprep.subr.mxu0 0.0
    %3318 = vmatpush1.msra.mxu0 0.0
    %3319 = vmatprep.subr.mxu0 0.0
    %3320 = vmatpush1.msra.mxu0 0.0
    %3321 = vmatprep.subr.mxu0 0.0
    %3322 = vmatpush1.msra.mxu0 0.0
    %3323 = vmatprep.subr.mxu0 0.0
    %3324 = vmatpush1.msra.mxu0 0.0
    %3325 = vmatprep.subr.mxu0 0.0
    %3326 = vmatpush1.msra.mxu0 0.0
    %3327 = vmatprep.subr.mxu0 0.0
    %3328 = vmatpush1.msra.mxu0 0.0
    %3329 = vmatprep.subr.mxu0 0.0
    %3330 = vmatpush1.msra.mxu0 0.0
    %3331 = vmatprep.subr.mxu0 0.0
    %3332 = vmatpush1.msra.mxu0 0.0
    %3333 = vmatprep.subr.mxu0 0.0
    %3334 = vmatpush1.msra.mxu0 0.0
    %3335 = vmatprep.subr.mxu0 0.0
    %3336 = vmatpush1.msra.mxu0 0.0
    %3337 = vmatprep.subr.mxu0 0.0
    %3338 = vmatpush1.msra.mxu0 0.0
    %3339 = vmatprep.subr.mxu0 0.0
    %3340 = vmatpush1.msra.mxu0 0.0
    %3341 = vmatprep.subr.mxu0 0.0
    %3342 = vmatpush1.msra.mxu0 0.0
    %3343 = vmatprep.subr.mxu0 0.0
    %3344 = vmatpush1.msra.mxu0 0.0
    %3345 = vmatprep.subr.mxu0 0.0
    %3346 = vmatpush1.msra.mxu0 0.0
    %3347 = vmatprep.subr.mxu0 0.0
    %3348 = vmatpush1.msra.mxu0 0.0
    %3349 = vmatprep.subr.mxu0 0.0
    %3350 = vmatpush1.msra.mxu0 0.0
    %3351 = vmatprep.subr.mxu0 0.0
    %3352 = vmatpush1.msra.mxu0 0.0
    %3353 = vmatprep.subr.mxu0 0.0
    %3354 = vmatpush1.msra.mxu0 0.0
    %3355 = vmatprep.subr.mxu0 0.0
    %3356 = vmatpush1.msra.mxu0 0.0
    %3357 = vmatprep.subr.mxu0 0.0
    %3358 = vmatpush1.msra.mxu0 0.0
    %3359 = vmatprep.mubr.f32.mxu0 0.0
    %3360 = vmatmul.mubr.f32.gmra.mrb[0].mxu0 %v3290
    %v3361 = vpop.f32.mrb[0].mxu0
    %v3362 = vadd.f32 0.0, %v3361
    %v3363 = vpop.f32.mrb[0].mxu0
    %3364 = vmatprep.mubr.f32.mxu0 0.0
    %3365 = vmatmul.mubr.f32.gmra.mrb[0].mxu0 %v3293
    %v3366 = vpop.f32.mrb[0].mxu0
    %v3367 = vadd.f32 0.0, %v3366
    %v3368 = vpop.f32.mrb[0].mxu0
    %3369 = vdwg.mxu0
    %3372 = vrot.lane.b32.xlu0 %v402, 112
    %v3373 = vpop.permute.xlu0 %3372
    %3374 = vrot.lane.b32.xlu0 %v407, 112
    %v3375 = vpop.permute.xlu0 %3374
    %v3379 = vsel %vm460, %v3180, 0
    %v3382 = vsel %vm460, %v3181, 0
    %3384 = vmatprep.subr.mxu0 0.0
    %3385 = vmatpush1.msra.mxu0 %v3373
    %3386 = vmatprep.subr.mxu0 0.0
    %3387 = vmatpush1.msra.mxu0 %v3375
    %3388 = vmatprep.subr.mxu0 0.0
    %3389 = vmatpush1.msra.mxu0 0.0
    %3390 = vmatprep.subr.mxu0 0.0
    %3391 = vmatpush1.msra.mxu0 0.0
    %3392 = vmatprep.subr.mxu0 0.0
    %3393 = vmatpush1.msra.mxu0 0.0
    %3394 = vmatprep.subr.mxu0 0.0
    %3395 = vmatpush1.msra.mxu0 0.0
    %3396 = vmatprep.subr.mxu0 0.0
    %3397 = vmatpush1.msra.mxu0 0.0
    %3398 = vmatprep.subr.mxu0 0.0
    %3399 = vmatpush1.msra.mxu0 0.0
    %3400 = vmatprep.subr.mxu0 0.0
    %3401 = vmatpush1.msra.mxu0 0.0
    %3402 = vmatprep.subr.mxu0 0.0
    %3403 = vmatpush1.msra.mxu0 0.0
    %3404 = vmatprep.subr.mxu0 0.0
    %3405 = vmatpush1.msra.mxu0 0.0
    %3406 = vmatprep.subr.mxu0 0.0
    %3407 = vmatpush1.msra.mxu0 0.0
    %3408 = vmatprep.subr.mxu0 0.0
    %3409 = vmatpush1.msra.mxu0 0.0
    %3410 = vmatprep.subr.mxu0 0.0
    %3411 = vmatpush1.msra.mxu0 0.0
    %3412 = vmatprep.subr.mxu0 0.0
    %3413 = vmatpush1.msra.mxu0 0.0
    %3414 = vmatprep.subr.mxu0 0.0
    %3415 = vmatpush1.msra.mxu0 0.0
    %3416 = vmatprep.subr.mxu0 0.0
    %3417 = vmatpush1.msra.mxu0 0.0
    %3418 = vmatprep.subr.mxu0 0.0
    %3419 = vmatpush1.msra.mxu0 0.0
    %3420 = vmatprep.subr.mxu0 0.0
    %3421 = vmatpush1.msra.mxu0 0.0
    %3422 = vmatprep.subr.mxu0 0.0
    %3423 = vmatpush1.msra.mxu0 0.0
    %3424 = vmatprep.subr.mxu0 0.0
    %3425 = vmatpush1.msra.mxu0 0.0
    %3426 = vmatprep.subr.mxu0 0.0
    %3427 = vmatpush1.msra.mxu0 0.0
    %3428 = vmatprep.subr.mxu0 0.0
    %3429 = vmatpush1.msra.mxu0 0.0
    %3430 = vmatprep.subr.mxu0 0.0
    %3431 = vmatpush1.msra.mxu0 0.0
    %3432 = vmatprep.subr.mxu0 0.0
    %3433 = vmatpush1.msra.mxu0 0.0
    %3434 = vmatprep.subr.mxu0 0.0
    %3435 = vmatpush1.msra.mxu0 0.0
    %3436 = vmatprep.subr.mxu0 0.0
    %3437 = vmatpush1.msra.mxu0 0.0
    %3438 = vmatprep.subr.mxu0 0.0
    %3439 = vmatpush1.msra.mxu0 0.0
    %3440 = vmatprep.subr.mxu0 0.0
    %3441 = vmatpush1.msra.mxu0 0.0
    %3442 = vmatprep.subr.mxu0 0.0
    %3443 = vmatpush1.msra.mxu0 0.0
    %3444 = vmatprep.subr.mxu0 0.0
    %3445 = vmatpush1.msra.mxu0 0.0
    %3446 = vmatprep.subr.mxu0 0.0
    %3447 = vmatpush1.msra.mxu0 0.0
    %3448 = vmatprep.mubr.f32.mxu0 0.0
    %3449 = vmatmul.mubr.f32.gmra.mrb[0].mxu0 %v3379
    %v3450 = vpop.f32.mrb[0].mxu0
    %v3451 = vadd.f32 0.0, %v3450
    %v3452 = vpop.f32.mrb[0].mxu0
    %3453 = vmatprep.mubr.f32.mxu0 0.0
    %3454 = vmatmul.mubr.f32.gmra.mrb[0].mxu0 %v3382
    %v3455 = vpop.f32.mrb[0].mxu0
    %v3456 = vadd.f32 0.0, %v3455
    %v3457 = vpop.f32.mrb[0].mxu0
    %3458 = vdwg.mxu0
    %3461 = vrot.lane.b32.xlu0 %v412, 112
    %v3462 = vpop.permute.xlu0 %3461
    %3463 = vrot.lane.b32.xlu0 %v417, 112
    %v3464 = vpop.permute.xlu0 %3463
    %v3468 = vsel %vm460, %v3182, 0
    %v3471 = vsel %vm460, %v3183, 0
    %3473 = vmatprep.subr.mxu0 0.0
    %3474 = vmatpush1.msra.mxu0 %v3462
    %3475 = vmatprep.subr.mxu0 0.0
    %3476 = vmatpush1.msra.mxu0 %v3464
    %3477 = vmatprep.subr.mxu0 0.0
    %3478 = vmatpush1.msra.mxu0 0.0
    %3479 = vmatprep.subr.mxu0 0.0
    %3480 = vmatpush1.msra.mxu0 0.0
    %3481 = vmatprep.subr.mxu0 0.0
    %3482 = vmatpush1.msra.mxu0 0.0
    %3483 = vmatprep.subr.mxu0 0.0
    %3484 = vmatpush1.msra.mxu0 0.0
    %3485 = vmatprep.subr.mxu0 0.0
    %3486 = vmatpush1.msra.mxu0 0.0
    %3487 = vmatprep.subr.mxu0 0.0
    %3488 = vmatpush1.msra.mxu0 0.0
    %3489 = vmatprep.subr.mxu0 0.0
    %3490 = vmatpush1.msra.mxu0 0.0
    %3491 = vmatprep.subr.mxu0 0.0
    %3492 = vmatpush1.msra.mxu0 0.0
    %3493 = vmatprep.subr.mxu0 0.0
    %3494 = vmatpush1.msra.mxu0 0.0
    %3495 = vmatprep.subr.mxu0 0.0
    %3496 = vmatpush1.msra.mxu0 0.0
    %3497 = vmatprep.subr.mxu0 0.0
    %3498 = vmatpush1.msra.mxu0 0.0
    %3499 = vmatprep.subr.mxu0 0.0
    %3500 = vmatpush1.msra.mxu0 0.0
    %3501 = vmatprep.subr.mxu0 0.0
    %3502 = vmatpush1.msra.mxu0 0.0
    %3503 = vmatprep.subr.mxu0 0.0
    %3504 = vmatpush1.msra.mxu0 0.0
    %3505 = vmatprep.subr.mxu0 0.0
    %3506 = vmatpush1.msra.mxu0 0.0
    %3507 = vmatprep.subr.mxu0 0.0
    %3508 = vmatpush1.msra.mxu0 0.0
    %3509 = vmatprep.subr.mxu0 0.0
    %3510 = vmatpush1.msra.mxu0 0.0
    %3511 = vmatprep.subr.mxu0 0.0
    %3512 = vmatpush1.msra.mxu0 0.0
    %3513 = vmatprep.subr.mxu0 0.0
    %3514 = vmatpush1.msra.mxu0 0.0
    %3515 = vmatprep.subr.mxu0 0.0
    %3516 = vmatpush1.msra.mxu0 0.0
    %3517 = vmatprep.subr.mxu0 0.0
    %3518 = vmatpush1.msra.mxu0 0.0
    %3519 = vmatprep.subr.mxu0 0.0
    %3520 = vmatpush1.msra.mxu0 0.0
    %3521 = vmatprep.subr.mxu0 0.0
    %3522 = vmatpush1.msra.mxu0 0.0
    %3523 = vmatprep.subr.mxu0 0.0
    %3524 = vmatpush1.msra.mxu0 0.0
    %3525 = vmatprep.subr.mxu0 0.0
    %3526 = vmatpush1.msra.mxu0 0.0
    %3527 = vmatprep.subr.mxu0 0.0
    %3528 = vmatpush1.msra.mxu0 0.0
    %3529 = vmatprep.subr.mxu0 0.0
    %3530 = vmatpush1.msra.mxu0 0.0
    %3531 = vmatprep.subr.mxu0 0.0
    %3532 = vmatpush1.msra.mxu0 0.0
    %3533 = vmatprep.subr.mxu0 0.0
    %3534 = vmatpush1.msra.mxu0 0.0
    %3535 = vmatprep.subr.mxu0 0.0
    %3536 = vmatpush1.msra.mxu0 0.0
    %3537 = vmatprep.mubr.f32.mxu0 0.0
    %3538 = vmatmul.mubr.f32.gmra.mrb[0].mxu0 %v3468
    %v3539 = vpop.f32.mrb[0].mxu0
    %v3540 = vadd.f32 0.0, %v3539
    %v3541 = vpop.f32.mrb[0].mxu0
    %3542 = vmatprep.mubr.f32.mxu0 0.0
    %3543 = vmatmul.mubr.f32.gmra.mrb[0].mxu0 %v3471
    %v3544 = vpop.f32.mrb[0].mxu0
    %v3545 = vadd.f32 0.0, %v3544
    %v3546 = vpop.f32.mrb[0].mxu0
    %3547 = vdwg.mxu0
    %3550 = vrot.lane.b32.xlu0 %v422, 112
    %v3551 = vpop.permute.xlu0 %3550
    %3552 = vrot.lane.b32.xlu0 %v427, 112
    %v3553 = vpop.permute.xlu0 %3552
    %v3557 = vsel %vm460, %v3184, 0
    %v3560 = vsel %vm460, %v3185, 0
    %3562 = vmatprep.subr.mxu0 0.0
    %3563 = vmatpush1.msra.mxu0 %v3551
    %3564 = vmatprep.subr.mxu0 0.0
    %3565 = vmatpush1.msra.mxu0 %v3553
    %3566 = vmatprep.subr.mxu0 0.0
    %3567 = vmatpush1.msra.mxu0 0.0
    %3568 = vmatprep.subr.mxu0 0.0
    %3569 = vmatpush1.msra.mxu0 0.0
    %3570 = vmatprep.subr.mxu0 0.0
    %3571 = vmatpush1.msra.mxu0 0.0
    %3572 = vmatprep.subr.mxu0 0.0
    %3573 = vmatpush1.msra.mxu0 0.0
    %3574 = vmatprep.subr.mxu0 0.0
    %3575 = vmatpush1.msra.mxu0 0.0
    %3576 = vmatprep.subr.mxu0 0.0
    %3577 = vmatpush1.msra.mxu0 0.0
    %3578 = vmatprep.subr.mxu0 0.0
    %3579 = vmatpush1.msra.mxu0 0.0
    %3580 = vmatprep.subr.mxu0 0.0
    %3581 = vmatpush1.msra.mxu0 0.0
    %3582 = vmatprep.subr.mxu0 0.0
    %3583 = vmatpush1.msra.mxu0 0.0
    %3584 = vmatprep.subr.mxu0 0.0
    %3585 = vmatpush1.msra.mxu0 0.0
    %3586 = vmatprep.subr.mxu0 0.0
    %3587 = vmatpush1.msra.mxu0 0.0
    %3588 = vmatprep.subr.mxu0 0.0
    %3589 = vmatpush1.msra.mxu0 0.0
    %3590 = vmatprep.subr.mxu0 0.0
    %3591 = vmatpush1.msra.mxu0 0.0
    %3592 = vmatprep.subr.mxu0 0.0
    %3593 = vmatpush1.msra.mxu0 0.0
    %3594 = vmatprep.subr.mxu0 0.0
    %3595 = vmatpush1.msra.mxu0 0.0
    %3596 = vmatprep.subr.mxu0 0.0
    %3597 = vmatpush1.msra.mxu0 0.0
    %3598 = vmatprep.subr.mxu0 0.0
    %3599 = vmatpush1.msra.mxu0 0.0
    %3600 = vmatprep.subr.mxu0 0.0
    %3601 = vmatpush1.msra.mxu0 0.0
    %3602 = vmatprep.subr.mxu0 0.0
    %3603 = vmatpush1.msra.mxu0 0.0
    %3604 = vmatprep.subr.mxu0 0.0
    %3605 = vmatpush1.msra.mxu0 0.0
    %3606 = vmatprep.subr.mxu0 0.0
    %3607 = vmatpush1.msra.mxu0 0.0
    %3608 = vmatprep.subr.mxu0 0.0
    %3609 = vmatpush1.msra.mxu0 0.0
    %3610 = vmatprep.subr.mxu0 0.0
    %3611 = vmatpush1.msra.mxu0 0.0
    %3612 = vmatprep.subr.mxu0 0.0
    %3613 = vmatpush1.msra.mxu0 0.0
    %3614 = vmatprep.subr.mxu0 0.0
    %3615 = vmatpush1.msra.mxu0 0.0
    %3616 = vmatprep.subr.mxu0 0.0
    %3617 = vmatpush1.msra.mxu0 0.0
    %3618 = vmatprep.subr.mxu0 0.0
    %3619 = vmatpush1.msra.mxu0 0.0
    %3620 = vmatprep.subr.mxu0 0.0
    %3621 = vmatpush1.msra.mxu0 0.0
    %3622 = vmatprep.subr.mxu0 0.0
    %3623 = vmatpush1.msra.mxu0 0.0
    %3624 = vmatprep.subr.mxu0 0.0
    %3625 = vmatpush1.msra.mxu0 0.0
    %3626 = vmatprep.mubr.f32.mxu0 0.0
    %3627 = vmatmul.mubr.f32.gmra.mrb[0].mxu0 %v3557
    %v3628 = vpop.f32.mrb[0].mxu0
    %v3629 = vadd.f32 0.0, %v3628
    %v3630 = vpop.f32.mrb[0].mxu0
    %3631 = vmatprep.mubr.f32.mxu0 0.0
    %3632 = vmatmul.mubr.f32.gmra.mrb[0].mxu0 %v3560
    %v3633 = vpop.f32.mrb[0].mxu0
    %v3634 = vadd.f32 0.0, %v3633
    %v3635 = vpop.f32.mrb[0].mxu0
    %3636 = vdwg.mxu0
    %3639 = vrot.lane.b32.xlu0 %v432, 112
    %v3640 = vpop.permute.xlu0 %3639
    %3641 = vrot.lane.b32.xlu0 %v437, 112
    %v3642 = vpop.permute.xlu0 %3641
    %v3646 = vsel %vm460, %v3186, 0
    %v3649 = vsel %vm460, %v3187, 0
    %3651 = vmatprep.subr.mxu0 0.0
    %3652 = vmatpush1.msra.mxu0 %v3640
    %3653 = vmatprep.subr.mxu0 0.0
    %3654 = vmatpush1.msra.mxu0 %v3642
    %3655 = vmatprep.subr.mxu0 0.0
    %3656 = vmatpush1.msra.mxu0 0.0
    %3657 = vmatprep.subr.mxu0 0.0
    %3658 = vmatpush1.msra.mxu0 0.0
    %3659 = vmatprep.subr.mxu0 0.0
    %3660 = vmatpush1.msra.mxu0 0.0
    %3661 = vmatprep.subr.mxu0 0.0
    %3662 = vmatpush1.msra.mxu0 0.0
    %3663 = vmatprep.subr.mxu0 0.0
    %3664 = vmatpush1.msra.mxu0 0.0
    %3665 = vmatprep.subr.mxu0 0.0
    %3666 = vmatpush1.msra.mxu0 0.0
    %3667 = vmatprep.subr.mxu0 0.0
    %3668 = vmatpush1.msra.mxu0 0.0
    %3669 = vmatprep.subr.mxu0 0.0
    %3670 = vmatpush1.msra.mxu0 0.0
    %3671 = vmatprep.subr.mxu0 0.0
    %3672 = vmatpush1.msra.mxu0 0.0
    %3673 = vmatprep.subr.mxu0 0.0
    %3674 = vmatpush1.msra.mxu0 0.0
    %3675 = vmatprep.subr.mxu0 0.0
    %3676 = vmatpush1.msra.mxu0 0.0
    %3677 = vmatprep.subr.mxu0 0.0
    %3678 = vmatpush1.msra.mxu0 0.0
    %3679 = vmatprep.subr.mxu0 0.0
    %3680 = vmatpush1.msra.mxu0 0.0
    %3681 = vmatprep.subr.mxu0 0.0
    %3682 = vmatpush1.msra.mxu0 0.0
    %3683 = vmatprep.subr.mxu0 0.0
    %3684 = vmatpush1.msra.mxu0 0.0
    %3685 = vmatprep.subr.mxu0 0.0
    %3686 = vmatpush1.msra.mxu0 0.0
    %3687 = vmatprep.subr.mxu0 0.0
    %3688 = vmatpush1.msra.mxu0 0.0
    %3689 = vmatprep.subr.mxu0 0.0
    %3690 = vmatpush1.msra.mxu0 0.0
    %3691 = vmatprep.subr.mxu0 0.0
    %3692 = vmatpush1.msra.mxu0 0.0
    %3693 = vmatprep.subr.mxu0 0.0
    %3694 = vmatpush1.msra.mxu0 0.0
    %3695 = vmatprep.subr.mxu0 0.0
    %3696 = vmatpush1.msra.mxu0 0.0
    %3697 = vmatprep.subr.mxu0 0.0
    %3698 = vmatpush1.msra.mxu0 0.0
    %3699 = vmatprep.subr.mxu0 0.0
    %3700 = vmatpush1.msra.mxu0 0.0
    %3701 = vmatprep.subr.mxu0 0.0
    %3702 = vmatpush1.msra.mxu0 0.0
    %3703 = vmatprep.subr.mxu0 0.0
    %3704 = vmatpush1.msra.mxu0 0.0
    %3705 = vmatprep.subr.mxu0 0.0
    %3706 = vmatpush1.msra.mxu0 0.0
    %3707 = vmatprep.subr.mxu0 0.0
    %3708 = vmatpush1.msra.mxu0 0.0
    %3709 = vmatprep.subr.mxu0 0.0
    %3710 = vmatpush1.msra.mxu0 0.0
    %3711 = vmatprep.subr.mxu0 0.0
    %3712 = vmatpush1.msra.mxu0 0.0
    %3713 = vmatprep.subr.mxu0 0.0
    %3714 = vmatpush1.msra.mxu0 0.0
    %3715 = vmatprep.mubr.f32.mxu0 0.0
    %3716 = vmatmul.mubr.f32.gmra.mrb[0].mxu0 %v3646
    %v3717 = vpop.f32.mrb[0].mxu0
    %v3718 = vadd.f32 0.0, %v3717
    %v3719 = vpop.f32.mrb[0].mxu0
    %3720 = vmatprep.mubr.f32.mxu0 0.0
    %3721 = vmatmul.mubr.f32.gmra.mrb[0].mxu0 %v3649
    %v3722 = vpop.f32.mrb[0].mxu0
    %v3723 = vadd.f32 0.0, %v3722
    %v3724 = vpop.f32.mrb[0].mxu0
    %3725 = vdwg.mxu0
    %3728 = vrot.lane.b32.xlu0 %v442, 112
    %v3729 = vpop.permute.xlu0 %3728
    %3730 = vrot.lane.b32.xlu0 %v447, 112
    %v3731 = vpop.permute.xlu0 %3730
    %v3735 = vsel %vm460, %v3188, 0
    %v3738 = vsel %vm460, %v3189, 0
    %3740 = vmatprep.subr.mxu0 0.0
    %3741 = vmatpush1.msra.mxu0 %v3729
    %3742 = vmatprep.subr.mxu0 0.0
    %3743 = vmatpush1.msra.mxu0 %v3731
    %3744 = vmatprep.subr.mxu0 0.0
    %3745 = vmatpush1.msra.mxu0 0.0
    %3746 = vmatprep.subr.mxu0 0.0
    %3747 = vmatpush1.msra.mxu0 0.0
    %3748 = vmatprep.subr.mxu0 0.0
    %3749 = vmatpush1.msra.mxu0 0.0
    %3750 = vmatprep.subr.mxu0 0.0
    %3751 = vmatpush1.msra.mxu0 0.0
    %3752 = vmatprep.subr.mxu0 0.0
    %3753 = vmatpush1.msra.mxu0 0.0
    %3754 = vmatprep.subr.mxu0 0.0
    %3755 = vmatpush1.msra.mxu0 0.0
    %3756 = vmatprep.subr.mxu0 0.0
    %3757 = vmatpush1.msra.mxu0 0.0
    %3758 = vmatprep.subr.mxu0 0.0
    %3759 = vmatpush1.msra.mxu0 0.0
    %3760 = vmatprep.subr.mxu0 0.0
    %3761 = vmatpush1.msra.mxu0 0.0
    %3762 = vmatprep.subr.mxu0 0.0
    %3763 = vmatpush1.msra.mxu0 0.0
    %3764 = vmatprep.subr.mxu0 0.0
    %3765 = vmatpush1.msra.mxu0 0.0
    %3766 = vmatprep.subr.mxu0 0.0
    %3767 = vmatpush1.msra.mxu0 0.0
    %3768 = vmatprep.subr.mxu0 0.0
    %3769 = vmatpush1.msra.mxu0 0.0
    %3770 = vmatprep.subr.mxu0 0.0
    %3771 = vmatpush1.msra.mxu0 0.0
    %3772 = vmatprep.subr.mxu0 0.0
    %3773 = vmatpush1.msra.mxu0 0.0
    %3774 = vmatprep.subr.mxu0 0.0
    %3775 = vmatpush1.msra.mxu0 0.0
    %3776 = vmatprep.subr.mxu0 0.0
    %3777 = vmatpush1.msra.mxu0 0.0
    %3778 = vmatprep.subr.mxu0 0.0
    %3779 = vmatpush1.msra.mxu0 0.0
    %3780 = vmatprep.subr.mxu0 0.0
    %3781 = vmatpush1.msra.mxu0 0.0
    %3782 = vmatprep.subr.mxu0 0.0
    %3783 = vmatpush1.msra.mxu0 0.0
    %3784 = vmatprep.subr.mxu0 0.0
    %3785 = vmatpush1.msra.mxu0 0.0
    %3786 = vmatprep.subr.mxu0 0.0
    %3787 = vmatpush1.msra.mxu0 0.0
    %3788 = vmatprep.subr.mxu0 0.0
    %3789 = vmatpush1.msra.mxu0 0.0
    %3790 = vmatprep.subr.mxu0 0.0
    %3791 = vmatpush1.msra.mxu0 0.0
    %3792 = vmatprep.subr.mxu0 0.0
    %3793 = vmatpush1.msra.mxu0 0.0
    %3794 = vmatprep.subr.mxu0 0.0
    %3795 = vmatpush1.msra.mxu0 0.0
    %3796 = vmatprep.subr.mxu0 0.0
    %3797 = vmatpush1.msra.mxu0 0.0
    %3798 = vmatprep.subr.mxu0 0.0
    %3799 = vmatpush1.msra.mxu0 0.0
    %3800 = vmatprep.subr.mxu0 0.0
    %3801 = vmatpush1.msra.mxu0 0.0
    %3802 = vmatprep.subr.mxu0 0.0
    %3803 = vmatpush1.msra.mxu0 0.0
    %3804 = vmatprep.mubr.f32.mxu0 0.0
    %3805 = vmatmul.mubr.f32.gmra.mrb[0].mxu0 %v3735
    %v3806 = vpop.f32.mrb[0].mxu0
    %v3807 = vadd.f32 0.0, %v3806
    %v3808 = vpop.f32.mrb[0].mxu0
    %3809 = vmatprep.mubr.f32.mxu0 0.0
    %3810 = vmatmul.mubr.f32.gmra.mrb[0].mxu0 %v3738
    %v3811 = vpop.f32.mrb[0].mxu0
    %v3812 = vadd.f32 0.0, %v3811
    %v3813 = vpop.f32.mrb[0].mxu0
    %3814 = vdwg.mxu0
    %3817 = vrot.lane.b32.xlu0 %v452, 112
    %v3818 = vpop.permute.xlu0 %3817
    %3819 = vrot.lane.b32.xlu0 %v457, 112
    %v3820 = vpop.permute.xlu0 %3819
    %v3824 = vsel %vm460, %v3190, 0
    %v3827 = vsel %vm460, %v3191, 0
    %3829 = vmatprep.subr.mxu0 0.0
    %3830 = vmatpush1.msra.mxu0 %v3818
    %3831 = vmatprep.subr.mxu0 0.0
    %3832 = vmatpush1.msra.mxu0 %v3820
    %3833 = vmatprep.subr.mxu0 0.0
    %3834 = vmatpush1.msra.mxu0 0.0
    %3835 = vmatprep.subr.mxu0 0.0
    %3836 = vmatpush1.msra.mxu0 0.0
    %3837 = vmatprep.subr.mxu0 0.0
    %3838 = vmatpush1.msra.mxu0 0.0
    %3839 = vmatprep.subr.mxu0 0.0
    %3840 = vmatpush1.msra.mxu0 0.0
    %3841 = vmatprep.subr.mxu0 0.0
    %3842 = vmatpush1.msra.mxu0 0.0
    %3843 = vmatprep.subr.mxu0 0.0
    %3844 = vmatpush1.msra.mxu0 0.0
    %3845 = vmatprep.subr.mxu0 0.0
    %3846 = vmatpush1.msra.mxu0 0.0
    %3847 = vmatprep.subr.mxu0 0.0
    %3848 = vmatpush1.msra.mxu0 0.0
    %3849 = vmatprep.subr.mxu0 0.0
    %3850 = vmatpush1.msra.mxu0 0.0
    %3851 = vmatprep.subr.mxu0 0.0
    %3852 = vmatpush1.msra.mxu0 0.0
    %3853 = vmatprep.subr.mxu0 0.0
    %3854 = vmatpush1.msra.mxu0 0.0
    %3855 = vmatprep.subr.mxu0 0.0
    %3856 = vmatpush1.msra.mxu0 0.0
    %3857 = vmatprep.subr.mxu0 0.0
    %3858 = vmatpush1.msra.mxu0 0.0
    %3859 = vmatprep.subr.mxu0 0.0
    %3860 = vmatpush1.msra.mxu0 0.0
    %3861 = vmatprep.subr.mxu0 0.0
    %3862 = vmatpush1.msra.mxu0 0.0
    %3863 = vmatprep.subr.mxu0 0.0
    %3864 = vmatpush1.msra.mxu0 0.0
    %3865 = vmatprep.subr.mxu0 0.0
    %3866 = vmatpush1.msra.mxu0 0.0
    %3867 = vmatprep.subr.mxu0 0.0
    %3868 = vmatpush1.msra.mxu0 0.0
    %3869 = vmatprep.subr.mxu0 0.0
    %3870 = vmatpush1.msra.mxu0 0.0
    %3871 = vmatprep.subr.mxu0 0.0
    %3872 = vmatpush1.msra.mxu0 0.0
    %3873 = vmatprep.subr.mxu0 0.0
    %3874 = vmatpush1.msra.mxu0 0.0
    %3875 = vmatprep.subr.mxu0 0.0
    %3876 = vmatpush1.msra.mxu0 0.0
    %3877 = vmatprep.subr.mxu0 0.0
    %3878 = vmatpush1.msra.mxu0 0.0
    %3879 = vmatprep.subr.mxu0 0.0
    %3880 = vmatpush1.msra.mxu0 0.0
    %3881 = vmatprep.subr.mxu0 0.0
    %3882 = vmatpush1.msra.mxu0 0.0
    %3883 = vmatprep.subr.mxu0 0.0
    %3884 = vmatpush1.msra.mxu0 0.0
    %3885 = vmatprep.subr.mxu0 0.0
    %3886 = vmatpush1.msra.mxu0 0.0
    %3887 = vmatprep.subr.mxu0 0.0
    %3888 = vmatpush1.msra.mxu0 0.0
    %3889 = vmatprep.subr.mxu0 0.0
    %3890 = vmatpush1.msra.mxu0 0.0
    %3891 = vmatprep.subr.mxu0 0.0
    %3892 = vmatpush1.msra.mxu0 0.0
    %3893 = vmatprep.mubr.f32.mxu0 0.0
    %3894 = vmatmul.mubr.f32.gmra.mrb[0].mxu0 %v3824
    %v3895 = vpop.f32.mrb[0].mxu0
    %v3896 = vadd.f32 0.0, %v3895
    %v3897 = vpop.f32.mrb[0].mxu0
    %3898 = vmatprep.mubr.f32.mxu0 0.0
    %3899 = vmatmul.mubr.f32.gmra.mrb[0].mxu0 %v3827
    %v3900 = vpop.f32.mrb[0].mxu0
    %v3901 = vadd.f32 0.0, %v3900
    %v3902 = vpop.f32.mrb[0].mxu0
    %3903 = vdwg.mxu0
    %v3904 = vld [vmem:[#allocation8 + $0x10] sm:$0xff]
    %v3905 = vld [vmem:[#allocation8 + $0x18] sm:$0xff]
    %v3907 = vsel %vm460, %v3273, 0
    %v3910 = vsel %vm460, %v3278, 0
    %v3913 = vsel %vm460, %v3362, 0
    %v3916 = vsel %vm460, %v3367, 0
    %v3919 = vsel %vm460, %v3451, 0
    %v3922 = vsel %vm460, %v3456, 0
    %v3925 = vsel %vm460, %v3540, 0
    %v3928 = vsel %vm460, %v3545, 0
    %v3931 = vsel %vm460, %v3629, 0
    %v3934 = vsel %vm460, %v3634, 0
    %v3937 = vsel %vm460, %v3718, 0
    %v3940 = vsel %vm460, %v3723, 0
    %v3943 = vsel %vm460, %v3807, 0
    %v3946 = vsel %vm460, %v3812, 0
    %v3949 = vsel %vm460, %v3896, 0
    %v3952 = vsel %vm460, %v3901, 0
    %3954 = vmatprep.subr.mxu0 0.0
    %3955 = vmatpush1.msra.mxu0 %v3904
    %3956 = vmatprep.subr.mxu0 0.0
    %3957 = vmatpush1.msra.mxu0 %v3905
    %3958 = vmatprep.subr.mxu0 0.0
    %3959 = vmatpush1.msra.mxu0 0.0
    %3960 = vmatprep.subr.mxu0 0.0
    %3961 = vmatpush1.msra.mxu0 0.0
    %3962 = vmatprep.subr.mxu0 0.0
    %3963 = vmatpush1.msra.mxu0 0.0
    %3964 = vmatprep.subr.mxu0 0.0
    %3965 = vmatpush1.msra.mxu0 0.0
    %3966 = vmatprep.subr.mxu0 0.0
    %3967 = vmatpush1.msra.mxu0 0.0
    %3968 = vmatprep.subr.mxu0 0.0
    %3969 = vmatpush1.msra.mxu0 0.0
    %3970 = vmatprep.subr.mxu0 0.0
    %3971 = vmatpush1.msra.mxu0 0.0
    %3972 = vmatprep.subr.mxu0 0.0
    %3973 = vmatpush1.msra.mxu0 0.0
    %3974 = vmatprep.subr.mxu0 0.0
    %3975 = vmatpush1.msra.mxu0 0.0
    %3976 = vmatprep.subr.mxu0 0.0
    %3977 = vmatpush1.msra.mxu0 0.0
    %3978 = vmatprep.subr.mxu0 0.0
    %3979 = vmatpush1.msra.mxu0 0.0
    %3980 = vmatprep.subr.mxu0 0.0
    %3981 = vmatpush1.msra.mxu0 0.0
    %3982 = vmatprep.subr.mxu0 0.0
    %3983 = vmatpush1.msra.mxu0 0.0
    %3984 = vmatprep.subr.mxu0 0.0
    %3985 = vmatpush1.msra.mxu0 0.0
    %3986 = vmatprep.subr.mxu0 0.0
    %3987 = vmatpush1.msra.mxu0 0.0
    %3988 = vmatprep.subr.mxu0 0.0
    %3989 = vmatpush1.msra.mxu0 0.0
    %3990 = vmatprep.subr.mxu0 0.0
    %3991 = vmatpush1.msra.mxu0 0.0
    %3992 = vmatprep.subr.mxu0 0.0
    %3993 = vmatpush1.msra.mxu0 0.0
    %3994 = vmatprep.subr.mxu0 0.0
    %3995 = vmatpush1.msra.mxu0 0.0
    %3996 = vmatprep.subr.mxu0 0.0
    %3997 = vmatpush1.msra.mxu0 0.0
    %3998 = vmatprep.subr.mxu0 0.0
    %3999 = vmatpush1.msra.mxu0 0.0
    %4000 = vmatprep.subr.mxu0 0.0
    %4001 = vmatpush1.msra.mxu0 0.0
    %4002 = vmatprep.subr.mxu0 0.0
    %4003 = vmatpush1.msra.mxu0 0.0
    %4004 = vmatprep.subr.mxu0 0.0
    %4005 = vmatpush1.msra.mxu0 0.0
    %4006 = vmatprep.subr.mxu0 0.0
    %4007 = vmatpush1.msra.mxu0 0.0
    %4008 = vmatprep.subr.mxu0 0.0
    %4009 = vmatpush1.msra.mxu0 0.0
    %4010 = vmatprep.subr.mxu0 0.0
    %4011 = vmatpush1.msra.mxu0 0.0
    %4012 = vmatprep.subr.mxu0 0.0
    %4013 = vmatpush1.msra.mxu0 0.0
    %4014 = vmatprep.subr.mxu0 0.0
    %4015 = vmatpush1.msra.mxu0 0.0
    %4016 = vmatprep.subr.mxu0 0.0
    %4017 = vmatpush1.msra.mxu0 0.0
    %4018 = vmatprep.mubr.f32.mxu0 0.0
    %4019 = vmatmul.mubr.f32.gmra.mrb[0].mxu0 %v3907
    %v4020 = vpop.f32.mrb[0].mxu0
    %v4021 = vadd.f32 0.0, %v4020
    %v4022 = vpop.f32.mrb[0].mxu0
    %4023 = vmatprep.mubr.f32.mxu0 0.0
    %4024 = vmatmul.mubr.f32.gmra.mrb[0].mxu0 %v3910
    %v4025 = vpop.f32.mrb[0].mxu0
    %v4026 = vadd.f32 0.0, %v4025
    %v4027 = vpop.f32.mrb[0].mxu0
    %4028 = vmatprep.mubr.f32.mxu0 0.0
    %4029 = vmatmul.mubr.f32.gmra.mrb[0].mxu0 %v3913
    %v4030 = vpop.f32.mrb[0].mxu0
    %v4031 = vadd.f32 0.0, %v4030
    %v4032 = vpop.f32.mrb[0].mxu0
    %4033 = vmatprep.mubr.f32.mxu0 0.0
    %4034 = vmatmul.mubr.f32.gmra.mrb[0].mxu0 %v3916
    %v4035 = vpop.f32.mrb[0].mxu0
    %v4036 = vadd.f32 0.0, %v4035
    %v4037 = vpop.f32.mrb[0].mxu0
    %4038 = vmatprep.mubr.f32.mxu0 0.0
    %4039 = vmatmul.mubr.f32.gmra.mrb[0].mxu0 %v3919
    %v4040 = vpop.f32.mrb[0].mxu0
    %v4041 = vadd.f32 0.0, %v4040
    %v4042 = vpop.f32.mrb[0].mxu0
    %4043 = vmatprep.mubr.f32.mxu0 0.0
    %4044 = vmatmul.mubr.f32.gmra.mrb[0].mxu0 %v3922
    %v4045 = vpop.f32.mrb[0].mxu0
    %v4046 = vadd.f32 0.0, %v4045
    %v4047 = vpop.f32.mrb[0].mxu0
    %4048 = vmatprep.mubr.f32.mxu0 0.0
    %4049 = vmatmul.mubr.f32.gmra.mrb[0].mxu0 %v3925
    %v4050 = vpop.f32.mrb[0].mxu0
    %v4051 = vadd.f32 0.0, %v4050
    %v4052 = vpop.f32.mrb[0].mxu0
    %4053 = vmatprep.mubr.f32.mxu0 0.0
    %4054 = vmatmul.mubr.f32.gmra.mrb[0].mxu0 %v3928
    %v4055 = vpop.f32.mrb[0].mxu0
    %v4056 = vadd.f32 0.0, %v4055
    %v4057 = vpop.f32.mrb[0].mxu0
    %4058 = vmatprep.mubr.f32.mxu0 0.0
    %4059 = vmatmul.mubr.f32.gmra.mrb[0].mxu0 %v3931
    %v4060 = vpop.f32.mrb[0].mxu0
    %v4061 = vadd.f32 0.0, %v4060
    %v4062 = vpop.f32.mrb[0].mxu0
    %4063 = vmatprep.mubr.f32.mxu0 0.0
    %4064 = vmatmul.mubr.f32.gmra.mrb[0].mxu0 %v3934
    %v4065 = vpop.f32.mrb[0].mxu0
    %v4066 = vadd.f32 0.0, %v4065
    %v4067 = vpop.f32.mrb[0].mxu0
    %4068 = vmatprep.mubr.f32.mxu0 0.0
    %4069 = vmatmul.mubr.f32.gmra.mrb[0].mxu0 %v3937
    %v4070 = vpop.f32.mrb[0].mxu0
    %v4071 = vadd.f32 0.0, %v4070
    %v4072 = vpop.f32.mrb[0].mxu0
    %4073 = vmatprep.mubr.f32.mxu0 0.0
    %4074 = vmatmul.mubr.f32.gmra.mrb[0].mxu0 %v3940
    %v4075 = vpop.f32.mrb[0].mxu0
    %v4076 = vadd.f32 0.0, %v4075
    %v4077 = vpop.f32.mrb[0].mxu0
    %4078 = vmatprep.mubr.f32.mxu0 0.0
    %4079 = vmatmul.mubr.f32.gmra.mrb[0].mxu0 %v3943
    %v4080 = vpop.f32.mrb[0].mxu0
    %v4081 = vadd.f32 0.0, %v4080
    %v4082 = vpop.f32.mrb[0].mxu0
    %4083 = vmatprep.mubr.f32.mxu0 0.0
    %4084 = vmatmul.mubr.f32.gmra.mrb[0].mxu0 %v3946
    %v4085 = vpop.f32.mrb[0].mxu0
    %v4086 = vadd.f32 0.0, %v4085
    %v4087 = vpop.f32.mrb[0].mxu0
    %4088 = vmatprep.mubr.f32.mxu0 0.0
    %4089 = vmatmul.mubr.f32.gmra.mrb[0].mxu0 %v3949
    %v4090 = vpop.f32.mrb[0].mxu0
    %v4091 = vadd.f32 0.0, %v4090
    %v4092 = vpop.f32.mrb[0].mxu0
    %4093 = vmatprep.mubr.f32.mxu0 0.0
    %4094 = vmatmul.mubr.f32.gmra.mrb[0].mxu0 %v3952
    %v4095 = vpop.f32.mrb[0].mxu0
    %v4096 = vadd.f32 0.0, %v4095
    %v4097 = vpop.f32.mrb[0].mxu0
    %4098 = vdwg.mxu0
    %v4099 = vadd.f32 %v2224, %v4021
    %v4100 = vadd.f32 %v2225, %v4026
    %v4101 = vadd.f32 %v2226, %v4031
    %v4102 = vadd.f32 %v2227, %v4036
    %v4103 = vadd.f32 %v2228, %v4041
    %v4104 = vadd.f32 %v2229, %v4046
    %v4105 = vadd.f32 %v2230, %v4051
    %v4106 = vadd.f32 %v2231, %v4056
    %v4107 = vadd.f32 %v2232, %v4061
    %v4108 = vadd.f32 %v2233, %v4066
    %v4109 = vadd.f32 %v2234, %v4071
    %v4110 = vadd.f32 %v2235, %v4076
    %v4111 = vadd.f32 %v2236, %v4081
    %v4112 = vadd.f32 %v2237, %v4086
    %v4113 = vadd.f32 %v2238, %v4091
    %v4114 = vadd.f32 %v2239, %v4096
    %4115 = vst.msk [vmem:[#allocation10] sm:$0xff] %vm460, %v1365
    %4116 = vst.msk [vmem:[#allocation10 + $0x8] sm:$0xff] %vm460, %v1366
    %4117 = vst.msk [vmem:[#allocation10 + $0x10] sm:$0xff] %vm460, %v3176
    %4118 = vst.msk [vmem:[#allocation10 + $0x18] sm:$0xff] %vm460, %v3177
    %4119 = vst.msk [vmem:[#allocation10 + $0x20] sm:$0xff] %vm460, %v1367
    %4120 = vst.msk [vmem:[#allocation10 + $0x28] sm:$0xff] %vm460, %v1368
    %4121 = vst.msk [vmem:[#allocation10 + $0x30] sm:$0xff] %vm460, %v3178
    %4122 = vst.msk [vmem:[#allocation10 + $0x38] sm:$0xff] %vm460, %v3179
    %4123 = vst.msk [vmem:[#allocation10 + $0x40] sm:$0xff] %vm460, %v1369
    %4124 = vst.msk [vmem:[#allocation10 + $0x48] sm:$0xff] %vm460, %v1370
    %4125 = vst.msk [vmem:[#allocation10 + $0x50] sm:$0xff] %vm460, %v3180
    %4126 = vst.msk [vmem:[#allocation10 + $0x58] sm:$0xff] %vm460, %v3181
    %4127 = vst.msk [vmem:[#allocation10 + $0x60] sm:$0xff] %vm460, %v1371
    %4128 = vst.msk [vmem:[#allocation10 + $0x68] sm:$0xff] %vm460, %v1372
    %4129 = vst.msk [vmem:[#allocation10 + $0x70] sm:$0xff] %vm460, %v3182
    %4130 = vst.msk [vmem:[#allocation10 + $0x78] sm:$0xff] %vm460, %v3183
    %4131 = vst.msk [vmem:[#allocation10 + $0x80] sm:$0xff] %vm460, %v1373
    %4132 = vst.msk [vmem:[#allocation10 + $0x88] sm:$0xff] %vm460, %v1374
    %4133 = vst.msk [vmem:[#allocation10 + $0x90] sm:$0xff] %vm460, %v3184
    %4134 = vst.msk [vmem:[#allocation10 + $0x98] sm:$0xff] %vm460, %v3185
    %4135 = vst.msk [vmem:[#allocation10 + $0xa0] sm:$0xff] %vm460, %v1375
    %4136 = vst.msk [vmem:[#allocation10 + $0xa8] sm:$0xff] %vm460, %v1376
    %4137 = vst.msk [vmem:[#allocation10 + $0xb0] sm:$0xff] %vm460, %v3186
    %4138 = vst.msk [vmem:[#allocation10 + $0xb8] sm:$0xff] %vm460, %v3187
    %4139 = vst.msk [vmem:[#allocation10 + $0xc0] sm:$0xff] %vm460, %v1377
    %4140 = vst.msk [vmem:[#allocation10 + $0xc8] sm:$0xff] %vm460, %v1378
    %4141 = vst.msk [vmem:[#allocation10 + $0xd0] sm:$0xff] %vm460, %v3188
    %4142 = vst.msk [vmem:[#allocation10 + $0xd8] sm:$0xff] %vm460, %v3189
    %4143 = vst.msk [vmem:[#allocation10 + $0xe0] sm:$0xff] %vm460, %v1379
    %4144 = vst.msk [vmem:[#allocation10 + $0xe8] sm:$0xff] %vm460, %v1380
    %4145 = vst.msk [vmem:[#allocation10 + $0xf0] sm:$0xff] %vm460, %v3190
    %4146 = vst.msk [vmem:[#allocation10 + $0xf8] sm:$0xff] %vm460, %v3191
    %v4147 = vsel %vm101, %v4099, 0.0
    %4148 = vadd.xlane.f32.xlu0 %v4147
    %v4149 = vpop.xlane.xlu0 %4148
    %v4150 = vsel %vm101, %v4100, 0.0
    %4151 = vadd.xlane.f32.xlu0 %v4150
    %v4152 = vpop.xlane.xlu0 %4151
    %v4153 = vsel %vm101, %v4101, 0.0
    %4154 = vadd.xlane.f32.xlu0 %v4153
    %v4155 = vpop.xlane.xlu0 %4154
    %v4156 = vsel %vm101, %v4102, 0.0
    %4157 = vadd.xlane.f32.xlu0 %v4156
    %v4158 = vpop.xlane.xlu0 %4157
    %v4159 = vsel %vm101, %v4103, 0.0
    %4160 = vadd.xlane.f32.xlu0 %v4159
    %v4161 = vpop.xlane.xlu0 %4160
    %v4162 = vsel %vm101, %v4104, 0.0
    %4163 = vadd.xlane.f32.xlu0 %v4162
    %v4164 = vpop.xlane.xlu0 %4163
    %v4165 = vsel %vm101, %v4105, 0.0
    %4166 = vadd.xlane.f32.xlu0 %v4165
    %v4167 = vpop.xlane.xlu0 %4166
    %v4168 = vsel %vm101, %v4106, 0.0
    %4169 = vadd.xlane.f32.xlu0 %v4168
    %v4170 = vpop.xlane.xlu0 %4169
    %v4171 = vsel %vm101, %v4107, 0.0
    %4172 = vadd.xlane.f32.xlu0 %v4171
    %v4173 = vpop.xlane.xlu0 %4172
    %v4174 = vsel %vm101, %v4108, 0.0
    %4175 = vadd.xlane.f32.xlu0 %v4174
    %v4176 = vpop.xlane.xlu0 %4175
    %v4177 = vsel %vm101, %v4109, 0.0
    %4178 = vadd.xlane.f32.xlu0 %v4177
    %v4179 = vpop.xlane.xlu0 %4178
    %v4180 = vsel %vm101, %v4110, 0.0
    %4181 = vadd.xlane.f32.xlu0 %v4180
    %v4182 = vpop.xlane.xlu0 %4181
    %v4183 = vsel %vm101, %v4111, 0.0
    %4184 = vadd.xlane.f32.xlu0 %v4183
    %v4185 = vpop.xlane.xlu0 %4184
    %v4186 = vsel %vm101, %v4112, 0.0
    %4187 = vadd.xlane.f32.xlu0 %v4186
    %v4188 = vpop.xlane.xlu0 %4187
    %v4189 = vsel %vm101, %v4113, 0.0
    %4190 = vadd.xlane.f32.xlu0 %v4189
    %v4191 = vpop.xlane.xlu0 %4190
    %v4192 = vsel %vm101, %v4114, 0.0
    %4193 = vadd.xlane.f32.xlu0 %v4192
    %v4194 = vpop.xlane.xlu0 %4193
    %v4195 = vrcp.pop 32.0
    %v4196 = vmul.f32 %v4149, %v4195
    %v4197 = vmul.f32 %v4152, %v4195
    %v4198 = vmul.f32 %v4155, %v4195
    %v4199 = vmul.f32 %v4158, %v4195
    %v4200 = vmul.f32 %v4161, %v4195
    %v4201 = vmul.f32 %v4164, %v4195
    %v4202 = vmul.f32 %v4167, %v4195
    %v4203 = vmul.f32 %v4170, %v4195
    %v4204 = vmul.f32 %v4173, %v4195
    %v4205 = vmul.f32 %v4176, %v4195
    %v4206 = vmul.f32 %v4179, %v4195
    %v4207 = vmul.f32 %v4182, %v4195
    %v4208 = vmul.f32 %v4185, %v4195
    %v4209 = vmul.f32 %v4188, %v4195
    %v4210 = vmul.f32 %v4191, %v4195
    %v4211 = vmul.f32 %v4194, %v4195
    %v4212 = vsub.f32 %v4099, %v4196
    %v4213 = vsub.f32 %v4100, %v4197
    %v4214 = vsub.f32 %v4101, %v4198
    %v4215 = vsub.f32 %v4102, %v4199
    %v4216 = vsub.f32 %v4103, %v4200
    %v4217 = vsub.f32 %v4104, %v4201
    %v4218 = vsub.f32 %v4105, %v4202
    %v4219 = vsub.f32 %v4106, %v4203
    %v4220 = vsub.f32 %v4107, %v4204
    %v4221 = vsub.f32 %v4108, %v4205
    %v4222 = vsub.f32 %v4109, %v4206
    %v4223 = vsub.f32 %v4110, %v4207
    %v4224 = vsub.f32 %v4111, %v4208
    %v4225 = vsub.f32 %v4112, %v4209
    %v4226 = vsub.f32 %v4113, %v4210
    %v4227 = vsub.f32 %v4114, %v4211
    %v4228 = vmul.f32 %v4212, %v4212
    %v4229 = vmul.f32 %v4213, %v4213
    %v4230 = vmul.f32 %v4214, %v4214
    %v4231 = vmul.f32 %v4215, %v4215
    %v4232 = vmul.f32 %v4216, %v4216
    %v4233 = vmul.f32 %v4217, %v4217
    %v4234 = vmul.f32 %v4218, %v4218
    %v4235 = vmul.f32 %v4219, %v4219
    %v4236 = vmul.f32 %v4220, %v4220
    %v4237 = vmul.f32 %v4221, %v4221
    %v4238 = vmul.f32 %v4222, %v4222
    %v4239 = vmul.f32 %v4223, %v4223
    %v4240 = vmul.f32 %v4224, %v4224
    %v4241 = vmul.f32 %v4225, %v4225
    %v4242 = vmul.f32 %v4226, %v4226
    %v4243 = vmul.f32 %v4227, %v4227
    %v4244 = vsel %vm101, %v4228, 0.0
    %4245 = vadd.xlane.f32.xlu0 %v4244
    %v4246 = vpop.xlane.xlu0 %4245
    %v4247 = vsel %vm101, %v4229, 0.0
    %4248 = vadd.xlane.f32.xlu0 %v4247
    %v4249 = vpop.xlane.xlu0 %4248
    %v4250 = vsel %vm101, %v4230, 0.0
    %4251 = vadd.xlane.f32.xlu0 %v4250
    %v4252 = vpop.xlane.xlu0 %4251
    %v4253 = vsel %vm101, %v4231, 0.0
    %4254 = vadd.xlane.f32.xlu0 %v4253
    %v4255 = vpop.xlane.xlu0 %4254
    %v4256 = vsel %vm101, %v4232, 0.0
    %4257 = vadd.xlane.f32.xlu0 %v4256
    %v4258 = vpop.xlane.xlu0 %4257
    %v4259 = vsel %vm101, %v4233, 0.0
    %4260 = vadd.xlane.f32.xlu0 %v4259
    %v4261 = vpop.xlane.xlu0 %4260
    %v4262 = vsel %vm101, %v4234, 0.0
    %4263 = vadd.xlane.f32.xlu0 %v4262
    %v4264 = vpop.xlane.xlu0 %4263
    %v4265 = vsel %vm101, %v4235, 0.0
    %4266 = vadd.xlane.f32.xlu0 %v4265
    %v4267 = vpop.xlane.xlu0 %4266
    %v4268 = vsel %vm101, %v4236, 0.0
    %4269 = vadd.xlane.f32.xlu0 %v4268
    %v4270 = vpop.xlane.xlu0 %4269
    %v4271 = vsel %vm101, %v4237, 0.0
    %4272 = vadd.xlane.f32.xlu0 %v4271
    %v4273 = vpop.xlane.xlu0 %4272
    %v4274 = vsel %vm101, %v4238, 0.0
    %4275 = vadd.xlane.f32.xlu0 %v4274
    %v4276 = vpop.xlane.xlu0 %4275
    %v4277 = vsel %vm101, %v4239, 0.0
    %4278 = vadd.xlane.f32.xlu0 %v4277
    %v4279 = vpop.xlane.xlu0 %4278
    %v4280 = vsel %vm101, %v4240, 0.0
    %4281 = vadd.xlane.f32.xlu0 %v4280
    %v4282 = vpop.xlane.xlu0 %4281
    %v4283 = vsel %vm101, %v4241, 0.0
    %4284 = vadd.xlane.f32.xlu0 %v4283
    %v4285 = vpop.xlane.xlu0 %4284
    %v4286 = vsel %vm101, %v4242, 0.0
    %4287 = vadd.xlane.f32.xlu0 %v4286
    %v4288 = vpop.xlane.xlu0 %4287
    %v4289 = vsel %vm101, %v4243, 0.0
    %4290 = vadd.xlane.f32.xlu0 %v4289
    %v4291 = vpop.xlane.xlu0 %4290
    %v4292 = vmul.f32 %v4246, %v4195
    %v4293 = vmul.f32 %v4249, %v4195
    %v4294 = vmul.f32 %v4252, %v4195
    %v4295 = vmul.f32 %v4255, %v4195
    %v4296 = vmul.f32 %v4258, %v4195
    %v4297 = vmul.f32 %v4261, %v4195
    %v4298 = vmul.f32 %v4264, %v4195
    %v4299 = vmul.f32 %v4267, %v4195
    %v4300 = vmul.f32 %v4270, %v4195
    %v4301 = vmul.f32 %v4273, %v4195
    %v4302 = vmul.f32 %v4276, %v4195
    %v4303 = vmul.f32 %v4279, %v4195
    %v4304 = vmul.f32 %v4282, %v4195
    %v4305 = vmul.f32 %v4285, %v4195
    %v4306 = vmul.f32 %v4288, %v4195
    %v4307 = vmul.f32 %v4291, %v4195
    %v4308 = vadd.f32 %v4292, 1e-06
    %v4309 = vadd.f32 %v4293, 1e-06
    %v4310 = vadd.f32 %v4294, 1e-06
    %v4311 = vadd.f32 %v4295, 1e-06
    %v4312 = vadd.f32 %v4296, 1e-06
    %v4313 = vadd.f32 %v4297, 1e-06
    %v4314 = vadd.f32 %v4298, 1e-06
    %v4315 = vadd.f32 %v4299, 1e-06
    %v4316 = vadd.f32 %v4300, 1e-06
    %v4317 = vadd.f32 %v4301, 1e-06
    %v4318 = vadd.f32 %v4302, 1e-06
    %v4319 = vadd.f32 %v4303, 1e-06
    %v4320 = vadd.f32 %v4304, 1e-06
    %v4321 = vadd.f32 %v4305, 1e-06
    %v4322 = vadd.f32 %v4306, 1e-06
    %v4323 = vadd.f32 %v4307, 1e-06
    %v4324 = vrsqrt.pop %v4308
    %v4325 = vrsqrt.pop %v4309
    %v4326 = vrsqrt.pop %v4310
    %v4327 = vrsqrt.pop %v4311
    %v4328 = vrsqrt.pop %v4312
    %v4329 = vrsqrt.pop %v4313
    %v4330 = vrsqrt.pop %v4314
    %v4331 = vrsqrt.pop %v4315
    %v4332 = vrsqrt.pop %v4316
    %v4333 = vrsqrt.pop %v4317
    %v4334 = vrsqrt.pop %v4318
    %v4335 = vrsqrt.pop %v4319
    %v4336 = vrsqrt.pop %v4320
    %v4337 = vrsqrt.pop %v4321
    %v4338 = vrsqrt.pop %v4322
    %v4339 = vrsqrt.pop %v4323
    %v4340 = vmul.f32 %v4212, %v4324
    %v4341 = vmul.f32 %v4213, %v4325
    %v4342 = vmul.f32 %v4214, %v4326
    %v4343 = vmul.f32 %v4215, %v4327
    %v4344 = vmul.f32 %v4216, %v4328
    %v4345 = vmul.f32 %v4217, %v4329
    %v4346 = vmul.f32 %v4218, %v4330
    %v4347 = vmul.f32 %v4219, %v4331
    %v4348 = vmul.f32 %v4220, %v4332
    %v4349 = vmul.f32 %v4221, %v4333
    %v4350 = vmul.f32 %v4222, %v4334
    %v4351 = vmul.f32 %v4223, %v4335
    %v4352 = vmul.f32 %v4224, %v4336
    %v4353 = vmul.f32 %v4225, %v4337
    %v4354 = vmul.f32 %v4226, %v4338
    %v4355 = vmul.f32 %v4227, %v4339
    %v4356 = vld [vmem:[%s4] sm:$0x1]
    %v4358 = vlaneseq
    %v4359 = vshrl.u32 %v4358, 7
    %v4360 = vsub.s32 0, %v4359
    %v4361 = vrot.slane %v4356, %v4360
    %v4363 = vmul.f32 %v4340, %v4361
    %v4364 = vmul.f32 %v4341, %v4361
    %v4365 = vmul.f32 %v4342, %v4361
    %v4366 = vmul.f32 %v4343, %v4361
    %v4367 = vmul.f32 %v4344, %v4361
    %v4368 = vmul.f32 %v4345, %v4361
    %v4369 = vmul.f32 %v4346, %v4361
    %v4370 = vmul.f32 %v4347, %v4361
    %v4371 = vmul.f32 %v4348, %v4361
    %v4372 = vmul.f32 %v4349, %v4361
    %v4373 = vmul.f32 %v4350, %v4361
    %v4374 = vmul.f32 %v4351, %v4361
    %v4375 = vmul.f32 %v4352, %v4361
    %v4376 = vmul.f32 %v4353, %v4361
    %v4377 = vmul.f32 %v4354, %v4361
    %v4378 = vmul.f32 %v4355, %v4361
    %v4379 = vld [vmem:[%s5] sm:$0x1]
    %v4381 = vlaneseq
    %v4382 = vshrl.u32 %v4381, 7
    %v4383 = vsub.s32 0, %v4382
    %v4384 = vrot.slane %v4379, %v4383
    %v4386 = vadd.f32 %v4363, %v4384
    %v4387 = vadd.f32 %v4364, %v4384
    %v4388 = vadd.f32 %v4365, %v4384
    %v4389 = vadd.f32 %v4366, %v4384
    %v4390 = vadd.f32 %v4367, %v4384
    %v4391 = vadd.f32 %v4368, %v4384
    %v4392 = vadd.f32 %v4369, %v4384
    %v4393 = vadd.f32 %v4370, %v4384
    %v4394 = vadd.f32 %v4371, %v4384
    %v4395 = vadd.f32 %v4372, %v4384
    %v4396 = vadd.f32 %v4373, %v4384
    %v4397 = vadd.f32 %v4374, %v4384
    %v4398 = vadd.f32 %v4375, %v4384
    %v4399 = vadd.f32 %v4376, %v4384
    %v4400 = vadd.f32 %v4377, %v4384
    %v4401 = vadd.f32 %v4378, %v4384
    %4402 = vst.msk [vmem:[%s6] sm:$0xff] %vm101, %v4386
    %4403 = vst.msk [vmem:[%s6 + $0x8] sm:$0xff] %vm101, %v4387
    %4404 = vst.msk [vmem:[%s6 + $0x10] sm:$0xff] %vm101, %v4388
    %4405 = vst.msk [vmem:[%s6 + $0x18] sm:$0xff] %vm101, %v4389
    %4406 = vst.msk [vmem:[%s6 + $0x20] sm:$0xff] %vm101, %v4390
    %4407 = vst.msk [vmem:[%s6 + $0x28] sm:$0xff] %vm101, %v4391
    %4408 = vst.msk [vmem:[%s6 + $0x30] sm:$0xff] %vm101, %v4392
    %4409 = vst.msk [vmem:[%s6 + $0x38] sm:$0xff] %vm101, %v4393
    %4410 = vst.msk [vmem:[%s6 + $0x40] sm:$0xff] %vm101, %v4394
    %4411 = vst.msk [vmem:[%s6 + $0x48] sm:$0xff] %vm101, %v4395
    %4412 = vst.msk [vmem:[%s6 + $0x50] sm:$0xff] %vm101, %v4396
    %4413 = vst.msk [vmem:[%s6 + $0x58] sm:$0xff] %vm101, %v4397
    %4414 = vst.msk [vmem:[%s6 + $0x60] sm:$0xff] %vm101, %v4398
    %4415 = vst.msk [vmem:[%s6 + $0x68] sm:$0xff] %vm101, %v4399
    %4416 = vst.msk [vmem:[%s6 + $0x70] sm:$0xff] %vm101, %v4400
    %4417 = vst.msk [vmem:[%s6 + $0x78] sm:$0xff] %vm101, %v4401
    // Predicated region
    $region42: #{tpu_custom_call.1} parent=1 // pred_check
      _
    $region43: #{tpu_custom_call.1} parent=1 // pred_check_branch
      %4419 = sbr.rel (0) target = $region45
    $region44: #{tpu_custom_call.1} parent=1 // pred_region
      _
    $region45: #{tpu_custom_call.1} parent=1 // pred_fallthru
      _
    // Predicated region
    $region46: #{tpu_custom_call.1} parent=1 // pred_check
      _
    $region47: #{tpu_custom_call.1} parent=1 // pred_check_branch
      %4421 = sbr.rel (0) target = $region49
    $region48: #{tpu_custom_call.1} parent=1 // pred_region
      %s4423 = ssub.s32 4096, 4096
      %4424 = vsyncadd [#allocation4], %s4423
      %s4425 = sshll.u32 [#allocation10], 4
      %s4426 = int_to_ptr.vmem [resolvable:$true] %s4425
      %4431 = dma.vmem_to_hbm [thread:$0]  %s4426, 4096, %s7, [#allocation4], 128, 128, 8
    $region49: #{tpu_custom_call.1} parent=1 // pred_fallthru
      _
    // Predicated region
    $region50: #{tpu_custom_call.1} parent=1 // pred_check
      _
    $region51: #{tpu_custom_call.1} parent=1 // pred_check_branch
      %4433 = sbr.rel (0) target = $region53
    $region52: #{tpu_custom_call.1} parent=1 // pred_region
      _
    $region53: #{tpu_custom_call.1} parent=1 // pred_fallthru
      _
    // Predicated region
    $region54: #{tpu_custom_call.1} parent=1 // pred_check
      _
    $region55: #{tpu_custom_call.1} parent=1 // pred_check_branch
      %4435 = sbr.rel (0) target = $region57
    $region56: #{tpu_custom_call.1} parent=1 // pred_region
      %4436 = dma.done [#allocation4], 4096
    $region57: #{tpu_custom_call.1} parent=1 // pred_fallthru
      _
    %4437 = vsyncpa [#allocation3], 1
    %4438 = vsyncpa [#allocation6], 1
    %4439 = vsyncpa [#allocation9], 1
    %4440 = vsyncpa [#allocation4], 1

</llo_original>
